<compile_context>
chip_gen: v7x
topology: tpu7x:2x2x1
jax: 0.10.0
libtpu: 0.0.40
codegen_flags: <defaults>
</compile_context>

<pallas_src>
import jax
import jax.numpy as jnp
from jax.experimental import pallas as pl
from jax.experimental.pallas import tpu as pltpu

LANE = 128  # TPU lane width; latent head is padded to this for lane-dense IO.


def _round_up(x, m):
    return ((x + m - 1) // m) * m


# -----------------------------------------------------------------------------
# Kernel
# -----------------------------------------------------------------------------
def vae_kernel(
    # inputs
    x_ref, eps_ref,
    ew1, ew2, ew3, ew4, ew5, ewh,          # encoder weights (ewh = fused, lane-padded mu||log_var head)
    dw1, dw2, dw3, dw4, dw5, dw6,          # decoder weights (dw1 row-padded to LANE)
    bias_ref,                              # packed (12, 1024) f32 bias buffer
    # outputs
    xrec_ref, mulv_ref,
):
    lane = eps_ref.shape[1]                # == LANE (eps is zero-padded to 128 lanes)

    def linear(h_f32, w_ref, row):
        n = w_ref.shape[1]
        b = bias_ref[row:row + 1, 0:n]                       # (1, n) f32
        return jnp.dot(h_f32.astype(jnp.bfloat16), w_ref[...],
                       preferred_element_type=jnp.float32) + b

    # ---- encoder: 5x Linear + ReLU ----
    h = x_ref[...]
    for i, w in enumerate((ew1, ew2, ew3, ew4, ew5)):
        h = jnp.maximum(linear(h, w, i), 0.0)

    # ---- fused lane-padded mu / log_var head (one matmul, unmasked store) ----
    mulv = linear(h, ewh, 5)                                 # (bt, 2*LANE) f32
    mulv_ref[...] = mulv
    mu_p = mulv[:, :lane]                                    # vreg-aligned slices
    lv_p = mulv[:, lane:]

    # ---- reparameterize: z = mu + eps * exp(log_var / 2) ----
    # Padding lanes: mu_p = 0, lv_p = 0 -> exp = 1, eps = 0 -> z = 0 there.
    z = mu_p + eps_ref[...] * jnp.exp(0.5 * lv_p)            # (bt, LANE)

    # ---- decoder: 5x Linear + ReLU, then Linear + sigmoid ----
    for i, w in enumerate((dw1, dw2, dw3, dw4, dw5)):
        z = jnp.maximum(linear(z, w, 6 + i), 0.0)
    logits = linear(z, dw6, 11)

    # sigmoid(x) = 1 / (1 + exp(-x));  exp + approx reciprocal both on EUP.
    e = jnp.exp(-logits)
    xrec_ref[...] = pl.reciprocal(1.0 + e, approx=True)


# -----------------------------------------------------------------------------
# Parameter construction / packing
# -----------------------------------------------------------------------------
def init_linear_params(key, in_features, out_features):
    """PyTorch-style init U(-1/sqrt(fan_in), 1/sqrt(fan_in)); weight returned
    pre-transposed to (in, out)."""
    kw, kb = jax.random.split(key)
    bound = 1.0 / jnp.sqrt(jnp.float32(in_features))
    w = jax.random.uniform(kw, (in_features, out_features), jnp.float32, -bound, bound)
    b = jax.random.uniform(kb, (1, out_features), jnp.float32, -bound, bound)
    return w, b


def make_params(input_size, latent_dims, seed=0):
    key = jax.random.PRNGKey(seed)
    keys = jax.random.split(key, 13)
    enc_dims = [input_size, 512, 256, 128, 64, 32]
    dec_dims = [latent_dims, 32, 64, 128, 256, 512, input_size]

    params = []
    for i in range(5):                                     # encoder linear1..5
        params.extend(init_linear_params(keys[i], enc_dims[i], enc_dims[i + 1]))
    params.extend(init_linear_params(keys[5], 32, latent_dims))   # linear6 (mu)
    params.extend(init_linear_params(keys[6], 32, latent_dims))   # linear7 (log_var)
    for i in range(6):                                     # decoder linear1..6
        params.extend(init_linear_params(keys[7 + i], dec_dims[i], dec_dims[i + 1]))
    return tuple(params)


def pack_params(params):
    """Build kernel-ready params: 12 bf16 weights (mu/log_var heads fused and
    lane-padded; decoder first layer row-padded) and one packed (12, W) f32
    bias buffer."""
    (ew1, eb1, ew2, eb2, ew3, eb3, ew4, eb4, ew5, eb5,
     wmu, bmu, wlv, blv,
     dw1, db1, dw2, db2, dw3, db3, dw4, db4, dw5, db5, dw6, db6) = params

    latent = wmu.shape[1]
    assert latent <= LANE, "latent_dims must be <= 128 for lane-padded head"

    # Fused head: mu in columns [0, latent) of lanes [0, 128),
    # log_var in columns [128, 128+latent); zeros elsewhere.
    ewh = jnp.zeros((wmu.shape[0], 2 * LANE), jnp.float32)
    ewh = ewh.at[:, :latent].set(wmu)
    ewh = ewh.at[:, LANE:LANE + latent].set(wlv)
    ebh = jnp.zeros((1, 2 * LANE), jnp.float32)
    ebh = ebh.at[0, :latent].set(bmu[0])
    ebh = ebh.at[0, LANE:LANE + latent].set(blv[0])

    # Decoder first layer: pad input rows from latent to LANE with zeros
    # (matches the zero-padded z coming out of the reparameterize step).
    dw1p = jnp.zeros((LANE, dw1.shape[1]), jnp.float32).at[:latent, :].set(dw1)

    weights = (ew1, ew2, ew3, ew4, ew5, ewh, dw1p, dw2, dw3, dw4, dw5, dw6)
    biases = (eb1, eb2, eb3, eb4, eb5, ebh, db1, db2, db3, db4, db5, db6)

    weights_bf16 = tuple(w.astype(jnp.bfloat16) for w in weights)

    width = _round_up(max(int(b.shape[1]) for b in biases), 128)
    bias_buf = jnp.zeros((len(biases), width), jnp.float32)
    for i, b in enumerate(biases):
        bias_buf = bias_buf.at[i, : b.shape[1]].set(b[0])
    return weights_bf16, bias_buf


# -----------------------------------------------------------------------------
# Wrapper
# -----------------------------------------------------------------------------
@jax.jit
def vae_forward(x_nchw, eps, weights, bias_buf):
    B = x_nchw.shape[0]
    input_size = x_nchw.shape[1] * x_nchw.shape[2] * x_nchw.shape[3]
    latent = eps.shape[1]

    x = x_nchw.reshape(B, input_size).astype(jnp.float32)  # torch.flatten(x, 1)

    # Batch tile: multiple of 8 (f32 sublane), capped at 256 rows so the tile +
    # resident bf16 weights stay well inside 32 MiB of VMEM on every chip gen.
    bt = min(256, _round_up(B, 8))
    B_pad = _round_up(B, bt)

    # Pad eps to a full 128-lane width (extra lanes are zero and stay zero
    # through reparameterize thanks to the zero-padded head / dw1).
    eps_p = jnp.pad(eps.astype(jnp.float32),
                    ((0, B_pad - B), (0, LANE - latent)))
    if B_pad != B:
        x = jnp.pad(x, ((0, B_pad - B), (0, 0)))

    grid = (B_pad // bt,)
    w_specs = [pl.BlockSpec(w.shape, lambda i: (0, 0)) for w in weights]
    in_specs = (
        [pl.BlockSpec((bt, input_size), lambda i: (i, 0)),     # x tile
         pl.BlockSpec((bt, LANE), lambda i: (i, 0))]           # eps tile (lane-dense)
        + w_specs                                              # resident weights
        + [pl.BlockSpec(bias_buf.shape, lambda i: (0, 0))]     # resident biases
    )
    out_specs = (
        pl.BlockSpec((bt, input_size), lambda i: (i, 0)),      # x_reconst (lane-dense)
        pl.BlockSpec((bt, 2 * LANE), lambda i: (i, 0)),        # mu || log_var (lane-dense)
    )
    out_shapes = (
        jax.ShapeDtypeStruct((B_pad, input_size), jnp.float32),
        jax.ShapeDtypeStruct((B_pad, 2 * LANE), jnp.float32),
    )

    xrec_p, mulv_p = pl.pallas_call(
        vae_kernel,
        out_shape=out_shapes,
        grid=grid,
        in_specs=in_specs,
        out_specs=out_specs,
        compiler_params=pltpu.CompilerParams(
            dimension_semantics=("parallel",),
            vmem_limit_bytes=32 * 1024 * 1024,
        ),
    )(x, eps_p, *weights, bias_buf)

    x_reconst = xrec_p[:B]
    mu = mulv_p[:B, :latent]
    log_var = mulv_p[:B, LANE:LANE + latent]
    return x_reconst, mu, log_var


# -----------------------------------------------------------------------------
# Pure-JAX reference (same bf16-operand / f32-accumulate numerics)
# -----------------------------------------------------------------------------
def vae_forward_reference(x_nchw, eps, params):
    B = x_nchw.shape[0]
    x = x_nchw.reshape(B, -1)
    (ew1, eb1, ew2, eb2, ew3, eb3, ew4, eb4, ew5, eb5,
     wmu, bmu, wlv, blv,
     dw1, db1, dw2, db2, dw3, db3, dw4, db4, dw5, db5, dw6, db6) = params

    def lin(h, w, b):
        return jnp.dot(h.astype(jnp.bfloat16), w.astype(jnp.bfloat16),
                       preferred_element_type=jnp.float32) + b

    h = x
    for w, b in ((ew1, eb1), (ew2, eb2), (ew3, eb3), (ew4, eb4), (ew5, eb5)):
        h = jax.nn.relu(lin(h, w, b))
    mu = lin(h, wmu, bmu)
    log_var = lin(h, wlv, blv)
    z = mu + eps * jnp.exp(log_var / 2.0)
    for w, b in ((dw1, db1), (dw2, db2), (dw3, db3), (dw4, db4), (dw5, db5)):
        z = jax.nn.relu(lin(z, w, b))
    x_rec = jax.nn.sigmoid(lin(z, dw6, db6))
    return x_rec, mu, log_var


# -----------------------------------------------------------------------------
if __name__ == "__main__":
    # NCHW input flattened to input_size = C*H*W = 4*16*16 = 1024, latent = 8.
    B, C, H, W = 2, 4, 16, 16
    input_size = C * H * W
    latent_dims = 8

    key = jax.random.PRNGKey(0)
    k_x, k_eps = jax.random.split(key)
    x = jax.random.uniform(k_x, (B, C, H, W), jnp.float32)           # NCHW
    eps = jax.random.normal(k_eps, (B, latent_dims), jnp.float32)    # randn_like(std)

    params = make_params(input_size, latent_dims, seed=0)
    weights, bias_buf = pack_params(params)

    x_reconst, mu, log_var = vae_forward(x, eps, weights, bias_buf)
    jax.block_until_ready((x_reconst, mu, log_var))

    # correctness check against pure-JAX reference (matched bf16 dot numerics)
    xr_ref, mu_ref, lv_ref = vae_forward_reference(x, eps, params)
    assert x_reconst.shape == (B, input_size)
    assert mu.shape == (B, latent_dims) and log_var.shape == (B, latent_dims)
    assert jnp.allclose(mu, mu_ref, atol=1e-3, rtol=1e-2)
    assert jnp.allclose(log_var, lv_ref, atol=1e-3, rtol=1e-2)
    assert jnp.allclose(x_reconst, xr_ref, atol=2e-2, rtol=2e-2)

    print("KERNEL_OK")
</pallas_src>

<mosaic_0001>
module attributes {stable_mosaic.version = 11 : i64} {
  func.func @vae_kernel(%arg0: i32, %arg1: memref<8x1024xf32, #tpu.memory_space<vmem>>, %arg2: memref<8x128xf32, #tpu.memory_space<vmem>>, %arg3: memref<1024x512xbf16, #tpu.memory_space<vmem>>, %arg4: memref<512x256xbf16, #tpu.memory_space<vmem>>, %arg5: memref<256x128xbf16, #tpu.memory_space<vmem>>, %arg6: memref<128x64xbf16, #tpu.memory_space<vmem>>, %arg7: memref<64x32xbf16, #tpu.memory_space<vmem>>, %arg8: memref<32x256xbf16, #tpu.memory_space<vmem>>, %arg9: memref<128x32xbf16, #tpu.memory_space<vmem>>, %arg10: memref<32x64xbf16, #tpu.memory_space<vmem>>, %arg11: memref<64x128xbf16, #tpu.memory_space<vmem>>, %arg12: memref<128x256xbf16, #tpu.memory_space<vmem>>, %arg13: memref<256x512xbf16, #tpu.memory_space<vmem>>, %arg14: memref<512x1024xbf16, #tpu.memory_space<vmem>>, %arg15: memref<12x1024xf32, #tpu.memory_space<vmem>>, %arg16: memref<8x1024xf32, #tpu.memory_space<vmem>>, %arg17: memref<8x256xf32, #tpu.memory_space<vmem>>) attributes {dimension_semantics = [#tpu.dimension_semantics<parallel>], iteration_bounds = array<i64: 1>, scalar_prefetch = 0 : i64, scratch_operands = 0 : i64, tpu.core_type = #tpu.core_type<tc>, window_params = [{transform_indices = @transform_0, window_bounds = array<i64: 8, 1024>}, {transform_indices = @transform_1, window_bounds = array<i64: 8, 128>}, {pipeline_mode = #tpu.pipeline_mode<synchronous>, transform_indices = @transform_2, window_bounds = array<i64: 1024, 512>}, {pipeline_mode = #tpu.pipeline_mode<synchronous>, transform_indices = @transform_3, window_bounds = array<i64: 512, 256>}, {pipeline_mode = #tpu.pipeline_mode<synchronous>, transform_indices = @transform_4, window_bounds = array<i64: 256, 128>}, {pipeline_mode = #tpu.pipeline_mode<synchronous>, transform_indices = @transform_5, window_bounds = array<i64: 128, 64>}, {pipeline_mode = #tpu.pipeline_mode<synchronous>, transform_indices = @transform_6, window_bounds = array<i64: 64, 32>}, {pipeline_mode = #tpu.pipeline_mode<synchronous>, transform_indices = @transform_7, window_bounds = array<i64: 32, 256>}, {pipeline_mode = #tpu.pipeline_mode<synchronous>, transform_indices = @transform_8, window_bounds = array<i64: 128, 32>}, {pipeline_mode = #tpu.pipeline_mode<synchronous>, transform_indices = @transform_9, window_bounds = array<i64: 32, 64>}, {pipeline_mode = #tpu.pipeline_mode<synchronous>, transform_indices = @transform_10, window_bounds = array<i64: 64, 128>}, {pipeline_mode = #tpu.pipeline_mode<synchronous>, transform_indices = @transform_11, window_bounds = array<i64: 128, 256>}, {pipeline_mode = #tpu.pipeline_mode<synchronous>, transform_indices = @transform_12, window_bounds = array<i64: 256, 512>}, {pipeline_mode = #tpu.pipeline_mode<synchronous>, transform_indices = @transform_13, window_bounds = array<i64: 512, 1024>}, {pipeline_mode = #tpu.pipeline_mode<synchronous>, transform_indices = @transform_14, window_bounds = array<i64: 12, 1024>}, {transform_indices = @transform_15, window_bounds = array<i64: 8, 1024>}, {transform_indices = @transform_16, window_bounds = array<i64: 8, 256>}]} {
    %c0 = arith.constant 0 : index
    %c0_0 = arith.constant 0 : index
    %0 = vector.load %arg1[%c0, %c0_0] : memref<8x1024xf32, #tpu.memory_space<vmem>>, vector<8x1024xf32>
    %c0_1 = arith.constant 0 : index
    %c0_2 = arith.constant 0 : index
    %1 = vector.load %arg15[%c0_1, %c0_2] : memref<12x1024xf32, #tpu.memory_space<vmem>>, vector<1x512xf32>
    %2 = arith.truncf %0 : vector<8x1024xf32> to vector<8x1024xbf16>
    %c0_3 = arith.constant 0 : index
    %c0_4 = arith.constant 0 : index
    %3 = vector.load %arg3[%c0_3, %c0_4] : memref<1024x512xbf16, #tpu.memory_space<vmem>>, vector<1024x512xbf16>
    %cst = arith.constant dense<0.000000e+00> : vector<8x512xf32>
    %4 = tpu.matmul %2, %3, %cst {dimension_numbers = #tpu.dot_dimension_numbers<[1], [0], [0], [1], [0, 0, 1, 1], [], []>} : vector<8x1024xbf16>, vector<1024x512xbf16>, vector<8x512xf32> -> vector<8x512xf32>
    %5 = vector.broadcast %1 : vector<1x512xf32> to vector<8x512xf32>
    %6 = arith.addf %4, %5 : vector<8x512xf32>
    %cst_5 = arith.constant 0.000000e+00 : f32
    %7 = vector.broadcast %cst_5 : f32 to vector<8x512xf32>
    %8 = arith.maximumf %6, %7 : vector<8x512xf32>
    %c1 = arith.constant 1 : index
    %c0_6 = arith.constant 0 : index
    %9 = vector.load %arg15[%c1, %c0_6] : memref<12x1024xf32, #tpu.memory_space<vmem>>, vector<1x256xf32>
    %10 = arith.truncf %8 : vector<8x512xf32> to vector<8x512xbf16>
    %c0_7 = arith.constant 0 : index
    %c0_8 = arith.constant 0 : index
    %11 = vector.load %arg4[%c0_7, %c0_8] : memref<512x256xbf16, #tpu.memory_space<vmem>>, vector<512x256xbf16>
    %cst_9 = arith.constant dense<0.000000e+00> : vector<8x256xf32>
    %12 = tpu.matmul %10, %11, %cst_9 {dimension_numbers = #tpu.dot_dimension_numbers<[1], [0], [0], [1], [0, 0, 1, 1], [], []>} : vector<8x512xbf16>, vector<512x256xbf16>, vector<8x256xf32> -> vector<8x256xf32>
    %13 = vector.broadcast %9 : vector<1x256xf32> to vector<8x256xf32>
    %14 = arith.addf %12, %13 : vector<8x256xf32>
    %cst_10 = arith.constant 0.000000e+00 : f32
    %15 = vector.broadcast %cst_10 : f32 to vector<8x256xf32>
    %16 = arith.maximumf %14, %15 : vector<8x256xf32>
    %c2 = arith.constant 2 : index
    %c0_11 = arith.constant 0 : index
    %17 = vector.load %arg15[%c2, %c0_11] : memref<12x1024xf32, #tpu.memory_space<vmem>>, vector<1x128xf32>
    %18 = arith.truncf %16 : vector<8x256xf32> to vector<8x256xbf16>
    %c0_12 = arith.constant 0 : index
    %c0_13 = arith.constant 0 : index
    %19 = vector.load %arg5[%c0_12, %c0_13] : memref<256x128xbf16, #tpu.memory_space<vmem>>, vector<256x128xbf16>
    %cst_14 = arith.constant dense<0.000000e+00> : vector<8x128xf32>
    %20 = tpu.matmul %18, %19, %cst_14 {dimension_numbers = #tpu.dot_dimension_numbers<[1], [0], [0], [1], [0, 0, 1, 1], [], []>} : vector<8x256xbf16>, vector<256x128xbf16>, vector<8x128xf32> -> vector<8x128xf32>
    %21 = vector.broadcast %17 : vector<1x128xf32> to vector<8x128xf32>
    %22 = arith.addf %20, %21 : vector<8x128xf32>
    %cst_15 = arith.constant 0.000000e+00 : f32
    %23 = vector.broadcast %cst_15 : f32 to vector<8x128xf32>
    %24 = arith.maximumf %22, %23 : vector<8x128xf32>
    %c3 = arith.constant 3 : index
    %c0_16 = arith.constant 0 : index
    %25 = vector.load %arg15[%c3, %c0_16] : memref<12x1024xf32, #tpu.memory_space<vmem>>, vector<1x64xf32>
    %26 = arith.truncf %24 : vector<8x128xf32> to vector<8x128xbf16>
    %c0_17 = arith.constant 0 : index
    %c0_18 = arith.constant 0 : index
    %27 = vector.load %arg6[%c0_17, %c0_18] : memref<128x64xbf16, #tpu.memory_space<vmem>>, vector<128x64xbf16>
    %cst_19 = arith.constant dense<0.000000e+00> : vector<8x64xf32>
    %28 = tpu.matmul %26, %27, %cst_19 {dimension_numbers = #tpu.dot_dimension_numbers<[1], [0], [0], [1], [0, 0, 1, 1], [], []>} : vector<8x128xbf16>, vector<128x64xbf16>, vector<8x64xf32> -> vector<8x64xf32>
    %29 = vector.broadcast %25 : vector<1x64xf32> to vector<8x64xf32>
    %30 = arith.addf %28, %29 : vector<8x64xf32>
    %cst_20 = arith.constant 0.000000e+00 : f32
    %31 = vector.broadcast %cst_20 : f32 to vector<8x64xf32>
    %32 = arith.maximumf %30, %31 : vector<8x64xf32>
    %c4 = arith.constant 4 : index
    %c0_21 = arith.constant 0 : index
    %33 = vector.load %arg15[%c4, %c0_21] : memref<12x1024xf32, #tpu.memory_space<vmem>>, vector<1x32xf32>
    %34 = arith.truncf %32 : vector<8x64xf32> to vector<8x64xbf16>
    %c0_22 = arith.constant 0 : index
    %c0_23 = arith.constant 0 : index
    %35 = vector.load %arg7[%c0_22, %c0_23] : memref<64x32xbf16, #tpu.memory_space<vmem>>, vector<64x32xbf16>
    %cst_24 = arith.constant dense<0.000000e+00> : vector<8x32xf32>
    %36 = tpu.matmul %34, %35, %cst_24 {dimension_numbers = #tpu.dot_dimension_numbers<[1], [0], [0], [1], [0, 0, 1, 1], [], []>} : vector<8x64xbf16>, vector<64x32xbf16>, vector<8x32xf32> -> vector<8x32xf32>
    %37 = vector.broadcast %33 : vector<1x32xf32> to vector<8x32xf32>
    %38 = arith.addf %36, %37 : vector<8x32xf32>
    %cst_25 = arith.constant 0.000000e+00 : f32
    %39 = vector.broadcast %cst_25 : f32 to vector<8x32xf32>
    %40 = arith.maximumf %38, %39 : vector<8x32xf32>
    %c5 = arith.constant 5 : index
    %c0_26 = arith.constant 0 : index
    %41 = vector.load %arg15[%c5, %c0_26] : memref<12x1024xf32, #tpu.memory_space<vmem>>, vector<1x256xf32>
    %42 = arith.truncf %40 : vector<8x32xf32> to vector<8x32xbf16>
    %c0_27 = arith.constant 0 : index
    %c0_28 = arith.constant 0 : index
    %43 = vector.load %arg8[%c0_27, %c0_28] : memref<32x256xbf16, #tpu.memory_space<vmem>>, vector<32x256xbf16>
    %cst_29 = arith.constant dense<0.000000e+00> : vector<8x256xf32>
    %44 = tpu.matmul %42, %43, %cst_29 {dimension_numbers = #tpu.dot_dimension_numbers<[1], [0], [0], [1], [0, 0, 1, 1], [], []>} : vector<8x32xbf16>, vector<32x256xbf16>, vector<8x256xf32> -> vector<8x256xf32>
    %45 = vector.broadcast %41 : vector<1x256xf32> to vector<8x256xf32>
    %46 = arith.addf %44, %45 : vector<8x256xf32>
    %c0_30 = arith.constant 0 : index
    %c0_31 = arith.constant 0 : index
    %47 = vector.load %arg17[%c0_30, %c0_31] : memref<8x256xf32, #tpu.memory_space<vmem>>, vector<8x256xf32>
    tpu.vector_store %arg17[%c0_30, %c0_31], %46 {strides = array<i32>} : memref<8x256xf32, #tpu.memory_space<vmem>>, vector<8x256xf32>,
    %48 = vector.extract_strided_slice %46 {offsets = [0, 0], sizes = [8, 128], strides = [1, 1]} : vector<8x256xf32> to vector<8x128xf32>
    %49 = vector.extract_strided_slice %46 {offsets = [0, 128], sizes = [8, 128], strides = [1, 1]} : vector<8x256xf32> to vector<8x128xf32>
    %c0_32 = arith.constant 0 : index
    %c0_33 = arith.constant 0 : index
    %50 = vector.load %arg2[%c0_32, %c0_33] : memref<8x128xf32, #tpu.memory_space<vmem>>, vector<8x128xf32>
    %cst_34 = arith.constant 5.000000e-01 : f32
    %51 = vector.broadcast %cst_34 : f32 to vector<8x128xf32>
    %52 = arith.mulf %51, %49 : vector<8x128xf32>
    %53 = math.exp %52 : vector<8x128xf32>
    %54 = arith.mulf %50, %53 : vector<8x128xf32>
    %55 = arith.addf %48, %54 : vector<8x128xf32>
    %c6 = arith.constant 6 : index
    %c0_35 = arith.constant 0 : index
    %56 = vector.load %arg15[%c6, %c0_35] : memref<12x1024xf32, #tpu.memory_space<vmem>>, vector<1x32xf32>
    %57 = arith.truncf %55 : vector<8x128xf32> to vector<8x128xbf16>
    %c0_36 = arith.constant 0 : index
    %c0_37 = arith.constant 0 : index
    %58 = vector.load %arg9[%c0_36, %c0_37] : memref<128x32xbf16, #tpu.memory_space<vmem>>, vector<128x32xbf16>
    %cst_38 = arith.constant dense<0.000000e+00> : vector<8x32xf32>
    %59 = tpu.matmul %57, %58, %cst_38 {dimension_numbers = #tpu.dot_dimension_numbers<[1], [0], [0], [1], [0, 0, 1, 1], [], []>} : vector<8x128xbf16>, vector<128x32xbf16>, vector<8x32xf32> -> vector<8x32xf32>
    %60 = vector.broadcast %56 : vector<1x32xf32> to vector<8x32xf32>
    %61 = arith.addf %59, %60 : vector<8x32xf32>
    %cst_39 = arith.constant 0.000000e+00 : f32
    %62 = vector.broadcast %cst_39 : f32 to vector<8x32xf32>
    %63 = arith.maximumf %61, %62 : vector<8x32xf32>
    %c7 = arith.constant 7 : index
    %c0_40 = arith.constant 0 : index
    %64 = vector.load %arg15[%c7, %c0_40] : memref<12x1024xf32, #tpu.memory_space<vmem>>, vector<1x64xf32>
    %65 = arith.truncf %63 : vector<8x32xf32> to vector<8x32xbf16>
    %c0_41 = arith.constant 0 : index
    %c0_42 = arith.constant 0 : index
    %66 = vector.load %arg10[%c0_41, %c0_42] : memref<32x64xbf16, #tpu.memory_space<vmem>>, vector<32x64xbf16>
    %cst_43 = arith.constant dense<0.000000e+00> : vector<8x64xf32>
    %67 = tpu.matmul %65, %66, %cst_43 {dimension_numbers = #tpu.dot_dimension_numbers<[1], [0], [0], [1], [0, 0, 1, 1], [], []>} : vector<8x32xbf16>, vector<32x64xbf16>, vector<8x64xf32> -> vector<8x64xf32>
    %68 = vector.broadcast %64 : vector<1x64xf32> to vector<8x64xf32>
    %69 = arith.addf %67, %68 : vector<8x64xf32>
    %cst_44 = arith.constant 0.000000e+00 : f32
    %70 = vector.broadcast %cst_44 : f32 to vector<8x64xf32>
    %71 = arith.maximumf %69, %70 : vector<8x64xf32>
    %c8 = arith.constant 8 : index
    %c0_45 = arith.constant 0 : index
    %72 = vector.load %arg15[%c8, %c0_45] : memref<12x1024xf32, #tpu.memory_space<vmem>>, vector<1x128xf32>
    %73 = arith.truncf %71 : vector<8x64xf32> to vector<8x64xbf16>
    %c0_46 = arith.constant 0 : index
    %c0_47 = arith.constant 0 : index
    %74 = vector.load %arg11[%c0_46, %c0_47] : memref<64x128xbf16, #tpu.memory_space<vmem>>, vector<64x128xbf16>
    %cst_48 = arith.constant dense<0.000000e+00> : vector<8x128xf32>
    %75 = tpu.matmul %73, %74, %cst_48 {dimension_numbers = #tpu.dot_dimension_numbers<[1], [0], [0], [1], [0, 0, 1, 1], [], []>} : vector<8x64xbf16>, vector<64x128xbf16>, vector<8x128xf32> -> vector<8x128xf32>
    %76 = vector.broadcast %72 : vector<1x128xf32> to vector<8x128xf32>
    %77 = arith.addf %75, %76 : vector<8x128xf32>
    %cst_49 = arith.constant 0.000000e+00 : f32
    %78 = vector.broadcast %cst_49 : f32 to vector<8x128xf32>
    %79 = arith.maximumf %77, %78 : vector<8x128xf32>
    %c9 = arith.constant 9 : index
    %c0_50 = arith.constant 0 : index
    %80 = vector.load %arg15[%c9, %c0_50] : memref<12x1024xf32, #tpu.memory_space<vmem>>, vector<1x256xf32>
    %81 = arith.truncf %79 : vector<8x128xf32> to vector<8x128xbf16>
    %c0_51 = arith.constant 0 : index
    %c0_52 = arith.constant 0 : index
    %82 = vector.load %arg12[%c0_51, %c0_52] : memref<128x256xbf16, #tpu.memory_space<vmem>>, vector<128x256xbf16>
    %cst_53 = arith.constant dense<0.000000e+00> : vector<8x256xf32>
    %83 = tpu.matmul %81, %82, %cst_53 {dimension_numbers = #tpu.dot_dimension_numbers<[1], [0], [0], [1], [0, 0, 1, 1], [], []>} : vector<8x128xbf16>, vector<128x256xbf16>, vector<8x256xf32> -> vector<8x256xf32>
    %84 = vector.broadcast %80 : vector<1x256xf32> to vector<8x256xf32>
    %85 = arith.addf %83, %84 : vector<8x256xf32>
    %cst_54 = arith.constant 0.000000e+00 : f32
    %86 = vector.broadcast %cst_54 : f32 to vector<8x256xf32>
    %87 = arith.maximumf %85, %86 : vector<8x256xf32>
    %c10 = arith.constant 10 : index
    %c0_55 = arith.constant 0 : index
    %88 = vector.load %arg15[%c10, %c0_55] : memref<12x1024xf32, #tpu.memory_space<vmem>>, vector<1x512xf32>
    %89 = arith.truncf %87 : vector<8x256xf32> to vector<8x256xbf16>
    %c0_56 = arith.constant 0 : index
    %c0_57 = arith.constant 0 : index
    %90 = vector.load %arg13[%c0_56, %c0_57] : memref<256x512xbf16, #tpu.memory_space<vmem>>, vector<256x512xbf16>
    %cst_58 = arith.constant dense<0.000000e+00> : vector<8x512xf32>
    %91 = tpu.matmul %89, %90, %cst_58 {dimension_numbers = #tpu.dot_dimension_numbers<[1], [0], [0], [1], [0, 0, 1, 1], [], []>} : vector<8x256xbf16>, vector<256x512xbf16>, vector<8x512xf32> -> vector<8x512xf32>
    %92 = vector.broadcast %88 : vector<1x512xf32> to vector<8x512xf32>
    %93 = arith.addf %91, %92 : vector<8x512xf32>
    %cst_59 = arith.constant 0.000000e+00 : f32
    %94 = vector.broadcast %cst_59 : f32 to vector<8x512xf32>
    %95 = arith.maximumf %93, %94 : vector<8x512xf32>
    %c11 = arith.constant 11 : index
    %c0_60 = arith.constant 0 : index
    %96 = vector.load %arg15[%c11, %c0_60] : memref<12x1024xf32, #tpu.memory_space<vmem>>, vector<1x1024xf32>
    %97 = arith.truncf %95 : vector<8x512xf32> to vector<8x512xbf16>
    %c0_61 = arith.constant 0 : index
    %c0_62 = arith.constant 0 : index
    %98 = vector.load %arg14[%c0_61, %c0_62] : memref<512x1024xbf16, #tpu.memory_space<vmem>>, vector<512x1024xbf16>
    %cst_63 = arith.constant dense<0.000000e+00> : vector<8x1024xf32>
    %99 = tpu.matmul %97, %98, %cst_63 {dimension_numbers = #tpu.dot_dimension_numbers<[1], [0], [0], [1], [0, 0, 1, 1], [], []>} : vector<8x512xbf16>, vector<512x1024xbf16>, vector<8x1024xf32> -> vector<8x1024xf32>
    %100 = vector.broadcast %96 : vector<1x1024xf32> to vector<8x1024xf32>
    %101 = arith.addf %99, %100 : vector<8x1024xf32>
    %cst_64 = arith.constant 0.000000e+00 : f32
    %102 = vector.broadcast %cst_64 : f32 to vector<8x1024xf32>
    %103 = arith.subf %102, %101 : vector<8x1024xf32>
    %104 = math.exp %103 : vector<8x1024xf32>
    %cst_65 = arith.constant 1.000000e+00 : f32
    %105 = vector.broadcast %cst_65 : f32 to vector<8x1024xf32>
    %106 = arith.addf %105, %104 : vector<8x1024xf32>
    %107 = tpu.reciprocal %106 {approx = true} : vector<8x1024xf32> -> vector<8x1024xf32>
    %c0_66 = arith.constant 0 : index
    %c0_67 = arith.constant 0 : index
    %108 = vector.load %arg16[%c0_66, %c0_67] : memref<8x1024xf32, #tpu.memory_space<vmem>>, vector<8x1024xf32>
    tpu.vector_store %arg16[%c0_66, %c0_67], %107 {strides = array<i32>} : memref<8x1024xf32, #tpu.memory_space<vmem>>, vector<8x1024xf32>,
    return
  }
  func.func @transform_0(%arg0: i32) -> (i32, i32) {
    %c0_i32 = arith.constant 0 : i32
    %c0_i32_0 = arith.constant 0 : i32
    return %arg0, %c0_i32 : i32, i32
  }
  func.func @transform_1(%arg0: i32) -> (i32, i32) {
    %c0_i32 = arith.constant 0 : i32
    %c0_i32_0 = arith.constant 0 : i32
    return %arg0, %c0_i32 : i32, i32
  }
  func.func @transform_2(%arg0: i32) -> (i32, i32) {
    %c0_i32 = arith.constant 0 : i32
    %c0_i32_0 = arith.constant 0 : i32
    %c0_i32_1 = arith.constant 0 : i32
    return %c0_i32, %c0_i32_0 : i32, i32
  }
  func.func @transform_3(%arg0: i32) -> (i32, i32) {
    %c0_i32 = arith.constant 0 : i32
    %c0_i32_0 = arith.constant 0 : i32
    %c0_i32_1 = arith.constant 0 : i32
    return %c0_i32, %c0_i32_0 : i32, i32
  }
  func.func @transform_4(%arg0: i32) -> (i32, i32) {
    %c0_i32 = arith.constant 0 : i32
    %c0_i32_0 = arith.constant 0 : i32
    %c0_i32_1 = arith.constant 0 : i32
    return %c0_i32, %c0_i32_0 : i32, i32
  }
  func.func @transform_5(%arg0: i32) -> (i32, i32) {
    %c0_i32 = arith.constant 0 : i32
    %c0_i32_0 = arith.constant 0 : i32
    %c0_i32_1 = arith.constant 0 : i32
    return %c0_i32, %c0_i32_0 : i32, i32
  }
  func.func @transform_6(%arg0: i32) -> (i32, i32) {
    %c0_i32 = arith.constant 0 : i32
    %c0_i32_0 = arith.constant 0 : i32
    %c0_i32_1 = arith.constant 0 : i32
    return %c0_i32, %c0_i32_0 : i32, i32
  }
  func.func @transform_7(%arg0: i32) -> (i32, i32) {
    %c0_i32 = arith.constant 0 : i32
    %c0_i32_0 = arith.constant 0 : i32
    %c0_i32_1 = arith.constant 0 : i32
    return %c0_i32, %c0_i32_0 : i32, i32
  }
  func.func @transform_8(%arg0: i32) -> (i32, i32) {
    %c0_i32 = arith.constant 0 : i32
    %c0_i32_0 = arith.constant 0 : i32
    %c0_i32_1 = arith.constant 0 : i32
    return %c0_i32, %c0_i32_0 : i32, i32
  }
  func.func @transform_9(%arg0: i32) -> (i32, i32) {
    %c0_i32 = arith.constant 0 : i32
    %c0_i32_0 = arith.constant 0 : i32
    %c0_i32_1 = arith.constant 0 : i32
    return %c0_i32, %c0_i32_0 : i32, i32
  }
  func.func @transform_10(%arg0: i32) -> (i32, i32) {
    %c0_i32 = arith.constant 0 : i32
    %c0_i32_0 = arith.constant 0 : i32
    %c0_i32_1 = arith.constant 0 : i32
    return %c0_i32, %c0_i32_0 : i32, i32
  }
  func.func @transform_11(%arg0: i32) -> (i32, i32) {
    %c0_i32 = arith.constant 0 : i32
    %c0_i32_0 = arith.constant 0 : i32
    %c0_i32_1 = arith.constant 0 : i32
    return %c0_i32, %c0_i32_0 : i32, i32
  }
  func.func @transform_12(%arg0: i32) -> (i32, i32) {
    %c0_i32 = arith.constant 0 : i32
    %c0_i32_0 = arith.constant 0 : i32
    %c0_i32_1 = arith.constant 0 : i32
    return %c0_i32, %c0_i32_0 : i32, i32
  }
  func.func @transform_13(%arg0: i32) -> (i32, i32) {
    %c0_i32 = arith.constant 0 : i32
    %c0_i32_0 = arith.constant 0 : i32
    %c0_i32_1 = arith.constant 0 : i32
    return %c0_i32, %c0_i32_0 : i32, i32
  }
  func.func @transform_14(%arg0: i32) -> (i32, i32) {
    %c0_i32 = arith.constant 0 : i32
    %c0_i32_0 = arith.constant 0 : i32
    %c0_i32_1 = arith.constant 0 : i32
    return %c0_i32, %c0_i32_0 : i32, i32
  }
  func.func @transform_15(%arg0: i32) -> (i32, i32) {
    %c0_i32 = arith.constant 0 : i32
    %c0_i32_0 = arith.constant 0 : i32
    return %arg0, %c0_i32 : i32, i32
  }
  func.func @transform_16(%arg0: i32) -> (i32, i32) {
    %c0_i32 = arith.constant 0 : i32
    %c0_i32_0 = arith.constant 0 : i32
    return %arg0, %c0_i32 : i32, i32
  }
}

</mosaic_0001>

<llo_original>
// kernel: vae_forward.1
$region0: #{vae_forward.1}
  #allocation0 [shape = 'u32[]', space=smem, size = 0x4, offset = 0x4, fixed_abs, tag = 'smem constant byte address 0x4 - core index']
  #allocation1 [shape = 'u32[144,128]{1,0:T(1,128)}', space=vmem, size = 0x12000, scoped, tag = 'internal scratch']
  %s0 = inlined_call_operand.vmem [shape: f32[8,1024], index: 0, kind: input, shape index: {}]
  %s1 = inlined_call_operand.vmem [shape: f32[8,128], index: 1, kind: input, shape index: {}]
  %s2 = inlined_call_operand.hbm [shape: bf16[1024,512], index: 2, kind: input, shape index: {}]
  %s3 = inlined_call_operand.hbm [shape: bf16[512,256], index: 3, kind: input, shape index: {}]
  %s4 = inlined_call_operand.vmem [shape: bf16[256,128], index: 4, kind: input, shape index: {}]
  %s5 = inlined_call_operand.vmem [shape: bf16[128,64], index: 5, kind: input, shape index: {}]
  %s6 = inlined_call_operand.vmem [shape: bf16[64,32], index: 6, kind: input, shape index: {}]
  %s7 = inlined_call_operand.vmem [shape: bf16[32,256], index: 7, kind: input, shape index: {}]
  %s8 = inlined_call_operand.vmem [shape: bf16[128,32], index: 8, kind: input, shape index: {}]
  %s9 = inlined_call_operand.vmem [shape: bf16[32,64], index: 9, kind: input, shape index: {}]
  %s10 = inlined_call_operand.vmem [shape: bf16[64,128], index: 10, kind: input, shape index: {}]
  %s11 = inlined_call_operand.vmem [shape: bf16[128,256], index: 11, kind: input, shape index: {}]
  %s12 = inlined_call_operand.hbm [shape: bf16[256,512], index: 12, kind: input, shape index: {}]
  %s13 = inlined_call_operand.hbm [shape: bf16[512,1024], index: 13, kind: input, shape index: {}]
  %s14 = inlined_call_operand.vmem [shape: f32[12,1024], index: 14, kind: input, shape index: {}]
  %s15 = inlined_call_operand.vmem [shape: f32[8,1024], index: 15, kind: output, shape index: {0}]
  %s16 = inlined_call_operand.vmem [shape: f32[8,256], index: 16, kind: output, shape index: {1}]
  %17 = xla_tuple %s15, %s16
  %s18 = sld [smem:[#allocation0]]
  $region94: #{vae_forward.1} parent=0
    _
  %s20 = ssub.s32 1, %s18
  %s21 = scalar_select 0, %s20, %s18
  $region1: #{vae_forward.1} parent=0
    #allocation2 [shape = 'u8[1048576]{0}', space=vmem, size = 0x100000, scoped, tag = 'input window, operand 2, single buffered']
    #allocation3 [shape = 's32[1]{0}', space=sflag, size = 0x4, scoped, tag = 'scoped memory for vae_forward.1']
    #allocation4 [shape = 'u8[262144]{0}', space=vmem, size = 0x40000, scoped, tag = 'input window, operand 3, single buffered']
    #allocation5 [shape = 's32[1]{0}', space=sflag, size = 0x4, scoped, tag = 'scoped memory for vae_forward.1']
    #allocation6 [shape = 'u8[262144]{0}', space=vmem, size = 0x40000, scoped, tag = 'input window, operand 12, single buffered']
    #allocation7 [shape = 'u8[1048576]{0}', space=vmem, size = 0x100000, scoped, tag = 'input window, operand 13, single buffered']
    #allocation8 [shape = 's32[1]{0}', space=sflag, size = 0x4, scoped, tag = 'scoped memory for vae_forward.1']
    %22 = vsyncpa [#allocation3], 0
    %23 = vsyncpa [#allocation5], 0
    %24 = vsyncpa [#allocation8], 0
    // Predicated region
    $region2: #{vae_forward.1} parent=1 // pred_check
      _
    $region3: #{vae_forward.1} parent=1 // pred_check_branch
      %26 = sbr.rel (0) target = $region5
    $region4: #{vae_forward.1} parent=1 // pred_region
      _
    $region5: #{vae_forward.1} parent=1 // pred_fallthru
      _
    // Predicated region
    $region6: #{vae_forward.1} parent=1 // pred_check
      _
    $region7: #{vae_forward.1} parent=1 // pred_check_branch
      %28 = sbr.rel (0) target = $region9
    $region8: #{vae_forward.1} parent=1 // pred_region
      _
    $region9: #{vae_forward.1} parent=1 // pred_fallthru
      _
    // Predicated region
    $region10: #{vae_forward.1} parent=1 // pred_check
      _
    $region11: #{vae_forward.1} parent=1 // pred_check_branch
      %30 = sbr.rel (0) target = $region13
    $region12: #{vae_forward.1} parent=1 // pred_region
      %s32 = ssub.s32 32768, 32768
      %33 = vsyncadd [#allocation3], %s32
      %s34 = sshll.u32 [#allocation2], 4
      %s35 = int_to_ptr.vmem [resolvable:$true] %s34
      %40 = dma.hbm_to_vmem [thread:$0]  %s2, 32768, %s35, [#allocation3], 256, 256, 16
    $region13: #{vae_forward.1} parent=1 // pred_fallthru
      _
    // Predicated region
    $region14: #{vae_forward.1} parent=1 // pred_check
      _
    $region15: #{vae_forward.1} parent=1 // pred_check_branch
      %42 = sbr.rel (0) target = $region17
    $region16: #{vae_forward.1} parent=1 // pred_region
      %s44 = ssub.s32 8192, 8192
      %45 = vsyncadd [#allocation5], %s44
      %s46 = sshll.u32 [#allocation4], 4
      %s47 = int_to_ptr.vmem [resolvable:$true] %s46
      %52 = dma.hbm_to_vmem [thread:$0]  %s3, 8192, %s47, [#allocation5], 128, 128, 8
    $region17: #{vae_forward.1} parent=1 // pred_fallthru
      _
    // Predicated region
    $region18: #{vae_forward.1} parent=1 // pred_check
      _
    $region19: #{vae_forward.1} parent=1 // pred_check_branch
      %54 = sbr.rel (0) target = $region21
    $region20: #{vae_forward.1} parent=1 // pred_region
      _
    $region21: #{vae_forward.1} parent=1 // pred_fallthru
      _
    // Predicated region
    $region22: #{vae_forward.1} parent=1 // pred_check
      _
    $region23: #{vae_forward.1} parent=1 // pred_check_branch
      %56 = sbr.rel (0) target = $region25
    $region24: #{vae_forward.1} parent=1 // pred_region
      _
    $region25: #{vae_forward.1} parent=1 // pred_fallthru
      _
    // Predicated region
    $region26: #{vae_forward.1} parent=1 // pred_check
      _
    $region27: #{vae_forward.1} parent=1 // pred_check_branch
      %58 = sbr.rel (0) target = $region29
    $region28: #{vae_forward.1} parent=1 // pred_region
      _
    $region29: #{vae_forward.1} parent=1 // pred_fallthru
      _
    // Predicated region
    $region30: #{vae_forward.1} parent=1 // pred_check
      _
    $region31: #{vae_forward.1} parent=1 // pred_check_branch
      %60 = sbr.rel (0) target = $region33
    $region32: #{vae_forward.1} parent=1 // pred_region
      _
    $region33: #{vae_forward.1} parent=1 // pred_fallthru
      _
    // Predicated region
    $region34: #{vae_forward.1} parent=1 // pred_check
      _
    $region35: #{vae_forward.1} parent=1 // pred_check_branch
      %62 = sbr.rel (0) target = $region37
    $region36: #{vae_forward.1} parent=1 // pred_region
      _
    $region37: #{vae_forward.1} parent=1 // pred_fallthru
      _
    // Predicated region
    $region38: #{vae_forward.1} parent=1 // pred_check
      _
    $region39: #{vae_forward.1} parent=1 // pred_check_branch
      %64 = sbr.rel (0) target = $region41
    $region40: #{vae_forward.1} parent=1 // pred_region
      _
    $region41: #{vae_forward.1} parent=1 // pred_fallthru
      _
    // Predicated region
    $region42: #{vae_forward.1} parent=1 // pred_check
      _
    $region43: #{vae_forward.1} parent=1 // pred_check_branch
      %66 = sbr.rel (0) target = $region45
    $region44: #{vae_forward.1} parent=1 // pred_region
      _
    $region45: #{vae_forward.1} parent=1 // pred_fallthru
      _
    // Predicated region
    $region46: #{vae_forward.1} parent=1 // pred_check
      _
    $region47: #{vae_forward.1} parent=1 // pred_check_branch
      %68 = sbr.rel (0) target = $region49
    $region48: #{vae_forward.1} parent=1 // pred_region
      _
    $region49: #{vae_forward.1} parent=1 // pred_fallthru
      _
    // Predicated region
    $region50: #{vae_forward.1} parent=1 // pred_check
      _
    $region51: #{vae_forward.1} parent=1 // pred_check_branch
      %70 = sbr.rel (0) target = $region53
    $region52: #{vae_forward.1} parent=1 // pred_region
      %s72 = ssub.s32 8192, 8192
      %73 = vsyncadd [#allocation5], %s72
      %s74 = sshll.u32 [#allocation6], 4
      %s75 = int_to_ptr.vmem [resolvable:$true] %s74
      %80 = dma.hbm_to_vmem [thread:$0]  %s12, 8192, %s75, [#allocation5], 256, 256, 16
    $region53: #{vae_forward.1} parent=1 // pred_fallthru
      _
    // Predicated region
    $region54: #{vae_forward.1} parent=1 // pred_check
      _
    $region55: #{vae_forward.1} parent=1 // pred_check_branch
      %82 = sbr.rel (0) target = $region57
    $region56: #{vae_forward.1} parent=1 // pred_region
      %s84 = ssub.s32 32768, 32768
      %85 = vsyncadd [#allocation8], %s84
      %s86 = sshll.u32 [#allocation7], 4
      %s87 = int_to_ptr.vmem [resolvable:$true] %s86
      %92 = dma.hbm_to_vmem [thread:$0]  %s13, 32768, %s87, [#allocation8], 512, 512, 32
    $region57: #{vae_forward.1} parent=1 // pred_fallthru
      _
    // Predicated region
    $region58: #{vae_forward.1} parent=1 // pred_check
      _
    $region59: #{vae_forward.1} parent=1 // pred_check_branch
      %94 = sbr.rel (0) target = $region61
    $region60: #{vae_forward.1} parent=1 // pred_region
      _
    $region61: #{vae_forward.1} parent=1 // pred_fallthru
      _
    // Predicated region
    $region62: #{vae_forward.1} parent=1 // pred_check
      _
    $region63: #{vae_forward.1} parent=1 // pred_check_branch
      %96 = sbr.rel (0) target = $region65
    $region64: #{vae_forward.1} parent=1 // pred_region
      %97 = dma.done [#allocation3], 32768
    $region65: #{vae_forward.1} parent=1 // pred_fallthru
      _
    // Predicated region
    $region66: #{vae_forward.1} parent=1 // pred_check
      _
    $region67: #{vae_forward.1} parent=1 // pred_check_branch
      %99 = sbr.rel (0) target = $region69
    $region68: #{vae_forward.1} parent=1 // pred_region
      %100 = dma.done [#allocation5], 8192
    $region69: #{vae_forward.1} parent=1 // pred_fallthru
      _
    // Predicated region
    $region70: #{vae_forward.1} parent=1 // pred_check
      _
    $region71: #{vae_forward.1} parent=1 // pred_check_branch
      %102 = sbr.rel (0) target = $region73
    $region72: #{vae_forward.1} parent=1 // pred_region
      %103 = dma.done [#allocation5], 8192
    $region73: #{vae_forward.1} parent=1 // pred_fallthru
      _
    // Predicated region
    $region74: #{vae_forward.1} parent=1 // pred_check
      _
    $region75: #{vae_forward.1} parent=1 // pred_check_branch
      %105 = sbr.rel (0) target = $region77
    $region76: #{vae_forward.1} parent=1 // pred_region
      %106 = dma.done [#allocation8], 32768
    $region77: #{vae_forward.1} parent=1 // pred_fallthru
      _
    %v108 = vld [vmem:[%s0] sm:$0xff]
    %v109 = vld [vmem:[%s0 + $0x8] sm:$0xff]
    %v110 = vld [vmem:[%s0 + $0x10] sm:$0xff]
    %v111 = vld [vmem:[%s0 + $0x18] sm:$0xff]
    %v112 = vld [vmem:[%s0 + $0x20] sm:$0xff]
    %v113 = vld [vmem:[%s0 + $0x28] sm:$0xff]
    %v114 = vld [vmem:[%s0 + $0x30] sm:$0xff]
    %v115 = vld [vmem:[%s0 + $0x38] sm:$0xff]
    %v116 = vld [vmem:[%s14] ss:$8 sm:$0xf]
    %v117 = vpack.c.bf16 %v108, %v108
    %v118 = vpack.c.bf16 %v109, %v109
    %v119 = vpack.c.bf16 %v110, %v110
    %v120 = vpack.c.bf16 %v111, %v111
    %v121 = vpack.c.bf16 %v112, %v112
    %v122 = vpack.c.bf16 %v113, %v113
    %v123 = vpack.c.bf16 %v114, %v114
    %v124 = vpack.c.bf16 %v115, %v115
    %v125 = vld [vmem:[#allocation2] sm:$0xff]
    %v126 = vld [vmem:[#allocation2 + $0x8] sm:$0xff]
    %v127 = vld [vmem:[#allocation2 + $0x10] sm:$0xff]
    %v128 = vld [vmem:[#allocation2 + $0x18] sm:$0xff]
    %v129 = vld [vmem:[#allocation2 + $0x20] sm:$0xff]
    %v130 = vld [vmem:[#allocation2 + $0x28] sm:$0xff]
    %v131 = vld [vmem:[#allocation2 + $0x30] sm:$0xff]
    %v132 = vld [vmem:[#allocation2 + $0x38] sm:$0xff]
    %v133 = vld [vmem:[#allocation2 + $0x40] sm:$0xff]
    %v134 = vld [vmem:[#allocation2 + $0x48] sm:$0xff]
    %v135 = vld [vmem:[#allocation2 + $0x50] sm:$0xff]
    %v136 = vld [vmem:[#allocation2 + $0x58] sm:$0xff]
    %v137 = vld [vmem:[#allocation2 + $0x60] sm:$0xff]
    %v138 = vld [vmem:[#allocation2 + $0x68] sm:$0xff]
    %v139 = vld [vmem:[#allocation2 + $0x70] sm:$0xff]
    %v140 = vld [vmem:[#allocation2 + $0x78] sm:$0xff]
    %v141 = vld [vmem:[#allocation2 + $0x80] sm:$0xff]
    %v142 = vld [vmem:[#allocation2 + $0x88] sm:$0xff]
    %v143 = vld [vmem:[#allocation2 + $0x90] sm:$0xff]
    %v144 = vld [vmem:[#allocation2 + $0x98] sm:$0xff]
    %v145 = vld [vmem:[#allocation2 + $0xa0] sm:$0xff]
    %v146 = vld [vmem:[#allocation2 + $0xa8] sm:$0xff]
    %v147 = vld [vmem:[#allocation2 + $0xb0] sm:$0xff]
    %v148 = vld [vmem:[#allocation2 + $0xb8] sm:$0xff]
    %v149 = vld [vmem:[#allocation2 + $0xc0] sm:$0xff]
    %v150 = vld [vmem:[#allocation2 + $0xc8] sm:$0xff]
    %v151 = vld [vmem:[#allocation2 + $0xd0] sm:$0xff]
    %v152 = vld [vmem:[#allocation2 + $0xd8] sm:$0xff]
    %v153 = vld [vmem:[#allocation2 + $0xe0] sm:$0xff]
    %v154 = vld [vmem:[#allocation2 + $0xe8] sm:$0xff]
    %v155 = vld [vmem:[#allocation2 + $0xf0] sm:$0xff]
    %v156 = vld [vmem:[#allocation2 + $0xf8] sm:$0xff]
    %v157 = vld [vmem:[#allocation2 + $0x100] sm:$0xff]
    %v158 = vld [vmem:[#allocation2 + $0x108] sm:$0xff]
    %v159 = vld [vmem:[#allocation2 + $0x110] sm:$0xff]
    %v160 = vld [vmem:[#allocation2 + $0x118] sm:$0xff]
    %v161 = vld [vmem:[#allocation2 + $0x120] sm:$0xff]
    %v162 = vld [vmem:[#allocation2 + $0x128] sm:$0xff]
    %v163 = vld [vmem:[#allocation2 + $0x130] sm:$0xff]
    %v164 = vld [vmem:[#allocation2 + $0x138] sm:$0xff]
    %v165 = vld [vmem:[#allocation2 + $0x140] sm:$0xff]
    %v166 = vld [vmem:[#allocation2 + $0x148] sm:$0xff]
    %v167 = vld [vmem:[#allocation2 + $0x150] sm:$0xff]
    %v168 = vld [vmem:[#allocation2 + $0x158] sm:$0xff]
    %v169 = vld [vmem:[#allocation2 + $0x160] sm:$0xff]
    %v170 = vld [vmem:[#allocation2 + $0x168] sm:$0xff]
    %v171 = vld [vmem:[#allocation2 + $0x170] sm:$0xff]
    %v172 = vld [vmem:[#allocation2 + $0x178] sm:$0xff]
    %v173 = vld [vmem:[#allocation2 + $0x180] sm:$0xff]
    %v174 = vld [vmem:[#allocation2 + $0x188] sm:$0xff]
    %v175 = vld [vmem:[#allocation2 + $0x190] sm:$0xff]
    %v176 = vld [vmem:[#allocation2 + $0x198] sm:$0xff]
    %v177 = vld [vmem:[#allocation2 + $0x1a0] sm:$0xff]
    %v178 = vld [vmem:[#allocation2 + $0x1a8] sm:$0xff]
    %v179 = vld [vmem:[#allocation2 + $0x1b0] sm:$0xff]
    %v180 = vld [vmem:[#allocation2 + $0x1b8] sm:$0xff]
    %v181 = vld [vmem:[#allocation2 + $0x1c0] sm:$0xff]
    %v182 = vld [vmem:[#allocation2 + $0x1c8] sm:$0xff]
    %v183 = vld [vmem:[#allocation2 + $0x1d0] sm:$0xff]
    %v184 = vld [vmem:[#allocation2 + $0x1d8] sm:$0xff]
    %v185 = vld [vmem:[#allocation2 + $0x1e0] sm:$0xff]
    %v186 = vld [vmem:[#allocation2 + $0x1e8] sm:$0xff]
    %v187 = vld [vmem:[#allocation2 + $0x1f0] sm:$0xff]
    %v188 = vld [vmem:[#allocation2 + $0x1f8] sm:$0xff]
    %v189 = vld [vmem:[#allocation2 + $0x200] sm:$0xff]
    %v190 = vld [vmem:[#allocation2 + $0x208] sm:$0xff]
    %v191 = vld [vmem:[#allocation2 + $0x210] sm:$0xff]
    %v192 = vld [vmem:[#allocation2 + $0x218] sm:$0xff]
    %v193 = vld [vmem:[#allocation2 + $0x220] sm:$0xff]
    %v194 = vld [vmem:[#allocation2 + $0x228] sm:$0xff]
    %v195 = vld [vmem:[#allocation2 + $0x230] sm:$0xff]
    %v196 = vld [vmem:[#allocation2 + $0x238] sm:$0xff]
    %v197 = vld [vmem:[#allocation2 + $0x240] sm:$0xff]
    %v198 = vld [vmem:[#allocation2 + $0x248] sm:$0xff]
    %v199 = vld [vmem:[#allocation2 + $0x250] sm:$0xff]
    %v200 = vld [vmem:[#allocation2 + $0x258] sm:$0xff]
    %v201 = vld [vmem:[#allocation2 + $0x260] sm:$0xff]
    %v202 = vld [vmem:[#allocation2 + $0x268] sm:$0xff]
    %v203 = vld [vmem:[#allocation2 + $0x270] sm:$0xff]
    %v204 = vld [vmem:[#allocation2 + $0x278] sm:$0xff]
    %v205 = vld [vmem:[#allocation2 + $0x280] sm:$0xff]
    %v206 = vld [vmem:[#allocation2 + $0x288] sm:$0xff]
    %v207 = vld [vmem:[#allocation2 + $0x290] sm:$0xff]
    %v208 = vld [vmem:[#allocation2 + $0x298] sm:$0xff]
    %v209 = vld [vmem:[#allocation2 + $0x2a0] sm:$0xff]
    %v210 = vld [vmem:[#allocation2 + $0x2a8] sm:$0xff]
    %v211 = vld [vmem:[#allocation2 + $0x2b0] sm:$0xff]
    %v212 = vld [vmem:[#allocation2 + $0x2b8] sm:$0xff]
    %v213 = vld [vmem:[#allocation2 + $0x2c0] sm:$0xff]
    %v214 = vld [vmem:[#allocation2 + $0x2c8] sm:$0xff]
    %v215 = vld [vmem:[#allocation2 + $0x2d0] sm:$0xff]
    %v216 = vld [vmem:[#allocation2 + $0x2d8] sm:$0xff]
    %v217 = vld [vmem:[#allocation2 + $0x2e0] sm:$0xff]
    %v218 = vld [vmem:[#allocation2 + $0x2e8] sm:$0xff]
    %v219 = vld [vmem:[#allocation2 + $0x2f0] sm:$0xff]
    %v220 = vld [vmem:[#allocation2 + $0x2f8] sm:$0xff]
    %v221 = vld [vmem:[#allocation2 + $0x300] sm:$0xff]
    %v222 = vld [vmem:[#allocation2 + $0x308] sm:$0xff]
    %v223 = vld [vmem:[#allocation2 + $0x310] sm:$0xff]
    %v224 = vld [vmem:[#allocation2 + $0x318] sm:$0xff]
    %v225 = vld [vmem:[#allocation2 + $0x320] sm:$0xff]
    %v226 = vld [vmem:[#allocation2 + $0x328] sm:$0xff]
    %v227 = vld [vmem:[#allocation2 + $0x330] sm:$0xff]
    %v228 = vld [vmem:[#allocation2 + $0x338] sm:$0xff]
    %v229 = vld [vmem:[#allocation2 + $0x340] sm:$0xff]
    %v230 = vld [vmem:[#allocation2 + $0x348] sm:$0xff]
    %v231 = vld [vmem:[#allocation2 + $0x350] sm:$0xff]
    %v232 = vld [vmem:[#allocation2 + $0x358] sm:$0xff]
    %v233 = vld [vmem:[#allocation2 + $0x360] sm:$0xff]
    %v234 = vld [vmem:[#allocation2 + $0x368] sm:$0xff]
    %v235 = vld [vmem:[#allocation2 + $0x370] sm:$0xff]
    %v236 = vld [vmem:[#allocation2 + $0x378] sm:$0xff]
    %v237 = vld [vmem:[#allocation2 + $0x380] sm:$0xff]
    %v238 = vld [vmem:[#allocation2 + $0x388] sm:$0xff]
    %v239 = vld [vmem:[#allocation2 + $0x390] sm:$0xff]
    %v240 = vld [vmem:[#allocation2 + $0x398] sm:$0xff]
    %v241 = vld [vmem:[#allocation2 + $0x3a0] sm:$0xff]
    %v242 = vld [vmem:[#allocation2 + $0x3a8] sm:$0xff]
    %v243 = vld [vmem:[#allocation2 + $0x3b0] sm:$0xff]
    %v244 = vld [vmem:[#allocation2 + $0x3b8] sm:$0xff]
    %v245 = vld [vmem:[#allocation2 + $0x3c0] sm:$0xff]
    %v246 = vld [vmem:[#allocation2 + $0x3c8] sm:$0xff]
    %v247 = vld [vmem:[#allocation2 + $0x3d0] sm:$0xff]
    %v248 = vld [vmem:[#allocation2 + $0x3d8] sm:$0xff]
    %v249 = vld [vmem:[#allocation2 + $0x3e0] sm:$0xff]
    %v250 = vld [vmem:[#allocation2 + $0x3e8] sm:$0xff]
    %v251 = vld [vmem:[#allocation2 + $0x3f0] sm:$0xff]
    %v252 = vld [vmem:[#allocation2 + $0x3f8] sm:$0xff]
    %v253 = vld [vmem:[#allocation2 + $0x400] sm:$0xff]
    %v254 = vld [vmem:[#allocation2 + $0x408] sm:$0xff]
    %v255 = vld [vmem:[#allocation2 + $0x410] sm:$0xff]
    %v256 = vld [vmem:[#allocation2 + $0x418] sm:$0xff]
    %v257 = vld [vmem:[#allocation2 + $0x420] sm:$0xff]
    %v258 = vld [vmem:[#allocation2 + $0x428] sm:$0xff]
    %v259 = vld [vmem:[#allocation2 + $0x430] sm:$0xff]
    %v260 = vld [vmem:[#allocation2 + $0x438] sm:$0xff]
    %v261 = vld [vmem:[#allocation2 + $0x440] sm:$0xff]
    %v262 = vld [vmem:[#allocation2 + $0x448] sm:$0xff]
    %v263 = vld [vmem:[#allocation2 + $0x450] sm:$0xff]
    %v264 = vld [vmem:[#allocation2 + $0x458] sm:$0xff]
    %v265 = vld [vmem:[#allocation2 + $0x460] sm:$0xff]
    %v266 = vld [vmem:[#allocation2 + $0x468] sm:$0xff]
    %v267 = vld [vmem:[#allocation2 + $0x470] sm:$0xff]
    %v268 = vld [vmem:[#allocation2 + $0x478] sm:$0xff]
    %v269 = vld [vmem:[#allocation2 + $0x480] sm:$0xff]
    %v270 = vld [vmem:[#allocation2 + $0x488] sm:$0xff]
    %v271 = vld [vmem:[#allocation2 + $0x490] sm:$0xff]
    %v272 = vld [vmem:[#allocation2 + $0x498] sm:$0xff]
    %v273 = vld [vmem:[#allocation2 + $0x4a0] sm:$0xff]
    %v274 = vld [vmem:[#allocation2 + $0x4a8] sm:$0xff]
    %v275 = vld [vmem:[#allocation2 + $0x4b0] sm:$0xff]
    %v276 = vld [vmem:[#allocation2 + $0x4b8] sm:$0xff]
    %v277 = vld [vmem:[#allocation2 + $0x4c0] sm:$0xff]
    %v278 = vld [vmem:[#allocation2 + $0x4c8] sm:$0xff]
    %v279 = vld [vmem:[#allocation2 + $0x4d0] sm:$0xff]
    %v280 = vld [vmem:[#allocation2 + $0x4d8] sm:$0xff]
    %v281 = vld [vmem:[#allocation2 + $0x4e0] sm:$0xff]
    %v282 = vld [vmem:[#allocation2 + $0x4e8] sm:$0xff]
    %v283 = vld [vmem:[#allocation2 + $0x4f0] sm:$0xff]
    %v284 = vld [vmem:[#allocation2 + $0x4f8] sm:$0xff]
    %v285 = vld [vmem:[#allocation2 + $0x500] sm:$0xff]
    %v286 = vld [vmem:[#allocation2 + $0x508] sm:$0xff]
    %v287 = vld [vmem:[#allocation2 + $0x510] sm:$0xff]
    %v288 = vld [vmem:[#allocation2 + $0x518] sm:$0xff]
    %v289 = vld [vmem:[#allocation2 + $0x520] sm:$0xff]
    %v290 = vld [vmem:[#allocation2 + $0x528] sm:$0xff]
    %v291 = vld [vmem:[#allocation2 + $0x530] sm:$0xff]
    %v292 = vld [vmem:[#allocation2 + $0x538] sm:$0xff]
    %v293 = vld [vmem:[#allocation2 + $0x540] sm:$0xff]
    %v294 = vld [vmem:[#allocation2 + $0x548] sm:$0xff]
    %v295 = vld [vmem:[#allocation2 + $0x550] sm:$0xff]
    %v296 = vld [vmem:[#allocation2 + $0x558] sm:$0xff]
    %v297 = vld [vmem:[#allocation2 + $0x560] sm:$0xff]
    %v298 = vld [vmem:[#allocation2 + $0x568] sm:$0xff]
    %v299 = vld [vmem:[#allocation2 + $0x570] sm:$0xff]
    %v300 = vld [vmem:[#allocation2 + $0x578] sm:$0xff]
    %v301 = vld [vmem:[#allocation2 + $0x580] sm:$0xff]
    %v302 = vld [vmem:[#allocation2 + $0x588] sm:$0xff]
    %v303 = vld [vmem:[#allocation2 + $0x590] sm:$0xff]
    %v304 = vld [vmem:[#allocation2 + $0x598] sm:$0xff]
    %v305 = vld [vmem:[#allocation2 + $0x5a0] sm:$0xff]
    %v306 = vld [vmem:[#allocation2 + $0x5a8] sm:$0xff]
    %v307 = vld [vmem:[#allocation2 + $0x5b0] sm:$0xff]
    %v308 = vld [vmem:[#allocation2 + $0x5b8] sm:$0xff]
    %v309 = vld [vmem:[#allocation2 + $0x5c0] sm:$0xff]
    %v310 = vld [vmem:[#allocation2 + $0x5c8] sm:$0xff]
    %v311 = vld [vmem:[#allocation2 + $0x5d0] sm:$0xff]
    %v312 = vld [vmem:[#allocation2 + $0x5d8] sm:$0xff]
    %v313 = vld [vmem:[#allocation2 + $0x5e0] sm:$0xff]
    %v314 = vld [vmem:[#allocation2 + $0x5e8] sm:$0xff]
    %v315 = vld [vmem:[#allocation2 + $0x5f0] sm:$0xff]
    %v316 = vld [vmem:[#allocation2 + $0x5f8] sm:$0xff]
    %v317 = vld [vmem:[#allocation2 + $0x600] sm:$0xff]
    %v318 = vld [vmem:[#allocation2 + $0x608] sm:$0xff]
    %v319 = vld [vmem:[#allocation2 + $0x610] sm:$0xff]
    %v320 = vld [vmem:[#allocation2 + $0x618] sm:$0xff]
    %v321 = vld [vmem:[#allocation2 + $0x620] sm:$0xff]
    %v322 = vld [vmem:[#allocation2 + $0x628] sm:$0xff]
    %v323 = vld [vmem:[#allocation2 + $0x630] sm:$0xff]
    %v324 = vld [vmem:[#allocation2 + $0x638] sm:$0xff]
    %v325 = vld [vmem:[#allocation2 + $0x640] sm:$0xff]
    %v326 = vld [vmem:[#allocation2 + $0x648] sm:$0xff]
    %v327 = vld [vmem:[#allocation2 + $0x650] sm:$0xff]
    %v328 = vld [vmem:[#allocation2 + $0x658] sm:$0xff]
    %v329 = vld [vmem:[#allocation2 + $0x660] sm:$0xff]
    %v330 = vld [vmem:[#allocation2 + $0x668] sm:$0xff]
    %v331 = vld [vmem:[#allocation2 + $0x670] sm:$0xff]
    %v332 = vld [vmem:[#allocation2 + $0x678] sm:$0xff]
    %v333 = vld [vmem:[#allocation2 + $0x680] sm:$0xff]
    %v334 = vld [vmem:[#allocation2 + $0x688] sm:$0xff]
    %v335 = vld [vmem:[#allocation2 + $0x690] sm:$0xff]
    %v336 = vld [vmem:[#allocation2 + $0x698] sm:$0xff]
    %v337 = vld [vmem:[#allocation2 + $0x6a0] sm:$0xff]
    %v338 = vld [vmem:[#allocation2 + $0x6a8] sm:$0xff]
    %v339 = vld [vmem:[#allocation2 + $0x6b0] sm:$0xff]
    %v340 = vld [vmem:[#allocation2 + $0x6b8] sm:$0xff]
    %v341 = vld [vmem:[#allocation2 + $0x6c0] sm:$0xff]
    %v342 = vld [vmem:[#allocation2 + $0x6c8] sm:$0xff]
    %v343 = vld [vmem:[#allocation2 + $0x6d0] sm:$0xff]
    %v344 = vld [vmem:[#allocation2 + $0x6d8] sm:$0xff]
    %v345 = vld [vmem:[#allocation2 + $0x6e0] sm:$0xff]
    %v346 = vld [vmem:[#allocation2 + $0x6e8] sm:$0xff]
    %v347 = vld [vmem:[#allocation2 + $0x6f0] sm:$0xff]
    %v348 = vld [vmem:[#allocation2 + $0x6f8] sm:$0xff]
    %v349 = vld [vmem:[#allocation2 + $0x700] sm:$0xff]
    %v350 = vld [vmem:[#allocation2 + $0x708] sm:$0xff]
    %v351 = vld [vmem:[#allocation2 + $0x710] sm:$0xff]
    %v352 = vld [vmem:[#allocation2 + $0x718] sm:$0xff]
    %v353 = vld [vmem:[#allocation2 + $0x720] sm:$0xff]
    %v354 = vld [vmem:[#allocation2 + $0x728] sm:$0xff]
    %v355 = vld [vmem:[#allocation2 + $0x730] sm:$0xff]
    %v356 = vld [vmem:[#allocation2 + $0x738] sm:$0xff]
    %v357 = vld [vmem:[#allocation2 + $0x740] sm:$0xff]
    %v358 = vld [vmem:[#allocation2 + $0x748] sm:$0xff]
    %v359 = vld [vmem:[#allocation2 + $0x750] sm:$0xff]
    %v360 = vld [vmem:[#allocation2 + $0x758] sm:$0xff]
    %v361 = vld [vmem:[#allocation2 + $0x760] sm:$0xff]
    %v362 = vld [vmem:[#allocation2 + $0x768] sm:$0xff]
    %v363 = vld [vmem:[#allocation2 + $0x770] sm:$0xff]
    %v364 = vld [vmem:[#allocation2 + $0x778] sm:$0xff]
    %v365 = vld [vmem:[#allocation2 + $0x780] sm:$0xff]
    %v366 = vld [vmem:[#allocation2 + $0x788] sm:$0xff]
    %v367 = vld [vmem:[#allocation2 + $0x790] sm:$0xff]
    %v368 = vld [vmem:[#allocation2 + $0x798] sm:$0xff]
    %v369 = vld [vmem:[#allocation2 + $0x7a0] sm:$0xff]
    %v370 = vld [vmem:[#allocation2 + $0x7a8] sm:$0xff]
    %v371 = vld [vmem:[#allocation2 + $0x7b0] sm:$0xff]
    %v372 = vld [vmem:[#allocation2 + $0x7b8] sm:$0xff]
    %v373 = vld [vmem:[#allocation2 + $0x7c0] sm:$0xff]
    %v374 = vld [vmem:[#allocation2 + $0x7c8] sm:$0xff]
    %v375 = vld [vmem:[#allocation2 + $0x7d0] sm:$0xff]
    %v376 = vld [vmem:[#allocation2 + $0x7d8] sm:$0xff]
    %v377 = vld [vmem:[#allocation2 + $0x7e0] sm:$0xff]
    %v378 = vld [vmem:[#allocation2 + $0x7e8] sm:$0xff]
    %v379 = vld [vmem:[#allocation2 + $0x7f0] sm:$0xff]
    %v380 = vld [vmem:[#allocation2 + $0x7f8] sm:$0xff]
    %v382 = vlaneseq
    %v383 = vshrl.u32 %v382, 7
    %v384 = vsub.s32 0, %v383
    %v385 = vrot.slane %v116, %v384
    %v386 = vlaneseq
    %v387 = vshrl.u32 %v386, 7
    %v388 = vsub.s32 1, %v387
    %v389 = vrot.slane %v116, %v388
    %v390 = vlaneseq
    %v391 = vshrl.u32 %v390, 7
    %v392 = vsub.s32 2, %v391
    %v393 = vrot.slane %v116, %v392
    %v394 = vlaneseq
    %v395 = vshrl.u32 %v394, 7
    %v396 = vsub.s32 3, %v395
    %v397 = vrot.slane %v116, %v396
    %v658 = vunpack.c.l.b16 %v125
    %v659 = vunpack.c.h.b16 %v125
    %v660 = vunpack.c.l.b16 %v126
    %v661 = vunpack.c.h.b16 %v126
    %v662 = vunpack.c.l.b16 %v127
    %v663 = vunpack.c.h.b16 %v127
    %v664 = vunpack.c.l.b16 %v128
    %v665 = vunpack.c.h.b16 %v128
    %v666 = vunpack.c.l.b16 %v129
    %v667 = vunpack.c.h.b16 %v129
    %v668 = vunpack.c.l.b16 %v130
    %v669 = vunpack.c.h.b16 %v130
    %v670 = vunpack.c.l.b16 %v131
    %v671 = vunpack.c.h.b16 %v131
    %v672 = vunpack.c.l.b16 %v132
    %v673 = vunpack.c.h.b16 %v132
    %v674 = vunpack.c.l.b16 %v133
    %v675 = vunpack.c.h.b16 %v133
    %v676 = vunpack.c.l.b16 %v134
    %v677 = vunpack.c.h.b16 %v134
    %v678 = vunpack.c.l.b16 %v135
    %v679 = vunpack.c.h.b16 %v135
    %v680 = vunpack.c.l.b16 %v136
    %v681 = vunpack.c.h.b16 %v136
    %v682 = vunpack.c.l.b16 %v137
    %v683 = vunpack.c.h.b16 %v137
    %v684 = vunpack.c.l.b16 %v138
    %v685 = vunpack.c.h.b16 %v138
    %v686 = vunpack.c.l.b16 %v139
    %v687 = vunpack.c.h.b16 %v139
    %v688 = vunpack.c.l.b16 %v140
    %v689 = vunpack.c.h.b16 %v140
    %v690 = vunpack.c.l.b16 %v141
    %v691 = vunpack.c.h.b16 %v141
    %v692 = vunpack.c.l.b16 %v142
    %v693 = vunpack.c.h.b16 %v142
    %v694 = vunpack.c.l.b16 %v143
    %v695 = vunpack.c.h.b16 %v143
    %v696 = vunpack.c.l.b16 %v144
    %v697 = vunpack.c.h.b16 %v144
    %v698 = vunpack.c.l.b16 %v145
    %v699 = vunpack.c.h.b16 %v145
    %v700 = vunpack.c.l.b16 %v146
    %v701 = vunpack.c.h.b16 %v146
    %v702 = vunpack.c.l.b16 %v147
    %v703 = vunpack.c.h.b16 %v147
    %v704 = vunpack.c.l.b16 %v148
    %v705 = vunpack.c.h.b16 %v148
    %v706 = vunpack.c.l.b16 %v149
    %v707 = vunpack.c.h.b16 %v149
    %v708 = vunpack.c.l.b16 %v150
    %v709 = vunpack.c.h.b16 %v150
    %v710 = vunpack.c.l.b16 %v151
    %v711 = vunpack.c.h.b16 %v151
    %v712 = vunpack.c.l.b16 %v152
    %v713 = vunpack.c.h.b16 %v152
    %v714 = vunpack.c.l.b16 %v153
    %v715 = vunpack.c.h.b16 %v153
    %v716 = vunpack.c.l.b16 %v154
    %v717 = vunpack.c.h.b16 %v154
    %v718 = vunpack.c.l.b16 %v155
    %v719 = vunpack.c.h.b16 %v155
    %v720 = vunpack.c.l.b16 %v156
    %v721 = vunpack.c.h.b16 %v156
    %v722 = vunpack.c.l.b16 %v157
    %v723 = vunpack.c.h.b16 %v157
    %v724 = vunpack.c.l.b16 %v158
    %v725 = vunpack.c.h.b16 %v158
    %v726 = vunpack.c.l.b16 %v159
    %v727 = vunpack.c.h.b16 %v159
    %v728 = vunpack.c.l.b16 %v160
    %v729 = vunpack.c.h.b16 %v160
    %v730 = vunpack.c.l.b16 %v161
    %v731 = vunpack.c.h.b16 %v161
    %v732 = vunpack.c.l.b16 %v162
    %v733 = vunpack.c.h.b16 %v162
    %v734 = vunpack.c.l.b16 %v163
    %v735 = vunpack.c.h.b16 %v163
    %v736 = vunpack.c.l.b16 %v164
    %v737 = vunpack.c.h.b16 %v164
    %v738 = vunpack.c.l.b16 %v165
    %v739 = vunpack.c.h.b16 %v165
    %v740 = vunpack.c.l.b16 %v166
    %v741 = vunpack.c.h.b16 %v166
    %v742 = vunpack.c.l.b16 %v167
    %v743 = vunpack.c.h.b16 %v167
    %v744 = vunpack.c.l.b16 %v168
    %v745 = vunpack.c.h.b16 %v168
    %v746 = vunpack.c.l.b16 %v169
    %v747 = vunpack.c.h.b16 %v169
    %v748 = vunpack.c.l.b16 %v170
    %v749 = vunpack.c.h.b16 %v170
    %v750 = vunpack.c.l.b16 %v171
    %v751 = vunpack.c.h.b16 %v171
    %v752 = vunpack.c.l.b16 %v172
    %v753 = vunpack.c.h.b16 %v172
    %v754 = vunpack.c.l.b16 %v173
    %v755 = vunpack.c.h.b16 %v173
    %v756 = vunpack.c.l.b16 %v174
    %v757 = vunpack.c.h.b16 %v174
    %v758 = vunpack.c.l.b16 %v175
    %v759 = vunpack.c.h.b16 %v175
    %v760 = vunpack.c.l.b16 %v176
    %v761 = vunpack.c.h.b16 %v176
    %v762 = vunpack.c.l.b16 %v177
    %v763 = vunpack.c.h.b16 %v177
    %v764 = vunpack.c.l.b16 %v178
    %v765 = vunpack.c.h.b16 %v178
    %v766 = vunpack.c.l.b16 %v179
    %v767 = vunpack.c.h.b16 %v179
    %v768 = vunpack.c.l.b16 %v180
    %v769 = vunpack.c.h.b16 %v180
    %v770 = vunpack.c.l.b16 %v181
    %v771 = vunpack.c.h.b16 %v181
    %v772 = vunpack.c.l.b16 %v182
    %v773 = vunpack.c.h.b16 %v182
    %v774 = vunpack.c.l.b16 %v183
    %v775 = vunpack.c.h.b16 %v183
    %v776 = vunpack.c.l.b16 %v184
    %v777 = vunpack.c.h.b16 %v184
    %v778 = vunpack.c.l.b16 %v185
    %v779 = vunpack.c.h.b16 %v185
    %v780 = vunpack.c.l.b16 %v186
    %v781 = vunpack.c.h.b16 %v186
    %v782 = vunpack.c.l.b16 %v187
    %v783 = vunpack.c.h.b16 %v187
    %v784 = vunpack.c.l.b16 %v188
    %v785 = vunpack.c.h.b16 %v188
    %v786 = vunpack.c.l.b16 %v189
    %v787 = vunpack.c.h.b16 %v189
    %v788 = vunpack.c.l.b16 %v190
    %v789 = vunpack.c.h.b16 %v190
    %v790 = vunpack.c.l.b16 %v191
    %v791 = vunpack.c.h.b16 %v191
    %v792 = vunpack.c.l.b16 %v192
    %v793 = vunpack.c.h.b16 %v192
    %v794 = vunpack.c.l.b16 %v193
    %v795 = vunpack.c.h.b16 %v193
    %v796 = vunpack.c.l.b16 %v194
    %v797 = vunpack.c.h.b16 %v194
    %v798 = vunpack.c.l.b16 %v195
    %v799 = vunpack.c.h.b16 %v195
    %v800 = vunpack.c.l.b16 %v196
    %v801 = vunpack.c.h.b16 %v196
    %v802 = vunpack.c.l.b16 %v197
    %v803 = vunpack.c.h.b16 %v197
    %v804 = vunpack.c.l.b16 %v198
    %v805 = vunpack.c.h.b16 %v198
    %v806 = vunpack.c.l.b16 %v199
    %v807 = vunpack.c.h.b16 %v199
    %v808 = vunpack.c.l.b16 %v200
    %v809 = vunpack.c.h.b16 %v200
    %v810 = vunpack.c.l.b16 %v201
    %v811 = vunpack.c.h.b16 %v201
    %v812 = vunpack.c.l.b16 %v202
    %v813 = vunpack.c.h.b16 %v202
    %v814 = vunpack.c.l.b16 %v203
    %v815 = vunpack.c.h.b16 %v203
    %v816 = vunpack.c.l.b16 %v204
    %v817 = vunpack.c.h.b16 %v204
    %v818 = vunpack.c.l.b16 %v205
    %v819 = vunpack.c.h.b16 %v205
    %v820 = vunpack.c.l.b16 %v206
    %v821 = vunpack.c.h.b16 %v206
    %v822 = vunpack.c.l.b16 %v207
    %v823 = vunpack.c.h.b16 %v207
    %v824 = vunpack.c.l.b16 %v208
    %v825 = vunpack.c.h.b16 %v208
    %v826 = vunpack.c.l.b16 %v209
    %v827 = vunpack.c.h.b16 %v209
    %v828 = vunpack.c.l.b16 %v210
    %v829 = vunpack.c.h.b16 %v210
    %v830 = vunpack.c.l.b16 %v211
    %v831 = vunpack.c.h.b16 %v211
    %v832 = vunpack.c.l.b16 %v212
    %v833 = vunpack.c.h.b16 %v212
    %v834 = vunpack.c.l.b16 %v213
    %v835 = vunpack.c.h.b16 %v213
    %v836 = vunpack.c.l.b16 %v214
    %v837 = vunpack.c.h.b16 %v214
    %v838 = vunpack.c.l.b16 %v215
    %v839 = vunpack.c.h.b16 %v215
    %v840 = vunpack.c.l.b16 %v216
    %v841 = vunpack.c.h.b16 %v216
    %v842 = vunpack.c.l.b16 %v217
    %v843 = vunpack.c.h.b16 %v217
    %v844 = vunpack.c.l.b16 %v218
    %v845 = vunpack.c.h.b16 %v218
    %v846 = vunpack.c.l.b16 %v219
    %v847 = vunpack.c.h.b16 %v219
    %v848 = vunpack.c.l.b16 %v220
    %v849 = vunpack.c.h.b16 %v220
    %v850 = vunpack.c.l.b16 %v221
    %v851 = vunpack.c.h.b16 %v221
    %v852 = vunpack.c.l.b16 %v222
    %v853 = vunpack.c.h.b16 %v222
    %v854 = vunpack.c.l.b16 %v223
    %v855 = vunpack.c.h.b16 %v223
    %v856 = vunpack.c.l.b16 %v224
    %v857 = vunpack.c.h.b16 %v224
    %v858 = vunpack.c.l.b16 %v225
    %v859 = vunpack.c.h.b16 %v225
    %v860 = vunpack.c.l.b16 %v226
    %v861 = vunpack.c.h.b16 %v226
    %v862 = vunpack.c.l.b16 %v227
    %v863 = vunpack.c.h.b16 %v227
    %v864 = vunpack.c.l.b16 %v228
    %v865 = vunpack.c.h.b16 %v228
    %v866 = vunpack.c.l.b16 %v229
    %v867 = vunpack.c.h.b16 %v229
    %v868 = vunpack.c.l.b16 %v230
    %v869 = vunpack.c.h.b16 %v230
    %v870 = vunpack.c.l.b16 %v231
    %v871 = vunpack.c.h.b16 %v231
    %v872 = vunpack.c.l.b16 %v232
    %v873 = vunpack.c.h.b16 %v232
    %v874 = vunpack.c.l.b16 %v233
    %v875 = vunpack.c.h.b16 %v233
    %v876 = vunpack.c.l.b16 %v234
    %v877 = vunpack.c.h.b16 %v234
    %v878 = vunpack.c.l.b16 %v235
    %v879 = vunpack.c.h.b16 %v235
    %v880 = vunpack.c.l.b16 %v236
    %v881 = vunpack.c.h.b16 %v236
    %v882 = vunpack.c.l.b16 %v237
    %v883 = vunpack.c.h.b16 %v237
    %v884 = vunpack.c.l.b16 %v238
    %v885 = vunpack.c.h.b16 %v238
    %v886 = vunpack.c.l.b16 %v239
    %v887 = vunpack.c.h.b16 %v239
    %v888 = vunpack.c.l.b16 %v240
    %v889 = vunpack.c.h.b16 %v240
    %v890 = vunpack.c.l.b16 %v241
    %v891 = vunpack.c.h.b16 %v241
    %v892 = vunpack.c.l.b16 %v242
    %v893 = vunpack.c.h.b16 %v242
    %v894 = vunpack.c.l.b16 %v243
    %v895 = vunpack.c.h.b16 %v243
    %v896 = vunpack.c.l.b16 %v244
    %v897 = vunpack.c.h.b16 %v244
    %v898 = vunpack.c.l.b16 %v245
    %v899 = vunpack.c.h.b16 %v245
    %v900 = vunpack.c.l.b16 %v246
    %v901 = vunpack.c.h.b16 %v246
    %v902 = vunpack.c.l.b16 %v247
    %v903 = vunpack.c.h.b16 %v247
    %v904 = vunpack.c.l.b16 %v248
    %v905 = vunpack.c.h.b16 %v248
    %v906 = vunpack.c.l.b16 %v249
    %v907 = vunpack.c.h.b16 %v249
    %v908 = vunpack.c.l.b16 %v250
    %v909 = vunpack.c.h.b16 %v250
    %v910 = vunpack.c.l.b16 %v251
    %v911 = vunpack.c.h.b16 %v251
    %v912 = vunpack.c.l.b16 %v252
    %v913 = vunpack.c.h.b16 %v252
    %v914 = vunpack.c.l.b16 %v253
    %v915 = vunpack.c.h.b16 %v253
    %v916 = vunpack.c.l.b16 %v254
    %v917 = vunpack.c.h.b16 %v254
    %v918 = vunpack.c.l.b16 %v255
    %v919 = vunpack.c.h.b16 %v255
    %v920 = vunpack.c.l.b16 %v256
    %v921 = vunpack.c.h.b16 %v256
    %v922 = vunpack.c.l.b16 %v257
    %v923 = vunpack.c.h.b16 %v257
    %v924 = vunpack.c.l.b16 %v258
    %v925 = vunpack.c.h.b16 %v258
    %v926 = vunpack.c.l.b16 %v259
    %v927 = vunpack.c.h.b16 %v259
    %v928 = vunpack.c.l.b16 %v260
    %v929 = vunpack.c.h.b16 %v260
    %v930 = vunpack.c.l.b16 %v261
    %v931 = vunpack.c.h.b16 %v261
    %v932 = vunpack.c.l.b16 %v262
    %v933 = vunpack.c.h.b16 %v262
    %v934 = vunpack.c.l.b16 %v263
    %v935 = vunpack.c.h.b16 %v263
    %v936 = vunpack.c.l.b16 %v264
    %v937 = vunpack.c.h.b16 %v264
    %v938 = vunpack.c.l.b16 %v265
    %v939 = vunpack.c.h.b16 %v265
    %v940 = vunpack.c.l.b16 %v266
    %v941 = vunpack.c.h.b16 %v266
    %v942 = vunpack.c.l.b16 %v267
    %v943 = vunpack.c.h.b16 %v267
    %v944 = vunpack.c.l.b16 %v268
    %v945 = vunpack.c.h.b16 %v268
    %v946 = vunpack.c.l.b16 %v269
    %v947 = vunpack.c.h.b16 %v269
    %v948 = vunpack.c.l.b16 %v270
    %v949 = vunpack.c.h.b16 %v270
    %v950 = vunpack.c.l.b16 %v271
    %v951 = vunpack.c.h.b16 %v271
    %v952 = vunpack.c.l.b16 %v272
    %v953 = vunpack.c.h.b16 %v272
    %v954 = vunpack.c.l.b16 %v273
    %v955 = vunpack.c.h.b16 %v273
    %v956 = vunpack.c.l.b16 %v274
    %v957 = vunpack.c.h.b16 %v274
    %v958 = vunpack.c.l.b16 %v275
    %v959 = vunpack.c.h.b16 %v275
    %v960 = vunpack.c.l.b16 %v276
    %v961 = vunpack.c.h.b16 %v276
    %v962 = vunpack.c.l.b16 %v277
    %v963 = vunpack.c.h.b16 %v277
    %v964 = vunpack.c.l.b16 %v278
    %v965 = vunpack.c.h.b16 %v278
    %v966 = vunpack.c.l.b16 %v279
    %v967 = vunpack.c.h.b16 %v279
    %v968 = vunpack.c.l.b16 %v280
    %v969 = vunpack.c.h.b16 %v280
    %v970 = vunpack.c.l.b16 %v281
    %v971 = vunpack.c.h.b16 %v281
    %v972 = vunpack.c.l.b16 %v282
    %v973 = vunpack.c.h.b16 %v282
    %v974 = vunpack.c.l.b16 %v283
    %v975 = vunpack.c.h.b16 %v283
    %v976 = vunpack.c.l.b16 %v284
    %v977 = vunpack.c.h.b16 %v284
    %v978 = vunpack.c.l.b16 %v285
    %v979 = vunpack.c.h.b16 %v285
    %v980 = vunpack.c.l.b16 %v286
    %v981 = vunpack.c.h.b16 %v286
    %v982 = vunpack.c.l.b16 %v287
    %v983 = vunpack.c.h.b16 %v287
    %v984 = vunpack.c.l.b16 %v288
    %v985 = vunpack.c.h.b16 %v288
    %v986 = vunpack.c.l.b16 %v289
    %v987 = vunpack.c.h.b16 %v289
    %v988 = vunpack.c.l.b16 %v290
    %v989 = vunpack.c.h.b16 %v290
    %v990 = vunpack.c.l.b16 %v291
    %v991 = vunpack.c.h.b16 %v291
    %v992 = vunpack.c.l.b16 %v292
    %v993 = vunpack.c.h.b16 %v292
    %v994 = vunpack.c.l.b16 %v293
    %v995 = vunpack.c.h.b16 %v293
    %v996 = vunpack.c.l.b16 %v294
    %v997 = vunpack.c.h.b16 %v294
    %v998 = vunpack.c.l.b16 %v295
    %v999 = vunpack.c.h.b16 %v295
    %v1000 = vunpack.c.l.b16 %v296
    %v1001 = vunpack.c.h.b16 %v296
    %v1002 = vunpack.c.l.b16 %v297
    %v1003 = vunpack.c.h.b16 %v297
    %v1004 = vunpack.c.l.b16 %v298
    %v1005 = vunpack.c.h.b16 %v298
    %v1006 = vunpack.c.l.b16 %v299
    %v1007 = vunpack.c.h.b16 %v299
    %v1008 = vunpack.c.l.b16 %v300
    %v1009 = vunpack.c.h.b16 %v300
    %v1010 = vunpack.c.l.b16 %v301
    %v1011 = vunpack.c.h.b16 %v301
    %v1012 = vunpack.c.l.b16 %v302
    %v1013 = vunpack.c.h.b16 %v302
    %v1014 = vunpack.c.l.b16 %v303
    %v1015 = vunpack.c.h.b16 %v303
    %v1016 = vunpack.c.l.b16 %v304
    %v1017 = vunpack.c.h.b16 %v304
    %v1018 = vunpack.c.l.b16 %v305
    %v1019 = vunpack.c.h.b16 %v305
    %v1020 = vunpack.c.l.b16 %v306
    %v1021 = vunpack.c.h.b16 %v306
    %v1022 = vunpack.c.l.b16 %v307
    %v1023 = vunpack.c.h.b16 %v307
    %v1024 = vunpack.c.l.b16 %v308
    %v1025 = vunpack.c.h.b16 %v308
    %v1026 = vunpack.c.l.b16 %v309
    %v1027 = vunpack.c.h.b16 %v309
    %v1028 = vunpack.c.l.b16 %v310
    %v1029 = vunpack.c.h.b16 %v310
    %v1030 = vunpack.c.l.b16 %v311
    %v1031 = vunpack.c.h.b16 %v311
    %v1032 = vunpack.c.l.b16 %v312
    %v1033 = vunpack.c.h.b16 %v312
    %v1034 = vunpack.c.l.b16 %v313
    %v1035 = vunpack.c.h.b16 %v313
    %v1036 = vunpack.c.l.b16 %v314
    %v1037 = vunpack.c.h.b16 %v314
    %v1038 = vunpack.c.l.b16 %v315
    %v1039 = vunpack.c.h.b16 %v315
    %v1040 = vunpack.c.l.b16 %v316
    %v1041 = vunpack.c.h.b16 %v316
    %v1042 = vunpack.c.l.b16 %v317
    %v1043 = vunpack.c.h.b16 %v317
    %v1044 = vunpack.c.l.b16 %v318
    %v1045 = vunpack.c.h.b16 %v318
    %v1046 = vunpack.c.l.b16 %v319
    %v1047 = vunpack.c.h.b16 %v319
    %v1048 = vunpack.c.l.b16 %v320
    %v1049 = vunpack.c.h.b16 %v320
    %v1050 = vunpack.c.l.b16 %v321
    %v1051 = vunpack.c.h.b16 %v321
    %v1052 = vunpack.c.l.b16 %v322
    %v1053 = vunpack.c.h.b16 %v322
    %v1054 = vunpack.c.l.b16 %v323
    %v1055 = vunpack.c.h.b16 %v323
    %v1056 = vunpack.c.l.b16 %v324
    %v1057 = vunpack.c.h.b16 %v324
    %v1058 = vunpack.c.l.b16 %v325
    %v1059 = vunpack.c.h.b16 %v325
    %v1060 = vunpack.c.l.b16 %v326
    %v1061 = vunpack.c.h.b16 %v326
    %v1062 = vunpack.c.l.b16 %v327
    %v1063 = vunpack.c.h.b16 %v327
    %v1064 = vunpack.c.l.b16 %v328
    %v1065 = vunpack.c.h.b16 %v328
    %v1066 = vunpack.c.l.b16 %v329
    %v1067 = vunpack.c.h.b16 %v329
    %v1068 = vunpack.c.l.b16 %v330
    %v1069 = vunpack.c.h.b16 %v330
    %v1070 = vunpack.c.l.b16 %v331
    %v1071 = vunpack.c.h.b16 %v331
    %v1072 = vunpack.c.l.b16 %v332
    %v1073 = vunpack.c.h.b16 %v332
    %v1074 = vunpack.c.l.b16 %v333
    %v1075 = vunpack.c.h.b16 %v333
    %v1076 = vunpack.c.l.b16 %v334
    %v1077 = vunpack.c.h.b16 %v334
    %v1078 = vunpack.c.l.b16 %v335
    %v1079 = vunpack.c.h.b16 %v335
    %v1080 = vunpack.c.l.b16 %v336
    %v1081 = vunpack.c.h.b16 %v336
    %v1082 = vunpack.c.l.b16 %v337
    %v1083 = vunpack.c.h.b16 %v337
    %v1084 = vunpack.c.l.b16 %v338
    %v1085 = vunpack.c.h.b16 %v338
    %v1086 = vunpack.c.l.b16 %v339
    %v1087 = vunpack.c.h.b16 %v339
    %v1088 = vunpack.c.l.b16 %v340
    %v1089 = vunpack.c.h.b16 %v340
    %v1090 = vunpack.c.l.b16 %v341
    %v1091 = vunpack.c.h.b16 %v341
    %v1092 = vunpack.c.l.b16 %v342
    %v1093 = vunpack.c.h.b16 %v342
    %v1094 = vunpack.c.l.b16 %v343
    %v1095 = vunpack.c.h.b16 %v343
    %v1096 = vunpack.c.l.b16 %v344
    %v1097 = vunpack.c.h.b16 %v344
    %v1098 = vunpack.c.l.b16 %v345
    %v1099 = vunpack.c.h.b16 %v345
    %v1100 = vunpack.c.l.b16 %v346
    %v1101 = vunpack.c.h.b16 %v346
    %v1102 = vunpack.c.l.b16 %v347
    %v1103 = vunpack.c.h.b16 %v347
    %v1104 = vunpack.c.l.b16 %v348
    %v1105 = vunpack.c.h.b16 %v348
    %v1106 = vunpack.c.l.b16 %v349
    %v1107 = vunpack.c.h.b16 %v349
    %v1108 = vunpack.c.l.b16 %v350
    %v1109 = vunpack.c.h.b16 %v350
    %v1110 = vunpack.c.l.b16 %v351
    %v1111 = vunpack.c.h.b16 %v351
    %v1112 = vunpack.c.l.b16 %v352
    %v1113 = vunpack.c.h.b16 %v352
    %v1114 = vunpack.c.l.b16 %v353
    %v1115 = vunpack.c.h.b16 %v353
    %v1116 = vunpack.c.l.b16 %v354
    %v1117 = vunpack.c.h.b16 %v354
    %v1118 = vunpack.c.l.b16 %v355
    %v1119 = vunpack.c.h.b16 %v355
    %v1120 = vunpack.c.l.b16 %v356
    %v1121 = vunpack.c.h.b16 %v356
    %v1122 = vunpack.c.l.b16 %v357
    %v1123 = vunpack.c.h.b16 %v357
    %v1124 = vunpack.c.l.b16 %v358
    %v1125 = vunpack.c.h.b16 %v358
    %v1126 = vunpack.c.l.b16 %v359
    %v1127 = vunpack.c.h.b16 %v359
    %v1128 = vunpack.c.l.b16 %v360
    %v1129 = vunpack.c.h.b16 %v360
    %v1130 = vunpack.c.l.b16 %v361
    %v1131 = vunpack.c.h.b16 %v361
    %v1132 = vunpack.c.l.b16 %v362
    %v1133 = vunpack.c.h.b16 %v362
    %v1134 = vunpack.c.l.b16 %v363
    %v1135 = vunpack.c.h.b16 %v363
    %v1136 = vunpack.c.l.b16 %v364
    %v1137 = vunpack.c.h.b16 %v364
    %v1138 = vunpack.c.l.b16 %v365
    %v1139 = vunpack.c.h.b16 %v365
    %v1140 = vunpack.c.l.b16 %v366
    %v1141 = vunpack.c.h.b16 %v366
    %v1142 = vunpack.c.l.b16 %v367
    %v1143 = vunpack.c.h.b16 %v367
    %v1144 = vunpack.c.l.b16 %v368
    %v1145 = vunpack.c.h.b16 %v368
    %v1146 = vunpack.c.l.b16 %v369
    %v1147 = vunpack.c.h.b16 %v369
    %v1148 = vunpack.c.l.b16 %v370
    %v1149 = vunpack.c.h.b16 %v370
    %v1150 = vunpack.c.l.b16 %v371
    %v1151 = vunpack.c.h.b16 %v371
    %v1152 = vunpack.c.l.b16 %v372
    %v1153 = vunpack.c.h.b16 %v372
    %v1154 = vunpack.c.l.b16 %v373
    %v1155 = vunpack.c.h.b16 %v373
    %v1156 = vunpack.c.l.b16 %v374
    %v1157 = vunpack.c.h.b16 %v374
    %v1158 = vunpack.c.l.b16 %v375
    %v1159 = vunpack.c.h.b16 %v375
    %v1160 = vunpack.c.l.b16 %v376
    %v1161 = vunpack.c.h.b16 %v376
    %v1162 = vunpack.c.l.b16 %v377
    %v1163 = vunpack.c.h.b16 %v377
    %v1164 = vunpack.c.l.b16 %v378
    %v1165 = vunpack.c.h.b16 %v378
    %v1166 = vunpack.c.l.b16 %v379
    %v1167 = vunpack.c.h.b16 %v379
    %v1168 = vunpack.c.l.b16 %v380
    %v1169 = vunpack.c.h.b16 %v380
    %v1170 = vpack.c.b16 %v662, %v658
    %v1171 = vpack.c.b16 %v663, %v659
    %v1172 = vpack.c.b16 %v664, %v660
    %v1173 = vpack.c.b16 %v665, %v661
    %v1174 = vpack.c.b16 %v670, %v666
    %v1175 = vpack.c.b16 %v671, %v667
    %v1176 = vpack.c.b16 %v672, %v668
    %v1177 = vpack.c.b16 %v673, %v669
    %v1178 = vpack.c.b16 %v678, %v674
    %v1179 = vpack.c.b16 %v679, %v675
    %v1180 = vpack.c.b16 %v680, %v676
    %v1181 = vpack.c.b16 %v681, %v677
    %v1182 = vpack.c.b16 %v686, %v682
    %v1183 = vpack.c.b16 %v687, %v683
    %v1184 = vpack.c.b16 %v688, %v684
    %v1185 = vpack.c.b16 %v689, %v685
    %v1186 = vpack.c.b16 %v694, %v690
    %v1187 = vpack.c.b16 %v695, %v691
    %v1188 = vpack.c.b16 %v696, %v692
    %v1189 = vpack.c.b16 %v697, %v693
    %v1190 = vpack.c.b16 %v702, %v698
    %v1191 = vpack.c.b16 %v703, %v699
    %v1192 = vpack.c.b16 %v704, %v700
    %v1193 = vpack.c.b16 %v705, %v701
    %v1194 = vpack.c.b16 %v710, %v706
    %v1195 = vpack.c.b16 %v711, %v707
    %v1196 = vpack.c.b16 %v712, %v708
    %v1197 = vpack.c.b16 %v713, %v709
    %v1198 = vpack.c.b16 %v718, %v714
    %v1199 = vpack.c.b16 %v719, %v715
    %v1200 = vpack.c.b16 %v720, %v716
    %v1201 = vpack.c.b16 %v721, %v717
    %v1202 = vpack.c.b16 %v726, %v722
    %v1203 = vpack.c.b16 %v727, %v723
    %v1204 = vpack.c.b16 %v728, %v724
    %v1205 = vpack.c.b16 %v729, %v725
    %v1206 = vpack.c.b16 %v734, %v730
    %v1207 = vpack.c.b16 %v735, %v731
    %v1208 = vpack.c.b16 %v736, %v732
    %v1209 = vpack.c.b16 %v737, %v733
    %v1210 = vpack.c.b16 %v742, %v738
    %v1211 = vpack.c.b16 %v743, %v739
    %v1212 = vpack.c.b16 %v744, %v740
    %v1213 = vpack.c.b16 %v745, %v741
    %v1214 = vpack.c.b16 %v750, %v746
    %v1215 = vpack.c.b16 %v751, %v747
    %v1216 = vpack.c.b16 %v752, %v748
    %v1217 = vpack.c.b16 %v753, %v749
    %v1218 = vpack.c.b16 %v758, %v754
    %v1219 = vpack.c.b16 %v759, %v755
    %v1220 = vpack.c.b16 %v760, %v756
    %v1221 = vpack.c.b16 %v761, %v757
    %v1222 = vpack.c.b16 %v766, %v762
    %v1223 = vpack.c.b16 %v767, %v763
    %v1224 = vpack.c.b16 %v768, %v764
    %v1225 = vpack.c.b16 %v769, %v765
    %v1226 = vpack.c.b16 %v774, %v770
    %v1227 = vpack.c.b16 %v775, %v771
    %v1228 = vpack.c.b16 %v776, %v772
    %v1229 = vpack.c.b16 %v777, %v773
    %v1230 = vpack.c.b16 %v782, %v778
    %v1231 = vpack.c.b16 %v783, %v779
    %v1232 = vpack.c.b16 %v784, %v780
    %v1233 = vpack.c.b16 %v785, %v781
    %v1234 = vpack.c.b16 %v790, %v786
    %v1235 = vpack.c.b16 %v791, %v787
    %v1236 = vpack.c.b16 %v792, %v788
    %v1237 = vpack.c.b16 %v793, %v789
    %v1238 = vpack.c.b16 %v798, %v794
    %v1239 = vpack.c.b16 %v799, %v795
    %v1240 = vpack.c.b16 %v800, %v796
    %v1241 = vpack.c.b16 %v801, %v797
    %v1242 = vpack.c.b16 %v806, %v802
    %v1243 = vpack.c.b16 %v807, %v803
    %v1244 = vpack.c.b16 %v808, %v804
    %v1245 = vpack.c.b16 %v809, %v805
    %v1246 = vpack.c.b16 %v814, %v810
    %v1247 = vpack.c.b16 %v815, %v811
    %v1248 = vpack.c.b16 %v816, %v812
    %v1249 = vpack.c.b16 %v817, %v813
    %v1250 = vpack.c.b16 %v822, %v818
    %v1251 = vpack.c.b16 %v823, %v819
    %v1252 = vpack.c.b16 %v824, %v820
    %v1253 = vpack.c.b16 %v825, %v821
    %v1254 = vpack.c.b16 %v830, %v826
    %v1255 = vpack.c.b16 %v831, %v827
    %v1256 = vpack.c.b16 %v832, %v828
    %v1257 = vpack.c.b16 %v833, %v829
    %v1258 = vpack.c.b16 %v838, %v834
    %v1259 = vpack.c.b16 %v839, %v835
    %v1260 = vpack.c.b16 %v840, %v836
    %v1261 = vpack.c.b16 %v841, %v837
    %v1262 = vpack.c.b16 %v846, %v842
    %v1263 = vpack.c.b16 %v847, %v843
    %v1264 = vpack.c.b16 %v848, %v844
    %v1265 = vpack.c.b16 %v849, %v845
    %v1266 = vpack.c.b16 %v854, %v850
    %v1267 = vpack.c.b16 %v855, %v851
    %v1268 = vpack.c.b16 %v856, %v852
    %v1269 = vpack.c.b16 %v857, %v853
    %v1270 = vpack.c.b16 %v862, %v858
    %v1271 = vpack.c.b16 %v863, %v859
    %v1272 = vpack.c.b16 %v864, %v860
    %v1273 = vpack.c.b16 %v865, %v861
    %v1274 = vpack.c.b16 %v870, %v866
    %v1275 = vpack.c.b16 %v871, %v867
    %v1276 = vpack.c.b16 %v872, %v868
    %v1277 = vpack.c.b16 %v873, %v869
    %v1278 = vpack.c.b16 %v878, %v874
    %v1279 = vpack.c.b16 %v879, %v875
    %v1280 = vpack.c.b16 %v880, %v876
    %v1281 = vpack.c.b16 %v881, %v877
    %v1282 = vpack.c.b16 %v886, %v882
    %v1283 = vpack.c.b16 %v887, %v883
    %v1284 = vpack.c.b16 %v888, %v884
    %v1285 = vpack.c.b16 %v889, %v885
    %v1286 = vpack.c.b16 %v894, %v890
    %v1287 = vpack.c.b16 %v895, %v891
    %v1288 = vpack.c.b16 %v896, %v892
    %v1289 = vpack.c.b16 %v897, %v893
    %v1290 = vpack.c.b16 %v902, %v898
    %v1291 = vpack.c.b16 %v903, %v899
    %v1292 = vpack.c.b16 %v904, %v900
    %v1293 = vpack.c.b16 %v905, %v901
    %v1294 = vpack.c.b16 %v910, %v906
    %v1295 = vpack.c.b16 %v911, %v907
    %v1296 = vpack.c.b16 %v912, %v908
    %v1297 = vpack.c.b16 %v913, %v909
    %v1298 = vpack.c.b16 %v918, %v914
    %v1299 = vpack.c.b16 %v919, %v915
    %v1300 = vpack.c.b16 %v920, %v916
    %v1301 = vpack.c.b16 %v921, %v917
    %v1302 = vpack.c.b16 %v926, %v922
    %v1303 = vpack.c.b16 %v927, %v923
    %v1304 = vpack.c.b16 %v928, %v924
    %v1305 = vpack.c.b16 %v929, %v925
    %v1306 = vpack.c.b16 %v934, %v930
    %v1307 = vpack.c.b16 %v935, %v931
    %v1308 = vpack.c.b16 %v936, %v932
    %v1309 = vpack.c.b16 %v937, %v933
    %v1310 = vpack.c.b16 %v942, %v938
    %v1311 = vpack.c.b16 %v943, %v939
    %v1312 = vpack.c.b16 %v944, %v940
    %v1313 = vpack.c.b16 %v945, %v941
    %v1314 = vpack.c.b16 %v950, %v946
    %v1315 = vpack.c.b16 %v951, %v947
    %v1316 = vpack.c.b16 %v952, %v948
    %v1317 = vpack.c.b16 %v953, %v949
    %v1318 = vpack.c.b16 %v958, %v954
    %v1319 = vpack.c.b16 %v959, %v955
    %v1320 = vpack.c.b16 %v960, %v956
    %v1321 = vpack.c.b16 %v961, %v957
    %v1322 = vpack.c.b16 %v966, %v962
    %v1323 = vpack.c.b16 %v967, %v963
    %v1324 = vpack.c.b16 %v968, %v964
    %v1325 = vpack.c.b16 %v969, %v965
    %v1326 = vpack.c.b16 %v974, %v970
    %v1327 = vpack.c.b16 %v975, %v971
    %v1328 = vpack.c.b16 %v976, %v972
    %v1329 = vpack.c.b16 %v977, %v973
    %v1330 = vpack.c.b16 %v982, %v978
    %v1331 = vpack.c.b16 %v983, %v979
    %v1332 = vpack.c.b16 %v984, %v980
    %v1333 = vpack.c.b16 %v985, %v981
    %v1334 = vpack.c.b16 %v990, %v986
    %v1335 = vpack.c.b16 %v991, %v987
    %v1336 = vpack.c.b16 %v992, %v988
    %v1337 = vpack.c.b16 %v993, %v989
    %v1338 = vpack.c.b16 %v998, %v994
    %v1339 = vpack.c.b16 %v999, %v995
    %v1340 = vpack.c.b16 %v1000, %v996
    %v1341 = vpack.c.b16 %v1001, %v997
    %v1342 = vpack.c.b16 %v1006, %v1002
    %v1343 = vpack.c.b16 %v1007, %v1003
    %v1344 = vpack.c.b16 %v1008, %v1004
    %v1345 = vpack.c.b16 %v1009, %v1005
    %v1346 = vpack.c.b16 %v1014, %v1010
    %v1347 = vpack.c.b16 %v1015, %v1011
    %v1348 = vpack.c.b16 %v1016, %v1012
    %v1349 = vpack.c.b16 %v1017, %v1013
    %v1350 = vpack.c.b16 %v1022, %v1018
    %v1351 = vpack.c.b16 %v1023, %v1019
    %v1352 = vpack.c.b16 %v1024, %v1020
    %v1353 = vpack.c.b16 %v1025, %v1021
    %v1354 = vpack.c.b16 %v1030, %v1026
    %v1355 = vpack.c.b16 %v1031, %v1027
    %v1356 = vpack.c.b16 %v1032, %v1028
    %v1357 = vpack.c.b16 %v1033, %v1029
    %v1358 = vpack.c.b16 %v1038, %v1034
    %v1359 = vpack.c.b16 %v1039, %v1035
    %v1360 = vpack.c.b16 %v1040, %v1036
    %v1361 = vpack.c.b16 %v1041, %v1037
    %v1362 = vpack.c.b16 %v1046, %v1042
    %v1363 = vpack.c.b16 %v1047, %v1043
    %v1364 = vpack.c.b16 %v1048, %v1044
    %v1365 = vpack.c.b16 %v1049, %v1045
    %v1366 = vpack.c.b16 %v1054, %v1050
    %v1367 = vpack.c.b16 %v1055, %v1051
    %v1368 = vpack.c.b16 %v1056, %v1052
    %v1369 = vpack.c.b16 %v1057, %v1053
    %v1370 = vpack.c.b16 %v1062, %v1058
    %v1371 = vpack.c.b16 %v1063, %v1059
    %v1372 = vpack.c.b16 %v1064, %v1060
    %v1373 = vpack.c.b16 %v1065, %v1061
    %v1374 = vpack.c.b16 %v1070, %v1066
    %v1375 = vpack.c.b16 %v1071, %v1067
    %v1376 = vpack.c.b16 %v1072, %v1068
    %v1377 = vpack.c.b16 %v1073, %v1069
    %v1378 = vpack.c.b16 %v1078, %v1074
    %v1379 = vpack.c.b16 %v1079, %v1075
    %v1380 = vpack.c.b16 %v1080, %v1076
    %v1381 = vpack.c.b16 %v1081, %v1077
    %v1382 = vpack.c.b16 %v1086, %v1082
    %v1383 = vpack.c.b16 %v1087, %v1083
    %v1384 = vpack.c.b16 %v1088, %v1084
    %v1385 = vpack.c.b16 %v1089, %v1085
    %v1386 = vpack.c.b16 %v1094, %v1090
    %v1387 = vpack.c.b16 %v1095, %v1091
    %v1388 = vpack.c.b16 %v1096, %v1092
    %v1389 = vpack.c.b16 %v1097, %v1093
    %v1390 = vpack.c.b16 %v1102, %v1098
    %v1391 = vpack.c.b16 %v1103, %v1099
    %v1392 = vpack.c.b16 %v1104, %v1100
    %v1393 = vpack.c.b16 %v1105, %v1101
    %v1394 = vpack.c.b16 %v1110, %v1106
    %v1395 = vpack.c.b16 %v1111, %v1107
    %v1396 = vpack.c.b16 %v1112, %v1108
    %v1397 = vpack.c.b16 %v1113, %v1109
    %v1398 = vpack.c.b16 %v1118, %v1114
    %v1399 = vpack.c.b16 %v1119, %v1115
    %v1400 = vpack.c.b16 %v1120, %v1116
    %v1401 = vpack.c.b16 %v1121, %v1117
    %v1402 = vpack.c.b16 %v1126, %v1122
    %v1403 = vpack.c.b16 %v1127, %v1123
    %v1404 = vpack.c.b16 %v1128, %v1124
    %v1405 = vpack.c.b16 %v1129, %v1125
    %v1406 = vpack.c.b16 %v1134, %v1130
    %v1407 = vpack.c.b16 %v1135, %v1131
    %v1408 = vpack.c.b16 %v1136, %v1132
    %v1409 = vpack.c.b16 %v1137, %v1133
    %v1410 = vpack.c.b16 %v1142, %v1138
    %v1411 = vpack.c.b16 %v1143, %v1139
    %v1412 = vpack.c.b16 %v1144, %v1140
    %v1413 = vpack.c.b16 %v1145, %v1141
    %v1414 = vpack.c.b16 %v1150, %v1146
    %v1415 = vpack.c.b16 %v1151, %v1147
    %v1416 = vpack.c.b16 %v1152, %v1148
    %v1417 = vpack.c.b16 %v1153, %v1149
    %v1418 = vpack.c.b16 %v1158, %v1154
    %v1419 = vpack.c.b16 %v1159, %v1155
    %v1420 = vpack.c.b16 %v1160, %v1156
    %v1421 = vpack.c.b16 %v1161, %v1157
    %v1422 = vpack.c.b16 %v1166, %v1162
    %v1423 = vpack.c.b16 %v1167, %v1163
    %v1424 = vpack.c.b16 %v1168, %v1164
    %v1425 = vpack.c.b16 %v1169, %v1165
    %1682 = vmatprep.subr.bf16.mxu0 %v1171
    %1683 = vmatpush1.bf16.msra.mxu0 %v1170
    %1684 = vmatprep.subr.bf16.mxu0 %v1175
    %1685 = vmatpush1.bf16.msra.mxu0 %v1174
    %1686 = vmatprep.subr.bf16.mxu0 %v1179
    %1687 = vmatpush1.bf16.msra.mxu0 %v1178
    %1688 = vmatprep.subr.bf16.mxu0 %v1183
    %1689 = vmatpush1.bf16.msra.mxu0 %v1182
    %1690 = vmatprep.subr.bf16.mxu0 %v1187
    %1691 = vmatpush1.bf16.msra.mxu0 %v1186
    %1692 = vmatprep.subr.bf16.mxu0 %v1191
    %1693 = vmatpush1.bf16.msra.mxu0 %v1190
    %1694 = vmatprep.subr.bf16.mxu0 %v1195
    %1695 = vmatpush1.bf16.msra.mxu0 %v1194
    %1696 = vmatprep.subr.bf16.mxu0 %v1199
    %1697 = vmatpush1.bf16.msra.mxu0 %v1198
    %1698 = vmatprep.subr.bf16.mxu0 %v1203
    %1699 = vmatpush1.bf16.msra.mxu0 %v1202
    %1700 = vmatprep.subr.bf16.mxu0 %v1207
    %1701 = vmatpush1.bf16.msra.mxu0 %v1206
    %1702 = vmatprep.subr.bf16.mxu0 %v1211
    %1703 = vmatpush1.bf16.msra.mxu0 %v1210
    %1704 = vmatprep.subr.bf16.mxu0 %v1215
    %1705 = vmatpush1.bf16.msra.mxu0 %v1214
    %1706 = vmatprep.subr.bf16.mxu0 %v1219
    %1707 = vmatpush1.bf16.msra.mxu0 %v1218
    %1708 = vmatprep.subr.bf16.mxu0 %v1223
    %1709 = vmatpush1.bf16.msra.mxu0 %v1222
    %1710 = vmatprep.subr.bf16.mxu0 %v1227
    %1711 = vmatpush1.bf16.msra.mxu0 %v1226
    %1712 = vmatprep.subr.bf16.mxu0 %v1231
    %1713 = vmatpush1.bf16.msra.mxu0 %v1230
    %1714 = vmatprep.mubr.bf16.mxu0 %v118
    %1715 = vmatmul.mubr.bf16.gmra.mrb[0].mxu0 %v117
    %v1716 = vpop.f32.mrb[0].mxu0
    %v1717 = vadd.f32 %v385, %v1716
    %v1718 = vpop.f32.mrb[0].mxu0
    %v1719 = vadd.f32 %v389, %v1718
    %v1720 = vpop.f32.mrb[0].mxu0
    %v1721 = vpop.f32.mrb[0].mxu0
    %1722 = vdwg.mxu0
    %1723 = vmatprep.subr.bf16.mxu0 %v1235
    %1724 = vmatpush1.bf16.msra.mxu0 %v1234
    %1725 = vmatprep.subr.bf16.mxu0 %v1239
    %1726 = vmatpush1.bf16.msra.mxu0 %v1238
    %1727 = vmatprep.subr.bf16.mxu0 %v1243
    %1728 = vmatpush1.bf16.msra.mxu0 %v1242
    %1729 = vmatprep.subr.bf16.mxu0 %v1247
    %1730 = vmatpush1.bf16.msra.mxu0 %v1246
    %1731 = vmatprep.subr.bf16.mxu0 %v1251
    %1732 = vmatpush1.bf16.msra.mxu0 %v1250
    %1733 = vmatprep.subr.bf16.mxu0 %v1255
    %1734 = vmatpush1.bf16.msra.mxu0 %v1254
    %1735 = vmatprep.subr.bf16.mxu0 %v1259
    %1736 = vmatpush1.bf16.msra.mxu0 %v1258
    %1737 = vmatprep.subr.bf16.mxu0 %v1263
    %1738 = vmatpush1.bf16.msra.mxu0 %v1262
    %1739 = vmatprep.subr.bf16.mxu0 %v1267
    %1740 = vmatpush1.bf16.msra.mxu0 %v1266
    %1741 = vmatprep.subr.bf16.mxu0 %v1271
    %1742 = vmatpush1.bf16.msra.mxu0 %v1270
    %1743 = vmatprep.subr.bf16.mxu0 %v1275
    %1744 = vmatpush1.bf16.msra.mxu0 %v1274
    %1745 = vmatprep.subr.bf16.mxu0 %v1279
    %1746 = vmatpush1.bf16.msra.mxu0 %v1278
    %1747 = vmatprep.subr.bf16.mxu0 %v1283
    %1748 = vmatpush1.bf16.msra.mxu0 %v1282
    %1749 = vmatprep.subr.bf16.mxu0 %v1287
    %1750 = vmatpush1.bf16.msra.mxu0 %v1286
    %1751 = vmatprep.subr.bf16.mxu0 %v1291
    %1752 = vmatpush1.bf16.msra.mxu0 %v1290
    %1753 = vmatprep.subr.bf16.mxu0 %v1295
    %1754 = vmatpush1.bf16.msra.mxu0 %v1294
    %1755 = vmatprep.mubr.bf16.mxu0 %v120
    %1756 = vmatmul.mubr.bf16.gmra.mrb[0].mxu0 %v119
    %v1757 = vpop.f32.mrb[0].mxu0
    %v1758 = vadd.f32 %v1717, %v1757
    %v1759 = vpop.f32.mrb[0].mxu0
    %v1760 = vadd.f32 %v1719, %v1759
    %v1761 = vpop.f32.mrb[0].mxu0
    %v1762 = vpop.f32.mrb[0].mxu0
    %1763 = vdwg.mxu0
    %1764 = vmatprep.subr.bf16.mxu0 %v1299
    %1765 = vmatpush1.bf16.msra.mxu0 %v1298
    %1766 = vmatprep.subr.bf16.mxu0 %v1303
    %1767 = vmatpush1.bf16.msra.mxu0 %v1302
    %1768 = vmatprep.subr.bf16.mxu0 %v1307
    %1769 = vmatpush1.bf16.msra.mxu0 %v1306
    %1770 = vmatprep.subr.bf16.mxu0 %v1311
    %1771 = vmatpush1.bf16.msra.mxu0 %v1310
    %1772 = vmatprep.subr.bf16.mxu0 %v1315
    %1773 = vmatpush1.bf16.msra.mxu0 %v1314
    %1774 = vmatprep.subr.bf16.mxu0 %v1319
    %1775 = vmatpush1.bf16.msra.mxu0 %v1318
    %1776 = vmatprep.subr.bf16.mxu0 %v1323
    %1777 = vmatpush1.bf16.msra.mxu0 %v1322
    %1778 = vmatprep.subr.bf16.mxu0 %v1327
    %1779 = vmatpush1.bf16.msra.mxu0 %v1326
    %1780 = vmatprep.subr.bf16.mxu0 %v1331
    %1781 = vmatpush1.bf16.msra.mxu0 %v1330
    %1782 = vmatprep.subr.bf16.mxu0 %v1335
    %1783 = vmatpush1.bf16.msra.mxu0 %v1334
    %1784 = vmatprep.subr.bf16.mxu0 %v1339
    %1785 = vmatpush1.bf16.msra.mxu0 %v1338
    %1786 = vmatprep.subr.bf16.mxu0 %v1343
    %1787 = vmatpush1.bf16.msra.mxu0 %v1342
    %1788 = vmatprep.subr.bf16.mxu0 %v1347
    %1789 = vmatpush1.bf16.msra.mxu0 %v1346
    %1790 = vmatprep.subr.bf16.mxu0 %v1351
    %1791 = vmatpush1.bf16.msra.mxu0 %v1350
    %1792 = vmatprep.subr.bf16.mxu0 %v1355
    %1793 = vmatpush1.bf16.msra.mxu0 %v1354
    %1794 = vmatprep.subr.bf16.mxu0 %v1359
    %1795 = vmatpush1.bf16.msra.mxu0 %v1358
    %1796 = vmatprep.mubr.bf16.mxu0 %v122
    %1797 = vmatmul.mubr.bf16.gmra.mrb[0].mxu0 %v121
    %v1798 = vpop.f32.mrb[0].mxu0
    %v1799 = vadd.f32 %v1758, %v1798
    %v1800 = vpop.f32.mrb[0].mxu0
    %v1801 = vadd.f32 %v1760, %v1800
    %v1802 = vpop.f32.mrb[0].mxu0
    %v1803 = vpop.f32.mrb[0].mxu0
    %1804 = vdwg.mxu0
    %1805 = vmatprep.subr.bf16.mxu0 %v1363
    %1806 = vmatpush1.bf16.msra.mxu0 %v1362
    %1807 = vmatprep.subr.bf16.mxu0 %v1367
    %1808 = vmatpush1.bf16.msra.mxu0 %v1366
    %1809 = vmatprep.subr.bf16.mxu0 %v1371
    %1810 = vmatpush1.bf16.msra.mxu0 %v1370
    %1811 = vmatprep.subr.bf16.mxu0 %v1375
    %1812 = vmatpush1.bf16.msra.mxu0 %v1374
    %1813 = vmatprep.subr.bf16.mxu0 %v1379
    %1814 = vmatpush1.bf16.msra.mxu0 %v1378
    %1815 = vmatprep.subr.bf16.mxu0 %v1383
    %1816 = vmatpush1.bf16.msra.mxu0 %v1382
    %1817 = vmatprep.subr.bf16.mxu0 %v1387
    %1818 = vmatpush1.bf16.msra.mxu0 %v1386
    %1819 = vmatprep.subr.bf16.mxu0 %v1391
    %1820 = vmatpush1.bf16.msra.mxu0 %v1390
    %1821 = vmatprep.subr.bf16.mxu0 %v1395
    %1822 = vmatpush1.bf16.msra.mxu0 %v1394
    %1823 = vmatprep.subr.bf16.mxu0 %v1399
    %1824 = vmatpush1.bf16.msra.mxu0 %v1398
    %1825 = vmatprep.subr.bf16.mxu0 %v1403
    %1826 = vmatpush1.bf16.msra.mxu0 %v1402
    %1827 = vmatprep.subr.bf16.mxu0 %v1407
    %1828 = vmatpush1.bf16.msra.mxu0 %v1406
    %1829 = vmatprep.subr.bf16.mxu0 %v1411
    %1830 = vmatpush1.bf16.msra.mxu0 %v1410
    %1831 = vmatprep.subr.bf16.mxu0 %v1415
    %1832 = vmatpush1.bf16.msra.mxu0 %v1414
    %1833 = vmatprep.subr.bf16.mxu0 %v1419
    %1834 = vmatpush1.bf16.msra.mxu0 %v1418
    %1835 = vmatprep.subr.bf16.mxu0 %v1423
    %1836 = vmatpush1.bf16.msra.mxu0 %v1422
    %1837 = vmatprep.mubr.bf16.mxu0 %v124
    %1838 = vmatmul.mubr.bf16.gmra.mrb[0].mxu0 %v123
    %v1839 = vpop.f32.mrb[0].mxu0
    %v1840 = vadd.f32 %v1799, %v1839
    %v1841 = vpop.f32.mrb[0].mxu0
    %v1842 = vadd.f32 %v1801, %v1841
    %v1843 = vpop.f32.mrb[0].mxu0
    %v1844 = vpop.f32.mrb[0].mxu0
    %1845 = vdwg.mxu0
    %1846 = vmatprep.subr.bf16.mxu0 %v1173
    %1847 = vmatpush1.bf16.msra.mxu0 %v1172
    %1848 = vmatprep.subr.bf16.mxu0 %v1177
    %1849 = vmatpush1.bf16.msra.mxu0 %v1176
    %1850 = vmatprep.subr.bf16.mxu0 %v1181
    %1851 = vmatpush1.bf16.msra.mxu0 %v1180
    %1852 = vmatprep.subr.bf16.mxu0 %v1185
    %1853 = vmatpush1.bf16.msra.mxu0 %v1184
    %1854 = vmatprep.subr.bf16.mxu0 %v1189
    %1855 = vmatpush1.bf16.msra.mxu0 %v1188
    %1856 = vmatprep.subr.bf16.mxu0 %v1193
    %1857 = vmatpush1.bf16.msra.mxu0 %v1192
    %1858 = vmatprep.subr.bf16.mxu0 %v1197
    %1859 = vmatpush1.bf16.msra.mxu0 %v1196
    %1860 = vmatprep.subr.bf16.mxu0 %v1201
    %1861 = vmatpush1.bf16.msra.mxu0 %v1200
    %1862 = vmatprep.subr.bf16.mxu0 %v1205
    %1863 = vmatpush1.bf16.msra.mxu0 %v1204
    %1864 = vmatprep.subr.bf16.mxu0 %v1209
    %1865 = vmatpush1.bf16.msra.mxu0 %v1208
    %1866 = vmatprep.subr.bf16.mxu0 %v1213
    %1867 = vmatpush1.bf16.msra.mxu0 %v1212
    %1868 = vmatprep.subr.bf16.mxu0 %v1217
    %1869 = vmatpush1.bf16.msra.mxu0 %v1216
    %1870 = vmatprep.subr.bf16.mxu0 %v1221
    %1871 = vmatpush1.bf16.msra.mxu0 %v1220
    %1872 = vmatprep.subr.bf16.mxu0 %v1225
    %1873 = vmatpush1.bf16.msra.mxu0 %v1224
    %1874 = vmatprep.subr.bf16.mxu0 %v1229
    %1875 = vmatpush1.bf16.msra.mxu0 %v1228
    %1876 = vmatprep.subr.bf16.mxu0 %v1233
    %1877 = vmatpush1.bf16.msra.mxu0 %v1232
    %1878 = vmatprep.mubr.bf16.mxu0 %v118
    %1879 = vmatmul.mubr.bf16.gmra.mrb[0].mxu0 %v117
    %v1880 = vpop.f32.mrb[0].mxu0
    %v1881 = vadd.f32 %v393, %v1880
    %v1882 = vpop.f32.mrb[0].mxu0
    %v1883 = vadd.f32 %v397, %v1882
    %v1884 = vpop.f32.mrb[0].mxu0
    %v1885 = vpop.f32.mrb[0].mxu0
    %1886 = vdwg.mxu0
    %1887 = vmatprep.subr.bf16.mxu0 %v1237
    %1888 = vmatpush1.bf16.msra.mxu0 %v1236
    %1889 = vmatprep.subr.bf16.mxu0 %v1241
    %1890 = vmatpush1.bf16.msra.mxu0 %v1240
    %1891 = vmatprep.subr.bf16.mxu0 %v1245
    %1892 = vmatpush1.bf16.msra.mxu0 %v1244
    %1893 = vmatprep.subr.bf16.mxu0 %v1249
    %1894 = vmatpush1.bf16.msra.mxu0 %v1248
    %1895 = vmatprep.subr.bf16.mxu0 %v1253
    %1896 = vmatpush1.bf16.msra.mxu0 %v1252
    %1897 = vmatprep.subr.bf16.mxu0 %v1257
    %1898 = vmatpush1.bf16.msra.mxu0 %v1256
    %1899 = vmatprep.subr.bf16.mxu0 %v1261
    %1900 = vmatpush1.bf16.msra.mxu0 %v1260
    %1901 = vmatprep.subr.bf16.mxu0 %v1265
    %1902 = vmatpush1.bf16.msra.mxu0 %v1264
    %1903 = vmatprep.subr.bf16.mxu0 %v1269
    %1904 = vmatpush1.bf16.msra.mxu0 %v1268
    %1905 = vmatprep.subr.bf16.mxu0 %v1273
    %1906 = vmatpush1.bf16.msra.mxu0 %v1272
    %1907 = vmatprep.subr.bf16.mxu0 %v1277
    %1908 = vmatpush1.bf16.msra.mxu0 %v1276
    %1909 = vmatprep.subr.bf16.mxu0 %v1281
    %1910 = vmatpush1.bf16.msra.mxu0 %v1280
    %1911 = vmatprep.subr.bf16.mxu0 %v1285
    %1912 = vmatpush1.bf16.msra.mxu0 %v1284
    %1913 = vmatprep.subr.bf16.mxu0 %v1289
    %1914 = vmatpush1.bf16.msra.mxu0 %v1288
    %1915 = vmatprep.subr.bf16.mxu0 %v1293
    %1916 = vmatpush1.bf16.msra.mxu0 %v1292
    %1917 = vmatprep.subr.bf16.mxu0 %v1297
    %1918 = vmatpush1.bf16.msra.mxu0 %v1296
    %1919 = vmatprep.mubr.bf16.mxu0 %v120
    %1920 = vmatmul.mubr.bf16.gmra.mrb[0].mxu0 %v119
    %v1921 = vpop.f32.mrb[0].mxu0
    %v1922 = vadd.f32 %v1881, %v1921
    %v1923 = vpop.f32.mrb[0].mxu0
    %v1924 = vadd.f32 %v1883, %v1923
    %v1925 = vpop.f32.mrb[0].mxu0
    %v1926 = vpop.f32.mrb[0].mxu0
    %1927 = vdwg.mxu0
    %1928 = vmatprep.subr.bf16.mxu0 %v1301
    %1929 = vmatpush1.bf16.msra.mxu0 %v1300
    %1930 = vmatprep.subr.bf16.mxu0 %v1305
    %1931 = vmatpush1.bf16.msra.mxu0 %v1304
    %1932 = vmatprep.subr.bf16.mxu0 %v1309
    %1933 = vmatpush1.bf16.msra.mxu0 %v1308
    %1934 = vmatprep.subr.bf16.mxu0 %v1313
    %1935 = vmatpush1.bf16.msra.mxu0 %v1312
    %1936 = vmatprep.subr.bf16.mxu0 %v1317
    %1937 = vmatpush1.bf16.msra.mxu0 %v1316
    %1938 = vmatprep.subr.bf16.mxu0 %v1321
    %1939 = vmatpush1.bf16.msra.mxu0 %v1320
    %1940 = vmatprep.subr.bf16.mxu0 %v1325
    %1941 = vmatpush1.bf16.msra.mxu0 %v1324
    %1942 = vmatprep.subr.bf16.mxu0 %v1329
    %1943 = vmatpush1.bf16.msra.mxu0 %v1328
    %1944 = vmatprep.subr.bf16.mxu0 %v1333
    %1945 = vmatpush1.bf16.msra.mxu0 %v1332
    %1946 = vmatprep.subr.bf16.mxu0 %v1337
    %1947 = vmatpush1.bf16.msra.mxu0 %v1336
    %1948 = vmatprep.subr.bf16.mxu0 %v1341
    %1949 = vmatpush1.bf16.msra.mxu0 %v1340
    %1950 = vmatprep.subr.bf16.mxu0 %v1345
    %1951 = vmatpush1.bf16.msra.mxu0 %v1344
    %1952 = vmatprep.subr.bf16.mxu0 %v1349
    %1953 = vmatpush1.bf16.msra.mxu0 %v1348
    %1954 = vmatprep.subr.bf16.mxu0 %v1353
    %1955 = vmatpush1.bf16.msra.mxu0 %v1352
    %1956 = vmatprep.subr.bf16.mxu0 %v1357
    %1957 = vmatpush1.bf16.msra.mxu0 %v1356
    %1958 = vmatprep.subr.bf16.mxu0 %v1361
    %1959 = vmatpush1.bf16.msra.mxu0 %v1360
    %1960 = vmatprep.mubr.bf16.mxu0 %v122
    %1961 = vmatmul.mubr.bf16.gmra.mrb[0].mxu0 %v121
    %v1962 = vpop.f32.mrb[0].mxu0
    %v1963 = vadd.f32 %v1922, %v1962
    %v1964 = vpop.f32.mrb[0].mxu0
    %v1965 = vadd.f32 %v1924, %v1964
    %v1966 = vpop.f32.mrb[0].mxu0
    %v1967 = vpop.f32.mrb[0].mxu0
    %1968 = vdwg.mxu0
    %1969 = vmatprep.subr.bf16.mxu0 %v1365
    %1970 = vmatpush1.bf16.msra.mxu0 %v1364
    %1971 = vmatprep.subr.bf16.mxu0 %v1369
    %1972 = vmatpush1.bf16.msra.mxu0 %v1368
    %1973 = vmatprep.subr.bf16.mxu0 %v1373
    %1974 = vmatpush1.bf16.msra.mxu0 %v1372
    %1975 = vmatprep.subr.bf16.mxu0 %v1377
    %1976 = vmatpush1.bf16.msra.mxu0 %v1376
    %1977 = vmatprep.subr.bf16.mxu0 %v1381
    %1978 = vmatpush1.bf16.msra.mxu0 %v1380
    %1979 = vmatprep.subr.bf16.mxu0 %v1385
    %1980 = vmatpush1.bf16.msra.mxu0 %v1384
    %1981 = vmatprep.subr.bf16.mxu0 %v1389
    %1982 = vmatpush1.bf16.msra.mxu0 %v1388
    %1983 = vmatprep.subr.bf16.mxu0 %v1393
    %1984 = vmatpush1.bf16.msra.mxu0 %v1392
    %1985 = vmatprep.subr.bf16.mxu0 %v1397
    %1986 = vmatpush1.bf16.msra.mxu0 %v1396
    %1987 = vmatprep.subr.bf16.mxu0 %v1401
    %1988 = vmatpush1.bf16.msra.mxu0 %v1400
    %1989 = vmatprep.subr.bf16.mxu0 %v1405
    %1990 = vmatpush1.bf16.msra.mxu0 %v1404
    %1991 = vmatprep.subr.bf16.mxu0 %v1409
    %1992 = vmatpush1.bf16.msra.mxu0 %v1408
    %1993 = vmatprep.subr.bf16.mxu0 %v1413
    %1994 = vmatpush1.bf16.msra.mxu0 %v1412
    %1995 = vmatprep.subr.bf16.mxu0 %v1417
    %1996 = vmatpush1.bf16.msra.mxu0 %v1416
    %1997 = vmatprep.subr.bf16.mxu0 %v1421
    %1998 = vmatpush1.bf16.msra.mxu0 %v1420
    %1999 = vmatprep.subr.bf16.mxu0 %v1425
    %2000 = vmatpush1.bf16.msra.mxu0 %v1424
    %2001 = vmatprep.mubr.bf16.mxu0 %v124
    %2002 = vmatmul.mubr.bf16.gmra.mrb[0].mxu0 %v123
    %v2003 = vpop.f32.mrb[0].mxu0
    %v2004 = vadd.f32 %v1963, %v2003
    %v2005 = vpop.f32.mrb[0].mxu0
    %v2006 = vadd.f32 %v1965, %v2005
    %v2007 = vpop.f32.mrb[0].mxu0
    %v2008 = vpop.f32.mrb[0].mxu0
    %2009 = vdwg.mxu0
    %v2010 = vmax.f32 %v1840, 0.0
    %v2011 = vmax.f32 %v1842, 0.0
    %v2012 = vmax.f32 %v2004, 0.0
    %v2013 = vmax.f32 %v2006, 0.0
    %s2014 = scalar_lea.vmem %s14, 1
    %v2015 = vld [vmem:[%s2014] ss:$8 sm:$0x3]
    %v2016 = vpack.c.bf16 %v2010, %v2010
    %v2017 = vpack.c.bf16 %v2011, %v2011
    %v2018 = vpack.c.bf16 %v2012, %v2012
    %v2019 = vpack.c.bf16 %v2013, %v2013
    %v2020 = vld [vmem:[#allocation4] sm:$0xff]
    %v2021 = vld [vmem:[#allocation4 + $0x8] sm:$0xff]
    %v2022 = vld [vmem:[#allocation4 + $0x10] sm:$0xff]
    %v2023 = vld [vmem:[#allocation4 + $0x18] sm:$0xff]
    %v2024 = vld [vmem:[#allocation4 + $0x20] sm:$0xff]
    %v2025 = vld [vmem:[#allocation4 + $0x28] sm:$0xff]
    %v2026 = vld [vmem:[#allocation4 + $0x30] sm:$0xff]
    %v2027 = vld [vmem:[#allocation4 + $0x38] sm:$0xff]
    %v2028 = vld [vmem:[#allocation4 + $0x40] sm:$0xff]
    %v2029 = vld [vmem:[#allocation4 + $0x48] sm:$0xff]
    %v2030 = vld [vmem:[#allocation4 + $0x50] sm:$0xff]
    %v2031 = vld [vmem:[#allocation4 + $0x58] sm:$0xff]
    %v2032 = vld [vmem:[#allocation4 + $0x60] sm:$0xff]
    %v2033 = vld [vmem:[#allocation4 + $0x68] sm:$0xff]
    %v2034 = vld [vmem:[#allocation4 + $0x70] sm:$0xff]
    %v2035 = vld [vmem:[#allocation4 + $0x78] sm:$0xff]
    %v2036 = vld [vmem:[#allocation4 + $0x80] sm:$0xff]
    %v2037 = vld [vmem:[#allocation4 + $0x88] sm:$0xff]
    %v2038 = vld [vmem:[#allocation4 + $0x90] sm:$0xff]
    %v2039 = vld [vmem:[#allocation4 + $0x98] sm:$0xff]
    %v2040 = vld [vmem:[#allocation4 + $0xa0] sm:$0xff]
    %v2041 = vld [vmem:[#allocation4 + $0xa8] sm:$0xff]
    %v2042 = vld [vmem:[#allocation4 + $0xb0] sm:$0xff]
    %v2043 = vld [vmem:[#allocation4 + $0xb8] sm:$0xff]
    %v2044 = vld [vmem:[#allocation4 + $0xc0] sm:$0xff]
    %v2045 = vld [vmem:[#allocation4 + $0xc8] sm:$0xff]
    %v2046 = vld [vmem:[#allocation4 + $0xd0] sm:$0xff]
    %v2047 = vld [vmem:[#allocation4 + $0xd8] sm:$0xff]
    %v2048 = vld [vmem:[#allocation4 + $0xe0] sm:$0xff]
    %v2049 = vld [vmem:[#allocation4 + $0xe8] sm:$0xff]
    %v2050 = vld [vmem:[#allocation4 + $0xf0] sm:$0xff]
    %v2051 = vld [vmem:[#allocation4 + $0xf8] sm:$0xff]
    %v2052 = vld [vmem:[#allocation4 + $0x100] sm:$0xff]
    %v2053 = vld [vmem:[#allocation4 + $0x108] sm:$0xff]
    %v2054 = vld [vmem:[#allocation4 + $0x110] sm:$0xff]
    %v2055 = vld [vmem:[#allocation4 + $0x118] sm:$0xff]
    %v2056 = vld [vmem:[#allocation4 + $0x120] sm:$0xff]
    %v2057 = vld [vmem:[#allocation4 + $0x128] sm:$0xff]
    %v2058 = vld [vmem:[#allocation4 + $0x130] sm:$0xff]
    %v2059 = vld [vmem:[#allocation4 + $0x138] sm:$0xff]
    %v2060 = vld [vmem:[#allocation4 + $0x140] sm:$0xff]
    %v2061 = vld [vmem:[#allocation4 + $0x148] sm:$0xff]
    %v2062 = vld [vmem:[#allocation4 + $0x150] sm:$0xff]
    %v2063 = vld [vmem:[#allocation4 + $0x158] sm:$0xff]
    %v2064 = vld [vmem:[#allocation4 + $0x160] sm:$0xff]
    %v2065 = vld [vmem:[#allocation4 + $0x168] sm:$0xff]
    %v2066 = vld [vmem:[#allocation4 + $0x170] sm:$0xff]
    %v2067 = vld [vmem:[#allocation4 + $0x178] sm:$0xff]
    %v2068 = vld [vmem:[#allocation4 + $0x180] sm:$0xff]
    %v2069 = vld [vmem:[#allocation4 + $0x188] sm:$0xff]
    %v2070 = vld [vmem:[#allocation4 + $0x190] sm:$0xff]
    %v2071 = vld [vmem:[#allocation4 + $0x198] sm:$0xff]
    %v2072 = vld [vmem:[#allocation4 + $0x1a0] sm:$0xff]
    %v2073 = vld [vmem:[#allocation4 + $0x1a8] sm:$0xff]
    %v2074 = vld [vmem:[#allocation4 + $0x1b0] sm:$0xff]
    %v2075 = vld [vmem:[#allocation4 + $0x1b8] sm:$0xff]
    %v2076 = vld [vmem:[#allocation4 + $0x1c0] sm:$0xff]
    %v2077 = vld [vmem:[#allocation4 + $0x1c8] sm:$0xff]
    %v2078 = vld [vmem:[#allocation4 + $0x1d0] sm:$0xff]
    %v2079 = vld [vmem:[#allocation4 + $0x1d8] sm:$0xff]
    %v2080 = vld [vmem:[#allocation4 + $0x1e0] sm:$0xff]
    %v2081 = vld [vmem:[#allocation4 + $0x1e8] sm:$0xff]
    %v2082 = vld [vmem:[#allocation4 + $0x1f0] sm:$0xff]
    %v2083 = vld [vmem:[#allocation4 + $0x1f8] sm:$0xff]
    %v2085 = vlaneseq
    %v2086 = vshrl.u32 %v2085, 7
    %v2087 = vsub.s32 0, %v2086
    %v2088 = vrot.slane %v2015, %v2087
    %v2089 = vlaneseq
    %v2090 = vshrl.u32 %v2089, 7
    %v2091 = vsub.s32 1, %v2090
    %v2092 = vrot.slane %v2015, %v2091
    %v2159 = vunpack.c.l.b16 %v2020
    %v2160 = vunpack.c.h.b16 %v2020
    %v2161 = vunpack.c.l.b16 %v2021
    %v2162 = vunpack.c.h.b16 %v2021
    %v2163 = vunpack.c.l.b16 %v2022
    %v2164 = vunpack.c.h.b16 %v2022
    %v2165 = vunpack.c.l.b16 %v2023
    %v2166 = vunpack.c.h.b16 %v2023
    %v2167 = vunpack.c.l.b16 %v2024
    %v2168 = vunpack.c.h.b16 %v2024
    %v2169 = vunpack.c.l.b16 %v2025
    %v2170 = vunpack.c.h.b16 %v2025
    %v2171 = vunpack.c.l.b16 %v2026
    %v2172 = vunpack.c.h.b16 %v2026
    %v2173 = vunpack.c.l.b16 %v2027
    %v2174 = vunpack.c.h.b16 %v2027
    %v2175 = vunpack.c.l.b16 %v2028
    %v2176 = vunpack.c.h.b16 %v2028
    %v2177 = vunpack.c.l.b16 %v2029
    %v2178 = vunpack.c.h.b16 %v2029
    %v2179 = vunpack.c.l.b16 %v2030
    %v2180 = vunpack.c.h.b16 %v2030
    %v2181 = vunpack.c.l.b16 %v2031
    %v2182 = vunpack.c.h.b16 %v2031
    %v2183 = vunpack.c.l.b16 %v2032
    %v2184 = vunpack.c.h.b16 %v2032
    %v2185 = vunpack.c.l.b16 %v2033
    %v2186 = vunpack.c.h.b16 %v2033
    %v2187 = vunpack.c.l.b16 %v2034
    %v2188 = vunpack.c.h.b16 %v2034
    %v2189 = vunpack.c.l.b16 %v2035
    %v2190 = vunpack.c.h.b16 %v2035
    %v2191 = vunpack.c.l.b16 %v2036
    %v2192 = vunpack.c.h.b16 %v2036
    %v2193 = vunpack.c.l.b16 %v2037
    %v2194 = vunpack.c.h.b16 %v2037
    %v2195 = vunpack.c.l.b16 %v2038
    %v2196 = vunpack.c.h.b16 %v2038
    %v2197 = vunpack.c.l.b16 %v2039
    %v2198 = vunpack.c.h.b16 %v2039
    %v2199 = vunpack.c.l.b16 %v2040
    %v2200 = vunpack.c.h.b16 %v2040
    %v2201 = vunpack.c.l.b16 %v2041
    %v2202 = vunpack.c.h.b16 %v2041
    %v2203 = vunpack.c.l.b16 %v2042
    %v2204 = vunpack.c.h.b16 %v2042
    %v2205 = vunpack.c.l.b16 %v2043
    %v2206 = vunpack.c.h.b16 %v2043
    %v2207 = vunpack.c.l.b16 %v2044
    %v2208 = vunpack.c.h.b16 %v2044
    %v2209 = vunpack.c.l.b16 %v2045
    %v2210 = vunpack.c.h.b16 %v2045
    %v2211 = vunpack.c.l.b16 %v2046
    %v2212 = vunpack.c.h.b16 %v2046
    %v2213 = vunpack.c.l.b16 %v2047
    %v2214 = vunpack.c.h.b16 %v2047
    %v2215 = vunpack.c.l.b16 %v2048
    %v2216 = vunpack.c.h.b16 %v2048
    %v2217 = vunpack.c.l.b16 %v2049
    %v2218 = vunpack.c.h.b16 %v2049
    %v2219 = vunpack.c.l.b16 %v2050
    %v2220 = vunpack.c.h.b16 %v2050
    %v2221 = vunpack.c.l.b16 %v2051
    %v2222 = vunpack.c.h.b16 %v2051
    %v2223 = vunpack.c.l.b16 %v2052
    %v2224 = vunpack.c.h.b16 %v2052
    %v2225 = vunpack.c.l.b16 %v2053
    %v2226 = vunpack.c.h.b16 %v2053
    %v2227 = vunpack.c.l.b16 %v2054
    %v2228 = vunpack.c.h.b16 %v2054
    %v2229 = vunpack.c.l.b16 %v2055
    %v2230 = vunpack.c.h.b16 %v2055
    %v2231 = vunpack.c.l.b16 %v2056
    %v2232 = vunpack.c.h.b16 %v2056
    %v2233 = vunpack.c.l.b16 %v2057
    %v2234 = vunpack.c.h.b16 %v2057
    %v2235 = vunpack.c.l.b16 %v2058
    %v2236 = vunpack.c.h.b16 %v2058
    %v2237 = vunpack.c.l.b16 %v2059
    %v2238 = vunpack.c.h.b16 %v2059
    %v2239 = vunpack.c.l.b16 %v2060
    %v2240 = vunpack.c.h.b16 %v2060
    %v2241 = vunpack.c.l.b16 %v2061
    %v2242 = vunpack.c.h.b16 %v2061
    %v2243 = vunpack.c.l.b16 %v2062
    %v2244 = vunpack.c.h.b16 %v2062
    %v2245 = vunpack.c.l.b16 %v2063
    %v2246 = vunpack.c.h.b16 %v2063
    %v2247 = vunpack.c.l.b16 %v2064
    %v2248 = vunpack.c.h.b16 %v2064
    %v2249 = vunpack.c.l.b16 %v2065
    %v2250 = vunpack.c.h.b16 %v2065
    %v2251 = vunpack.c.l.b16 %v2066
    %v2252 = vunpack.c.h.b16 %v2066
    %v2253 = vunpack.c.l.b16 %v2067
    %v2254 = vunpack.c.h.b16 %v2067
    %v2255 = vunpack.c.l.b16 %v2068
    %v2256 = vunpack.c.h.b16 %v2068
    %v2257 = vunpack.c.l.b16 %v2069
    %v2258 = vunpack.c.h.b16 %v2069
    %v2259 = vunpack.c.l.b16 %v2070
    %v2260 = vunpack.c.h.b16 %v2070
    %v2261 = vunpack.c.l.b16 %v2071
    %v2262 = vunpack.c.h.b16 %v2071
    %v2263 = vunpack.c.l.b16 %v2072
    %v2264 = vunpack.c.h.b16 %v2072
    %v2265 = vunpack.c.l.b16 %v2073
    %v2266 = vunpack.c.h.b16 %v2073
    %v2267 = vunpack.c.l.b16 %v2074
    %v2268 = vunpack.c.h.b16 %v2074
    %v2269 = vunpack.c.l.b16 %v2075
    %v2270 = vunpack.c.h.b16 %v2075
    %v2271 = vunpack.c.l.b16 %v2076
    %v2272 = vunpack.c.h.b16 %v2076
    %v2273 = vunpack.c.l.b16 %v2077
    %v2274 = vunpack.c.h.b16 %v2077
    %v2275 = vunpack.c.l.b16 %v2078
    %v2276 = vunpack.c.h.b16 %v2078
    %v2277 = vunpack.c.l.b16 %v2079
    %v2278 = vunpack.c.h.b16 %v2079
    %v2279 = vunpack.c.l.b16 %v2080
    %v2280 = vunpack.c.h.b16 %v2080
    %v2281 = vunpack.c.l.b16 %v2081
    %v2282 = vunpack.c.h.b16 %v2081
    %v2283 = vunpack.c.l.b16 %v2082
    %v2284 = vunpack.c.h.b16 %v2082
    %v2285 = vunpack.c.l.b16 %v2083
    %v2286 = vunpack.c.h.b16 %v2083
    %v2287 = vpack.c.b16 %v2161, %v2159
    %v2288 = vpack.c.b16 %v2162, %v2160
    %v2289 = vpack.c.b16 %v2165, %v2163
    %v2290 = vpack.c.b16 %v2166, %v2164
    %v2291 = vpack.c.b16 %v2169, %v2167
    %v2292 = vpack.c.b16 %v2170, %v2168
    %v2293 = vpack.c.b16 %v2173, %v2171
    %v2294 = vpack.c.b16 %v2174, %v2172
    %v2295 = vpack.c.b16 %v2177, %v2175
    %v2296 = vpack.c.b16 %v2178, %v2176
    %v2297 = vpack.c.b16 %v2181, %v2179
    %v2298 = vpack.c.b16 %v2182, %v2180
    %v2299 = vpack.c.b16 %v2185, %v2183
    %v2300 = vpack.c.b16 %v2186, %v2184
    %v2301 = vpack.c.b16 %v2189, %v2187
    %v2302 = vpack.c.b16 %v2190, %v2188
    %v2303 = vpack.c.b16 %v2193, %v2191
    %v2304 = vpack.c.b16 %v2194, %v2192
    %v2305 = vpack.c.b16 %v2197, %v2195
    %v2306 = vpack.c.b16 %v2198, %v2196
    %v2307 = vpack.c.b16 %v2201, %v2199
    %v2308 = vpack.c.b16 %v2202, %v2200
    %v2309 = vpack.c.b16 %v2205, %v2203
    %v2310 = vpack.c.b16 %v2206, %v2204
    %v2311 = vpack.c.b16 %v2209, %v2207
    %v2312 = vpack.c.b16 %v2210, %v2208
    %v2313 = vpack.c.b16 %v2213, %v2211
    %v2314 = vpack.c.b16 %v2214, %v2212
    %v2315 = vpack.c.b16 %v2217, %v2215
    %v2316 = vpack.c.b16 %v2218, %v2216
    %v2317 = vpack.c.b16 %v2221, %v2219
    %v2318 = vpack.c.b16 %v2222, %v2220
    %v2319 = vpack.c.b16 %v2225, %v2223
    %v2320 = vpack.c.b16 %v2226, %v2224
    %v2321 = vpack.c.b16 %v2229, %v2227
    %v2322 = vpack.c.b16 %v2230, %v2228
    %v2323 = vpack.c.b16 %v2233, %v2231
    %v2324 = vpack.c.b16 %v2234, %v2232
    %v2325 = vpack.c.b16 %v2237, %v2235
    %v2326 = vpack.c.b16 %v2238, %v2236
    %v2327 = vpack.c.b16 %v2241, %v2239
    %v2328 = vpack.c.b16 %v2242, %v2240
    %v2329 = vpack.c.b16 %v2245, %v2243
    %v2330 = vpack.c.b16 %v2246, %v2244
    %v2331 = vpack.c.b16 %v2249, %v2247
    %v2332 = vpack.c.b16 %v2250, %v2248
    %v2333 = vpack.c.b16 %v2253, %v2251
    %v2334 = vpack.c.b16 %v2254, %v2252
    %v2335 = vpack.c.b16 %v2257, %v2255
    %v2336 = vpack.c.b16 %v2258, %v2256
    %v2337 = vpack.c.b16 %v2261, %v2259
    %v2338 = vpack.c.b16 %v2262, %v2260
    %v2339 = vpack.c.b16 %v2265, %v2263
    %v2340 = vpack.c.b16 %v2266, %v2264
    %v2341 = vpack.c.b16 %v2269, %v2267
    %v2342 = vpack.c.b16 %v2270, %v2268
    %v2343 = vpack.c.b16 %v2273, %v2271
    %v2344 = vpack.c.b16 %v2274, %v2272
    %v2345 = vpack.c.b16 %v2277, %v2275
    %v2346 = vpack.c.b16 %v2278, %v2276
    %v2347 = vpack.c.b16 %v2281, %v2279
    %v2348 = vpack.c.b16 %v2282, %v2280
    %v2349 = vpack.c.b16 %v2285, %v2283
    %v2350 = vpack.c.b16 %v2286, %v2284
    %2415 = vmatprep.subr.bf16.mxu0 %v2288
    %2416 = vmatpush1.bf16.msra.mxu0 %v2287
    %2417 = vmatprep.subr.bf16.mxu0 %v2290
    %2418 = vmatpush1.bf16.msra.mxu0 %v2289
    %2419 = vmatprep.subr.bf16.mxu0 %v2292
    %2420 = vmatpush1.bf16.msra.mxu0 %v2291
    %2421 = vmatprep.subr.bf16.mxu0 %v2294
    %2422 = vmatpush1.bf16.msra.mxu0 %v2293
    %2423 = vmatprep.subr.bf16.mxu0 %v2296
    %2424 = vmatpush1.bf16.msra.mxu0 %v2295
    %2425 = vmatprep.subr.bf16.mxu0 %v2298
    %2426 = vmatpush1.bf16.msra.mxu0 %v2297
    %2427 = vmatprep.subr.bf16.mxu0 %v2300
    %2428 = vmatpush1.bf16.msra.mxu0 %v2299
    %2429 = vmatprep.subr.bf16.mxu0 %v2302
    %2430 = vmatpush1.bf16.msra.mxu0 %v2301
    %2431 = vmatprep.subr.bf16.mxu0 %v2304
    %2432 = vmatpush1.bf16.msra.mxu0 %v2303
    %2433 = vmatprep.subr.bf16.mxu0 %v2306
    %2434 = vmatpush1.bf16.msra.mxu0 %v2305
    %2435 = vmatprep.subr.bf16.mxu0 %v2308
    %2436 = vmatpush1.bf16.msra.mxu0 %v2307
    %2437 = vmatprep.subr.bf16.mxu0 %v2310
    %2438 = vmatpush1.bf16.msra.mxu0 %v2309
    %2439 = vmatprep.subr.bf16.mxu0 %v2312
    %2440 = vmatpush1.bf16.msra.mxu0 %v2311
    %2441 = vmatprep.subr.bf16.mxu0 %v2314
    %2442 = vmatpush1.bf16.msra.mxu0 %v2313
    %2443 = vmatprep.subr.bf16.mxu0 %v2316
    %2444 = vmatpush1.bf16.msra.mxu0 %v2315
    %2445 = vmatprep.subr.bf16.mxu0 %v2318
    %2446 = vmatpush1.bf16.msra.mxu0 %v2317
    %2447 = vmatprep.mubr.bf16.mxu0 %v2017
    %2448 = vmatmul.mubr.bf16.gmra.mrb[0].mxu0 %v2016
    %v2449 = vpop.f32.mrb[0].mxu0
    %v2450 = vadd.f32 %v2088, %v2449
    %v2451 = vpop.f32.mrb[0].mxu0
    %v2452 = vadd.f32 %v2092, %v2451
    %v2453 = vpop.f32.mrb[0].mxu0
    %v2454 = vpop.f32.mrb[0].mxu0
    %2455 = vdwg.mxu0
    %2456 = vmatprep.subr.bf16.mxu0 %v2320
    %2457 = vmatpush1.bf16.msra.mxu0 %v2319
    %2458 = vmatprep.subr.bf16.mxu0 %v2322
    %2459 = vmatpush1.bf16.msra.mxu0 %v2321
    %2460 = vmatprep.subr.bf16.mxu0 %v2324
    %2461 = vmatpush1.bf16.msra.mxu0 %v2323
    %2462 = vmatprep.subr.bf16.mxu0 %v2326
    %2463 = vmatpush1.bf16.msra.mxu0 %v2325
    %2464 = vmatprep.subr.bf16.mxu0 %v2328
    %2465 = vmatpush1.bf16.msra.mxu0 %v2327
    %2466 = vmatprep.subr.bf16.mxu0 %v2330
    %2467 = vmatpush1.bf16.msra.mxu0 %v2329
    %2468 = vmatprep.subr.bf16.mxu0 %v2332
    %2469 = vmatpush1.bf16.msra.mxu0 %v2331
    %2470 = vmatprep.subr.bf16.mxu0 %v2334
    %2471 = vmatpush1.bf16.msra.mxu0 %v2333
    %2472 = vmatprep.subr.bf16.mxu0 %v2336
    %2473 = vmatpush1.bf16.msra.mxu0 %v2335
    %2474 = vmatprep.subr.bf16.mxu0 %v2338
    %2475 = vmatpush1.bf16.msra.mxu0 %v2337
    %2476 = vmatprep.subr.bf16.mxu0 %v2340
    %2477 = vmatpush1.bf16.msra.mxu0 %v2339
    %2478 = vmatprep.subr.bf16.mxu0 %v2342
    %2479 = vmatpush1.bf16.msra.mxu0 %v2341
    %2480 = vmatprep.subr.bf16.mxu0 %v2344
    %2481 = vmatpush1.bf16.msra.mxu0 %v2343
    %2482 = vmatprep.subr.bf16.mxu0 %v2346
    %2483 = vmatpush1.bf16.msra.mxu0 %v2345
    %2484 = vmatprep.subr.bf16.mxu0 %v2348
    %2485 = vmatpush1.bf16.msra.mxu0 %v2347
    %2486 = vmatprep.subr.bf16.mxu0 %v2350
    %2487 = vmatpush1.bf16.msra.mxu0 %v2349
    %2488 = vmatprep.mubr.bf16.mxu0 %v2019
    %2489 = vmatmul.mubr.bf16.gmra.mrb[0].mxu0 %v2018
    %v2490 = vpop.f32.mrb[0].mxu0
    %v2491 = vadd.f32 %v2450, %v2490
    %v2492 = vpop.f32.mrb[0].mxu0
    %v2493 = vadd.f32 %v2452, %v2492
    %v2494 = vpop.f32.mrb[0].mxu0
    %v2495 = vpop.f32.mrb[0].mxu0
    %2496 = vdwg.mxu0
    %v2497 = vmax.f32 %v2491, 0.0
    %v2498 = vmax.f32 %v2493, 0.0
    %v2499 = vld [vmem:[%s14 + $0x2] ss:$0 sm:$0xff]
    %v2500 = vpack.c.bf16 %v2497, %v2497
    %v2501 = vpack.c.bf16 %v2498, %v2498
    %v2502 = vld [vmem:[%s4] sm:$0xf]
    %v2503 = vld [vmem:[%s4 + $0x4] sm:$0xf]
    %v2504 = vld [vmem:[%s4 + $0x8] sm:$0xf]
    %v2505 = vld [vmem:[%s4 + $0xc] sm:$0xf]
    %v2506 = vld [vmem:[%s4 + $0x10] sm:$0xf]
    %v2507 = vld [vmem:[%s4 + $0x14] sm:$0xf]
    %v2508 = vld [vmem:[%s4 + $0x18] sm:$0xf]
    %v2509 = vld [vmem:[%s4 + $0x1c] sm:$0xf]
    %v2510 = vld [vmem:[%s4 + $0x20] sm:$0xf]
    %v2511 = vld [vmem:[%s4 + $0x24] sm:$0xf]
    %v2512 = vld [vmem:[%s4 + $0x28] sm:$0xf]
    %v2513 = vld [vmem:[%s4 + $0x2c] sm:$0xf]
    %v2514 = vld [vmem:[%s4 + $0x30] sm:$0xf]
    %v2515 = vld [vmem:[%s4 + $0x34] sm:$0xf]
    %v2516 = vld [vmem:[%s4 + $0x38] sm:$0xf]
    %v2517 = vld [vmem:[%s4 + $0x3c] sm:$0xf]
    %v2518 = vld [vmem:[%s4 + $0x40] sm:$0xf]
    %v2519 = vld [vmem:[%s4 + $0x44] sm:$0xf]
    %v2520 = vld [vmem:[%s4 + $0x48] sm:$0xf]
    %v2521 = vld [vmem:[%s4 + $0x4c] sm:$0xf]
    %v2522 = vld [vmem:[%s4 + $0x50] sm:$0xf]
    %v2523 = vld [vmem:[%s4 + $0x54] sm:$0xf]
    %v2524 = vld [vmem:[%s4 + $0x58] sm:$0xf]
    %v2525 = vld [vmem:[%s4 + $0x5c] sm:$0xf]
    %v2526 = vld [vmem:[%s4 + $0x60] sm:$0xf]
    %v2527 = vld [vmem:[%s4 + $0x64] sm:$0xf]
    %v2528 = vld [vmem:[%s4 + $0x68] sm:$0xf]
    %v2529 = vld [vmem:[%s4 + $0x6c] sm:$0xf]
    %v2530 = vld [vmem:[%s4 + $0x70] sm:$0xf]
    %v2531 = vld [vmem:[%s4 + $0x74] sm:$0xf]
    %v2532 = vld [vmem:[%s4 + $0x78] sm:$0xf]
    %v2533 = vld [vmem:[%s4 + $0x7c] sm:$0xf]
    %v2566 = vunpack.c.l.b16 %v2502
    %v2567 = vunpack.c.l.b16 %v2503
    %v2568 = vunpack.c.l.b16 %v2504
    %v2569 = vunpack.c.l.b16 %v2505
    %v2570 = vunpack.c.l.b16 %v2506
    %v2571 = vunpack.c.l.b16 %v2507
    %v2572 = vunpack.c.l.b16 %v2508
    %v2573 = vunpack.c.l.b16 %v2509
    %v2574 = vunpack.c.l.b16 %v2510
    %v2575 = vunpack.c.l.b16 %v2511
    %v2576 = vunpack.c.l.b16 %v2512
    %v2577 = vunpack.c.l.b16 %v2513
    %v2578 = vunpack.c.l.b16 %v2514
    %v2579 = vunpack.c.l.b16 %v2515
    %v2580 = vunpack.c.l.b16 %v2516
    %v2581 = vunpack.c.l.b16 %v2517
    %v2582 = vunpack.c.l.b16 %v2518
    %v2583 = vunpack.c.l.b16 %v2519
    %v2584 = vunpack.c.l.b16 %v2520
    %v2585 = vunpack.c.l.b16 %v2521
    %v2586 = vunpack.c.l.b16 %v2522
    %v2587 = vunpack.c.l.b16 %v2523
    %v2588 = vunpack.c.l.b16 %v2524
    %v2589 = vunpack.c.l.b16 %v2525
    %v2590 = vunpack.c.l.b16 %v2526
    %v2591 = vunpack.c.l.b16 %v2527
    %v2592 = vunpack.c.l.b16 %v2528
    %v2593 = vunpack.c.l.b16 %v2529
    %v2594 = vunpack.c.l.b16 %v2530
    %v2595 = vunpack.c.l.b16 %v2531
    %v2596 = vunpack.c.l.b16 %v2532
    %v2597 = vunpack.c.l.b16 %v2533
    %v2598 = vpack.c.b16 %v2567, %v2566
    %v2599 = vpack.c.b16 %v2569, %v2568
    %v2600 = vpack.c.b16 %v2571, %v2570
    %v2601 = vpack.c.b16 %v2573, %v2572
    %v2602 = vpack.c.b16 %v2575, %v2574
    %v2603 = vpack.c.b16 %v2577, %v2576
    %v2604 = vpack.c.b16 %v2579, %v2578
    %v2605 = vpack.c.b16 %v2581, %v2580
    %v2606 = vpack.c.b16 %v2583, %v2582
    %v2607 = vpack.c.b16 %v2585, %v2584
    %v2608 = vpack.c.b16 %v2587, %v2586
    %v2609 = vpack.c.b16 %v2589, %v2588
    %v2610 = vpack.c.b16 %v2591, %v2590
    %v2611 = vpack.c.b16 %v2593, %v2592
    %v2612 = vpack.c.b16 %v2595, %v2594
    %v2613 = vpack.c.b16 %v2597, %v2596
    %2630 = vmatprep.subr.bf16.mxu0 0
    %2631 = vmatpush1.bf16.msra.mxu0 %v2598
    %2632 = vmatprep.subr.bf16.mxu0 0
    %2633 = vmatpush1.bf16.msra.mxu0 %v2599
    %2634 = vmatprep.subr.bf16.mxu0 0
    %2635 = vmatpush1.bf16.msra.mxu0 %v2600
    %2636 = vmatprep.subr.bf16.mxu0 0
    %2637 = vmatpush1.bf16.msra.mxu0 %v2601
    %2638 = vmatprep.subr.bf16.mxu0 0
    %2639 = vmatpush1.bf16.msra.mxu0 %v2602
    %2640 = vmatprep.subr.bf16.mxu0 0
    %2641 = vmatpush1.bf16.msra.mxu0 %v2603
    %2642 = vmatprep.subr.bf16.mxu0 0
    %2643 = vmatpush1.bf16.msra.mxu0 %v2604
    %2644 = vmatprep.subr.bf16.mxu0 0
    %2645 = vmatpush1.bf16.msra.mxu0 %v2605
    %2646 = vmatprep.subr.bf16.mxu0 0
    %2647 = vmatpush1.bf16.msra.mxu0 %v2606
    %2648 = vmatprep.subr.bf16.mxu0 0
    %2649 = vmatpush1.bf16.msra.mxu0 %v2607
    %2650 = vmatprep.subr.bf16.mxu0 0
    %2651 = vmatpush1.bf16.msra.mxu0 %v2608
    %2652 = vmatprep.subr.bf16.mxu0 0
    %2653 = vmatpush1.bf16.msra.mxu0 %v2609
    %2654 = vmatprep.subr.bf16.mxu0 0
    %2655 = vmatpush1.bf16.msra.mxu0 %v2610
    %2656 = vmatprep.subr.bf16.mxu0 0
    %2657 = vmatpush1.bf16.msra.mxu0 %v2611
    %2658 = vmatprep.subr.bf16.mxu0 0
    %2659 = vmatpush1.bf16.msra.mxu0 %v2612
    %2660 = vmatprep.subr.bf16.mxu0 0
    %2661 = vmatpush1.bf16.msra.mxu0 %v2613
    %2662 = vmatprep.mubr.bf16.mxu0 %v2501
    %2663 = vmatmul.mubr.bf16.gmra.mrb[0].mxu0 %v2500
    %v2664 = vpop.f32.mrb[0].mxu0
    %v2665 = vadd.f32 %v2499, %v2664
    %v2666 = vpop.f32.mrb[0].mxu0
    %v2667 = vpop.f32.mrb[0].mxu0
    %v2668 = vpop.f32.mrb[0].mxu0
    %2669 = vdwg.mxu0
    %v2670 = vmax.f32 %v2665, 0.0
    %v2671 = vld [vmem:[%s14 + $0x3] ss:$0 sm:$0xff]
    %v2672 = vpack.c.bf16 %v2670, %v2670
    %v2673 = vld [vmem:[%s5] sm:$0xf]
    %v2674 = vld [vmem:[%s5 + $0x4] sm:$0xf]
    %v2675 = vld [vmem:[%s5 + $0x8] sm:$0xf]
    %v2676 = vld [vmem:[%s5 + $0xc] sm:$0xf]
    %v2677 = vld [vmem:[%s5 + $0x10] sm:$0xf]
    %v2678 = vld [vmem:[%s5 + $0x14] sm:$0xf]
    %v2679 = vld [vmem:[%s5 + $0x18] sm:$0xf]
    %v2680 = vld [vmem:[%s5 + $0x1c] sm:$0xf]
    %v2681 = vld [vmem:[%s5 + $0x20] sm:$0xf]
    %v2682 = vld [vmem:[%s5 + $0x24] sm:$0xf]
    %v2683 = vld [vmem:[%s5 + $0x28] sm:$0xf]
    %v2684 = vld [vmem:[%s5 + $0x2c] sm:$0xf]
    %v2685 = vld [vmem:[%s5 + $0x30] sm:$0xf]
    %v2686 = vld [vmem:[%s5 + $0x34] sm:$0xf]
    %v2687 = vld [vmem:[%s5 + $0x38] sm:$0xf]
    %v2688 = vld [vmem:[%s5 + $0x3c] sm:$0xf]
    %v2705 = vunpack.c.l.b16 %v2673
    %v2706 = vunpack.c.l.b16 %v2674
    %v2707 = vunpack.c.l.b16 %v2675
    %v2708 = vunpack.c.l.b16 %v2676
    %v2709 = vunpack.c.l.b16 %v2677
    %v2710 = vunpack.c.l.b16 %v2678
    %v2711 = vunpack.c.l.b16 %v2679
    %v2712 = vunpack.c.l.b16 %v2680
    %v2713 = vunpack.c.l.b16 %v2681
    %v2714 = vunpack.c.l.b16 %v2682
    %v2715 = vunpack.c.l.b16 %v2683
    %v2716 = vunpack.c.l.b16 %v2684
    %v2717 = vunpack.c.l.b16 %v2685
    %v2718 = vunpack.c.l.b16 %v2686
    %v2719 = vunpack.c.l.b16 %v2687
    %v2720 = vunpack.c.l.b16 %v2688
    %v2721 = vpack.c.b16 %v2706, %v2705
    %v2722 = vpack.c.b16 %v2708, %v2707
    %v2723 = vpack.c.b16 %v2710, %v2709
    %v2724 = vpack.c.b16 %v2712, %v2711
    %v2725 = vpack.c.b16 %v2714, %v2713
    %v2726 = vpack.c.b16 %v2716, %v2715
    %v2727 = vpack.c.b16 %v2718, %v2717
    %v2728 = vpack.c.b16 %v2720, %v2719
    %2737 = vmatprep.subr.bf16.mxu0 0
    %2738 = vmatpush1.bf16.msra.mxu0 %v2721
    %2739 = vmatprep.subr.bf16.mxu0 0
    %2740 = vmatpush1.bf16.msra.mxu0 %v2722
    %2741 = vmatprep.subr.bf16.mxu0 0
    %2742 = vmatpush1.bf16.msra.mxu0 %v2723
    %2743 = vmatprep.subr.bf16.mxu0 0
    %2744 = vmatpush1.bf16.msra.mxu0 %v2724
    %2745 = vmatprep.subr.bf16.mxu0 0
    %2746 = vmatpush1.bf16.msra.mxu0 %v2725
    %2747 = vmatprep.subr.bf16.mxu0 0
    %2748 = vmatpush1.bf16.msra.mxu0 %v2726
    %2749 = vmatprep.subr.bf16.mxu0 0
    %2750 = vmatpush1.bf16.msra.mxu0 %v2727
    %2751 = vmatprep.subr.bf16.mxu0 0
    %2752 = vmatpush1.bf16.msra.mxu0 %v2728
    %2753 = vmatprep.subr.bf16.mxu0 0
    %2754 = vmatpush1.bf16.msra.mxu0 0
    %2755 = vmatprep.subr.bf16.mxu0 0
    %2756 = vmatpush1.bf16.msra.mxu0 0
    %2757 = vmatprep.subr.bf16.mxu0 0
    %2758 = vmatpush1.bf16.msra.mxu0 0
    %2759 = vmatprep.subr.bf16.mxu0 0
    %2760 = vmatpush1.bf16.msra.mxu0 0
    %2761 = vmatprep.subr.bf16.mxu0 0
    %2762 = vmatpush1.bf16.msra.mxu0 0
    %2763 = vmatprep.subr.bf16.mxu0 0
    %2764 = vmatpush1.bf16.msra.mxu0 0
    %2765 = vmatprep.subr.bf16.mxu0 0
    %2766 = vmatpush1.bf16.msra.mxu0 0
    %2767 = vmatprep.subr.bf16.mxu0 0
    %2768 = vmatpush1.bf16.msra.mxu0 0
    %2769 = vmatprep.mubr.bf16.mxu0 0
    %2770 = vmatmul.mubr.bf16.gmra.mrb[0].mxu0 %v2672
    %v2771 = vpop.f32.mrb[0].mxu0
    %v2772 = vadd.f32 %v2671, %v2771
    %v2773 = vpop.f32.mrb[0].mxu0
    %v2774 = vpop.f32.mrb[0].mxu0
    %v2775 = vpop.f32.mrb[0].mxu0
    %2776 = vdwg.mxu0
    %v2777 = vmax.f32 %v2772, 0.0
    %v2778 = vld [vmem:[%s14 + $0x4] ss:$0 sm:$0xff]
    %v2779 = vpack.c.bf16 %v2777, %v2777
    %v2780 = vld [vmem:[%s6] sm:$0xf]
    %v2781 = vld [vmem:[%s6 + $0x4] sm:$0xf]
    %v2782 = vld [vmem:[%s6 + $0x8] sm:$0xf]
    %v2783 = vld [vmem:[%s6 + $0xc] sm:$0xf]
    %v2784 = vld [vmem:[%s6 + $0x10] sm:$0xf]
    %v2785 = vld [vmem:[%s6 + $0x14] sm:$0xf]
    %v2786 = vld [vmem:[%s6 + $0x18] sm:$0xf]
    %v2787 = vld [vmem:[%s6 + $0x1c] sm:$0xf]
    %v2796 = vunpack.c.l.b16 %v2780
    %v2797 = vunpack.c.l.b16 %v2781
    %v2798 = vunpack.c.l.b16 %v2782
    %v2799 = vunpack.c.l.b16 %v2783
    %v2800 = vunpack.c.l.b16 %v2784
    %v2801 = vunpack.c.l.b16 %v2785
    %v2802 = vunpack.c.l.b16 %v2786
    %v2803 = vunpack.c.l.b16 %v2787
    %v2804 = vpack.c.b16 %v2797, %v2796
    %v2805 = vpack.c.b16 %v2799, %v2798
    %v2806 = vpack.c.b16 %v2801, %v2800
    %v2807 = vpack.c.b16 %v2803, %v2802
    %vm2812 = vcmask 523264
    %v2814 = vsel %vm2812, %v2779, 0
    %2816 = vmatprep.subr.bf16.mxu0 0
    %2817 = vmatpush1.bf16.msra.mxu0 %v2804
    %2818 = vmatprep.subr.bf16.mxu0 0
    %2819 = vmatpush1.bf16.msra.mxu0 %v2805
    %2820 = vmatprep.subr.bf16.mxu0 0
    %2821 = vmatpush1.bf16.msra.mxu0 %v2806
    %2822 = vmatprep.subr.bf16.mxu0 0
    %2823 = vmatpush1.bf16.msra.mxu0 %v2807
    %2824 = vmatprep.subr.bf16.mxu0 0
    %2825 = vmatpush1.bf16.msra.mxu0 0
    %2826 = vmatprep.subr.bf16.mxu0 0
    %2827 = vmatpush1.bf16.msra.mxu0 0
    %2828 = vmatprep.subr.bf16.mxu0 0
    %2829 = vmatpush1.bf16.msra.mxu0 0
    %2830 = vmatprep.subr.bf16.mxu0 0
    %2831 = vmatpush1.bf16.msra.mxu0 0
    %2832 = vmatprep.subr.bf16.mxu0 0
    %2833 = vmatpush1.bf16.msra.mxu0 0
    %2834 = vmatprep.subr.bf16.mxu0 0
    %2835 = vmatpush1.bf16.msra.mxu0 0
    %2836 = vmatprep.subr.bf16.mxu0 0
    %2837 = vmatpush1.bf16.msra.mxu0 0
    %2838 = vmatprep.subr.bf16.mxu0 0
    %2839 = vmatpush1.bf16.msra.mxu0 0
    %2840 = vmatprep.subr.bf16.mxu0 0
    %2841 = vmatpush1.bf16.msra.mxu0 0
    %2842 = vmatprep.subr.bf16.mxu0 0
    %2843 = vmatpush1.bf16.msra.mxu0 0
    %2844 = vmatprep.subr.bf16.mxu0 0
    %2845 = vmatpush1.bf16.msra.mxu0 0
    %2846 = vmatprep.subr.bf16.mxu0 0
    %2847 = vmatpush1.bf16.msra.mxu0 0
    %2848 = vmatprep.mubr.bf16.mxu0 0
    %2849 = vmatmul.mubr.bf16.gmra.mrb[0].mxu0 %v2814
    %v2850 = vpop.f32.mrb[0].mxu0
    %v2851 = vadd.f32 %v2778, %v2850
    %v2852 = vpop.f32.mrb[0].mxu0
    %v2853 = vpop.f32.mrb[0].mxu0
    %v2854 = vpop.f32.mrb[0].mxu0
    %2855 = vdwg.mxu0
    %v2856 = vmax.f32 %v2851, 0.0
    %s2857 = scalar_lea.vmem %s14, 5
    %v2858 = vld [vmem:[%s2857] ss:$8 sm:$0x3]
    %v2859 = vpack.c.bf16 %v2856, %v2856
    %v2860 = vld [vmem:[%s7] sm:$0xff]
    %v2861 = vld [vmem:[%s7 + $0x8] sm:$0xff]
    %v2862 = vld [vmem:[%s7 + $0x10] sm:$0xff]
    %v2863 = vld [vmem:[%s7 + $0x18] sm:$0xff]
    %v2865 = vlaneseq
    %v2866 = vshrl.u32 %v2865, 7
    %v2867 = vsub.s32 0, %v2866
    %v2868 = vrot.slane %v2858, %v2867
    %v2869 = vlaneseq
    %v2870 = vshrl.u32 %v2869, 7
    %v2871 = vsub.s32 1, %v2870
    %v2872 = vrot.slane %v2858, %v2871
    %v2879 = vunpack.c.l.b16 %v2860
    %v2880 = vunpack.c.h.b16 %v2860
    %v2881 = vunpack.c.l.b16 %v2861
    %v2882 = vunpack.c.h.b16 %v2861
    %v2883 = vunpack.c.l.b16 %v2862
    %v2884 = vunpack.c.h.b16 %v2862
    %v2885 = vunpack.c.l.b16 %v2863
    %v2886 = vunpack.c.h.b16 %v2863
    %v2887 = vpack.c.b16 %v2881, %v2879
    %v2888 = vpack.c.b16 %v2882, %v2880
    %v2889 = vpack.c.b16 %v2885, %v2883
    %v2890 = vpack.c.b16 %v2886, %v2884
    %vm2895 = vcmask 261120
    %v2897 = vsel %vm2895, %v2859, 0
    %2899 = vmatprep.subr.bf16.mxu0 %v2888
    %2900 = vmatpush1.bf16.msra.mxu0 %v2887
    %2901 = vmatprep.subr.bf16.mxu0 %v2890
    %2902 = vmatpush1.bf16.msra.mxu0 %v2889
    %2903 = vmatprep.subr.bf16.mxu0 0
    %2904 = vmatpush1.bf16.msra.mxu0 0
    %2905 = vmatprep.subr.bf16.mxu0 0
    %2906 = vmatpush1.bf16.msra.mxu0 0
    %2907 = vmatprep.subr.bf16.mxu0 0
    %2908 = vmatpush1.bf16.msra.mxu0 0
    %2909 = vmatprep.subr.bf16.mxu0 0
    %2910 = vmatpush1.bf16.msra.mxu0 0
    %2911 = vmatprep.subr.bf16.mxu0 0
    %2912 = vmatpush1.bf16.msra.mxu0 0
    %2913 = vmatprep.subr.bf16.mxu0 0
    %2914 = vmatpush1.bf16.msra.mxu0 0
    %2915 = vmatprep.subr.bf16.mxu0 0
    %2916 = vmatpush1.bf16.msra.mxu0 0
    %2917 = vmatprep.subr.bf16.mxu0 0
    %2918 = vmatpush1.bf16.msra.mxu0 0
    %2919 = vmatprep.subr.bf16.mxu0 0
    %2920 = vmatpush1.bf16.msra.mxu0 0
    %2921 = vmatprep.subr.bf16.mxu0 0
    %2922 = vmatpush1.bf16.msra.mxu0 0
    %2923 = vmatprep.subr.bf16.mxu0 0
    %2924 = vmatpush1.bf16.msra.mxu0 0
    %2925 = vmatprep.subr.bf16.mxu0 0
    %2926 = vmatpush1.bf16.msra.mxu0 0
    %2927 = vmatprep.subr.bf16.mxu0 0
    %2928 = vmatpush1.bf16.msra.mxu0 0
    %2929 = vmatprep.subr.bf16.mxu0 0
    %2930 = vmatpush1.bf16.msra.mxu0 0
    %2931 = vmatprep.mubr.bf16.mxu0 0
    %2932 = vmatmul.mubr.bf16.gmra.mrb[0].mxu0 %v2897
    %v2933 = vpop.f32.mrb[0].mxu0
    %v2934 = vadd.f32 %v2868, %v2933
    %v2935 = vpop.f32.mrb[0].mxu0
    %v2936 = vadd.f32 %v2872, %v2935
    %v2937 = vpop.f32.mrb[0].mxu0
    %v2938 = vpop.f32.mrb[0].mxu0
    %2939 = vdwg.mxu0
    %2940 = vst [vmem:[%s16] sm:$0xff] %v2934
    %2941 = vst [vmem:[%s16 + $0x8] sm:$0xff] %v2936
    %v2942 = vld [vmem:[%s1] sm:$0xff]
    %v2943 = vmul.f32 %v2936, 0.5
    %v2944 = vmul.f32 %v2943, 1.442695
    %v2945 = vpow.pop %v2944
    %v2946 = vmul.f32 %v2942, %v2945
    %v2947 = vadd.f32 %v2934, %v2946
    %v2948 = vld [vmem:[%s14 + $0x6] ss:$0 sm:$0xff]
    %v2949 = vpack.c.bf16 %v2947, %v2947
    %v2950 = vld [vmem:[%s8] sm:$0xf]
    %v2951 = vld [vmem:[%s8 + $0x4] sm:$0xf]
    %v2952 = vld [vmem:[%s8 + $0x8] sm:$0xf]
    %v2953 = vld [vmem:[%s8 + $0xc] sm:$0xf]
    %v2954 = vld [vmem:[%s8 + $0x10] sm:$0xf]
    %v2955 = vld [vmem:[%s8 + $0x14] sm:$0xf]
    %v2956 = vld [vmem:[%s8 + $0x18] sm:$0xf]
    %v2957 = vld [vmem:[%s8 + $0x1c] sm:$0xf]
    %v2958 = vld [vmem:[%s8 + $0x20] sm:$0xf]
    %v2959 = vld [vmem:[%s8 + $0x24] sm:$0xf]
    %v2960 = vld [vmem:[%s8 + $0x28] sm:$0xf]
    %v2961 = vld [vmem:[%s8 + $0x2c] sm:$0xf]
    %v2962 = vld [vmem:[%s8 + $0x30] sm:$0xf]
    %v2963 = vld [vmem:[%s8 + $0x34] sm:$0xf]
    %v2964 = vld [vmem:[%s8 + $0x38] sm:$0xf]
    %v2965 = vld [vmem:[%s8 + $0x3c] sm:$0xf]
    %v2982 = vunpack.c.l.b16 %v2950
    %v2983 = vunpack.c.l.b16 %v2951
    %v2984 = vunpack.c.l.b16 %v2952
    %v2985 = vunpack.c.l.b16 %v2953
    %v2986 = vunpack.c.l.b16 %v2954
    %v2987 = vunpack.c.l.b16 %v2955
    %v2988 = vunpack.c.l.b16 %v2956
    %v2989 = vunpack.c.l.b16 %v2957
    %v2990 = vunpack.c.l.b16 %v2958
    %v2991 = vunpack.c.l.b16 %v2959
    %v2992 = vunpack.c.l.b16 %v2960
    %v2993 = vunpack.c.l.b16 %v2961
    %v2994 = vunpack.c.l.b16 %v2962
    %v2995 = vunpack.c.l.b16 %v2963
    %v2996 = vunpack.c.l.b16 %v2964
    %v2997 = vunpack.c.l.b16 %v2965
    %v2998 = vpack.c.b16 %v2983, %v2982
    %v2999 = vpack.c.b16 %v2985, %v2984
    %v3000 = vpack.c.b16 %v2987, %v2986
    %v3001 = vpack.c.b16 %v2989, %v2988
    %v3002 = vpack.c.b16 %v2991, %v2990
    %v3003 = vpack.c.b16 %v2993, %v2992
    %v3004 = vpack.c.b16 %v2995, %v2994
    %v3005 = vpack.c.b16 %v2997, %v2996
    %3014 = vmatprep.subr.bf16.mxu0 0
    %3015 = vmatpush1.bf16.msra.mxu0 %v2998
    %3016 = vmatprep.subr.bf16.mxu0 0
    %3017 = vmatpush1.bf16.msra.mxu0 %v2999
    %3018 = vmatprep.subr.bf16.mxu0 0
    %3019 = vmatpush1.bf16.msra.mxu0 %v3000
    %3020 = vmatprep.subr.bf16.mxu0 0
    %3021 = vmatpush1.bf16.msra.mxu0 %v3001
    %3022 = vmatprep.subr.bf16.mxu0 0
    %3023 = vmatpush1.bf16.msra.mxu0 %v3002
    %3024 = vmatprep.subr.bf16.mxu0 0
    %3025 = vmatpush1.bf16.msra.mxu0 %v3003
    %3026 = vmatprep.subr.bf16.mxu0 0
    %3027 = vmatpush1.bf16.msra.mxu0 %v3004
    %3028 = vmatprep.subr.bf16.mxu0 0
    %3029 = vmatpush1.bf16.msra.mxu0 %v3005
    %3030 = vmatprep.subr.bf16.mxu0 0
    %3031 = vmatpush1.bf16.msra.mxu0 0
    %3032 = vmatprep.subr.bf16.mxu0 0
    %3033 = vmatpush1.bf16.msra.mxu0 0
    %3034 = vmatprep.subr.bf16.mxu0 0
    %3035 = vmatpush1.bf16.msra.mxu0 0
    %3036 = vmatprep.subr.bf16.mxu0 0
    %3037 = vmatpush1.bf16.msra.mxu0 0
    %3038 = vmatprep.subr.bf16.mxu0 0
    %3039 = vmatpush1.bf16.msra.mxu0 0
    %3040 = vmatprep.subr.bf16.mxu0 0
    %3041 = vmatpush1.bf16.msra.mxu0 0
    %3042 = vmatprep.subr.bf16.mxu0 0
    %3043 = vmatpush1.bf16.msra.mxu0 0
    %3044 = vmatprep.subr.bf16.mxu0 0
    %3045 = vmatpush1.bf16.msra.mxu0 0
    %3046 = vmatprep.mubr.bf16.mxu0 0
    %3047 = vmatmul.mubr.bf16.gmra.mrb[0].mxu0 %v2949
    %v3048 = vpop.f32.mrb[0].mxu0
    %v3049 = vadd.f32 %v2948, %v3048
    %v3050 = vpop.f32.mrb[0].mxu0
    %v3051 = vpop.f32.mrb[0].mxu0
    %v3052 = vpop.f32.mrb[0].mxu0
    %3053 = vdwg.mxu0
    %v3054 = vmax.f32 %v3049, 0.0
    %v3055 = vld [vmem:[%s14 + $0x7] ss:$0 sm:$0xff]
    %v3056 = vpack.c.bf16 %v3054, %v3054
    %v3057 = vld [vmem:[%s9] sm:$0xf]
    %v3058 = vld [vmem:[%s9 + $0x4] sm:$0xf]
    %v3059 = vld [vmem:[%s9 + $0x8] sm:$0xf]
    %v3060 = vld [vmem:[%s9 + $0xc] sm:$0xf]
    %v3065 = vunpack.c.l.b16 %v3057
    %v3066 = vunpack.c.l.b16 %v3058
    %v3067 = vunpack.c.l.b16 %v3059
    %v3068 = vunpack.c.l.b16 %v3060
    %v3069 = vpack.c.b16 %v3066, %v3065
    %v3070 = vpack.c.b16 %v3068, %v3067
    %v3074 = vsel %vm2895, %v3056, 0
    %3076 = vmatprep.subr.bf16.mxu0 0
    %3077 = vmatpush1.bf16.msra.mxu0 %v3069
    %3078 = vmatprep.subr.bf16.mxu0 0
    %3079 = vmatpush1.bf16.msra.mxu0 %v3070
    %3080 = vmatprep.subr.bf16.mxu0 0
    %3081 = vmatpush1.bf16.msra.mxu0 0
    %3082 = vmatprep.subr.bf16.mxu0 0
    %3083 = vmatpush1.bf16.msra.mxu0 0
    %3084 = vmatprep.subr.bf16.mxu0 0
    %3085 = vmatpush1.bf16.msra.mxu0 0
    %3086 = vmatprep.subr.bf16.mxu0 0
    %3087 = vmatpush1.bf16.msra.mxu0 0
    %3088 = vmatprep.subr.bf16.mxu0 0
    %3089 = vmatpush1.bf16.msra.mxu0 0
    %3090 = vmatprep.subr.bf16.mxu0 0
    %3091 = vmatpush1.bf16.msra.mxu0 0
    %3092 = vmatprep.subr.bf16.mxu0 0
    %3093 = vmatpush1.bf16.msra.mxu0 0
    %3094 = vmatprep.subr.bf16.mxu0 0
    %3095 = vmatpush1.bf16.msra.mxu0 0
    %3096 = vmatprep.subr.bf16.mxu0 0
    %3097 = vmatpush1.bf16.msra.mxu0 0
    %3098 = vmatprep.subr.bf16.mxu0 0
    %3099 = vmatpush1.bf16.msra.mxu0 0
    %3100 = vmatprep.subr.bf16.mxu0 0
    %3101 = vmatpush1.bf16.msra.mxu0 0
    %3102 = vmatprep.subr.bf16.mxu0 0
    %3103 = vmatpush1.bf16.msra.mxu0 0
    %3104 = vmatprep.subr.bf16.mxu0 0
    %3105 = vmatpush1.bf16.msra.mxu0 0
    %3106 = vmatprep.subr.bf16.mxu0 0
    %3107 = vmatpush1.bf16.msra.mxu0 0
    %3108 = vmatprep.mubr.bf16.mxu0 0
    %3109 = vmatmul.mubr.bf16.gmra.mrb[0].mxu0 %v3074
    %v3110 = vpop.f32.mrb[0].mxu0
    %v3111 = vadd.f32 %v3055, %v3110
    %v3112 = vpop.f32.mrb[0].mxu0
    %v3113 = vpop.f32.mrb[0].mxu0
    %v3114 = vpop.f32.mrb[0].mxu0
    %3115 = vdwg.mxu0
    %v3116 = vmax.f32 %v3111, 0.0
    %v3117 = vld [vmem:[%s14 + $0x40] ss:$0 sm:$0xff]
    %v3118 = vpack.c.bf16 %v3116, %v3116
    %v3119 = vld [vmem:[%s10] sm:$0xf]
    %v3120 = vld [vmem:[%s10 + $0x4] sm:$0xf]
    %v3121 = vld [vmem:[%s10 + $0x8] sm:$0xf]
    %v3122 = vld [vmem:[%s10 + $0xc] sm:$0xf]
    %v3123 = vld [vmem:[%s10 + $0x10] sm:$0xf]
    %v3124 = vld [vmem:[%s10 + $0x14] sm:$0xf]
    %v3125 = vld [vmem:[%s10 + $0x18] sm:$0xf]
    %v3126 = vld [vmem:[%s10 + $0x1c] sm:$0xf]
    %v3135 = vunpack.c.l.b16 %v3119
    %v3136 = vunpack.c.l.b16 %v3120
    %v3137 = vunpack.c.l.b16 %v3121
    %v3138 = vunpack.c.l.b16 %v3122
    %v3139 = vunpack.c.l.b16 %v3123
    %v3140 = vunpack.c.l.b16 %v3124
    %v3141 = vunpack.c.l.b16 %v3125
    %v3142 = vunpack.c.l.b16 %v3126
    %v3143 = vpack.c.b16 %v3136, %v3135
    %v3144 = vpack.c.b16 %v3138, %v3137
    %v3145 = vpack.c.b16 %v3140, %v3139
    %v3146 = vpack.c.b16 %v3142, %v3141
    %v3152 = vsel %vm2812, %v3118, 0
    %3154 = vmatprep.subr.bf16.mxu0 0
    %3155 = vmatpush1.bf16.msra.mxu0 %v3143
    %3156 = vmatprep.subr.bf16.mxu0 0
    %3157 = vmatpush1.bf16.msra.mxu0 %v3144
    %3158 = vmatprep.subr.bf16.mxu0 0
    %3159 = vmatpush1.bf16.msra.mxu0 %v3145
    %3160 = vmatprep.subr.bf16.mxu0 0
    %3161 = vmatpush1.bf16.msra.mxu0 %v3146
    %3162 = vmatprep.subr.bf16.mxu0 0
    %3163 = vmatpush1.bf16.msra.mxu0 0
    %3164 = vmatprep.subr.bf16.mxu0 0
    %3165 = vmatpush1.bf16.msra.mxu0 0
    %3166 = vmatprep.subr.bf16.mxu0 0
    %3167 = vmatpush1.bf16.msra.mxu0 0
    %3168 = vmatprep.subr.bf16.mxu0 0
    %3169 = vmatpush1.bf16.msra.mxu0 0
    %3170 = vmatprep.subr.bf16.mxu0 0
    %3171 = vmatpush1.bf16.msra.mxu0 0
    %3172 = vmatprep.subr.bf16.mxu0 0
    %3173 = vmatpush1.bf16.msra.mxu0 0
    %3174 = vmatprep.subr.bf16.mxu0 0
    %3175 = vmatpush1.bf16.msra.mxu0 0
    %3176 = vmatprep.subr.bf16.mxu0 0
    %3177 = vmatpush1.bf16.msra.mxu0 0
    %3178 = vmatprep.subr.bf16.mxu0 0
    %3179 = vmatpush1.bf16.msra.mxu0 0
    %3180 = vmatprep.subr.bf16.mxu0 0
    %3181 = vmatpush1.bf16.msra.mxu0 0
    %3182 = vmatprep.subr.bf16.mxu0 0
    %3183 = vmatpush1.bf16.msra.mxu0 0
    %3184 = vmatprep.subr.bf16.mxu0 0
    %3185 = vmatpush1.bf16.msra.mxu0 0
    %3186 = vmatprep.mubr.bf16.mxu0 0
    %3187 = vmatmul.mubr.bf16.gmra.mrb[0].mxu0 %v3152
    %v3188 = vpop.f32.mrb[0].mxu0
    %v3189 = vadd.f32 %v3117, %v3188
    %v3190 = vpop.f32.mrb[0].mxu0
    %v3191 = vpop.f32.mrb[0].mxu0
    %v3192 = vpop.f32.mrb[0].mxu0
    %3193 = vdwg.mxu0
    %v3194 = vmax.f32 %v3189, 0.0
    %s3195 = scalar_lea.vmem %s14, 65
    %v3196 = vld [vmem:[%s3195] ss:$8 sm:$0x3]
    %v3197 = vpack.c.bf16 %v3194, %v3194
    %v3198 = vld [vmem:[%s11] sm:$0xff]
    %v3199 = vld [vmem:[%s11 + $0x8] sm:$0xff]
    %v3200 = vld [vmem:[%s11 + $0x10] sm:$0xff]
    %v3201 = vld [vmem:[%s11 + $0x18] sm:$0xff]
    %v3202 = vld [vmem:[%s11 + $0x20] sm:$0xff]
    %v3203 = vld [vmem:[%s11 + $0x28] sm:$0xff]
    %v3204 = vld [vmem:[%s11 + $0x30] sm:$0xff]
    %v3205 = vld [vmem:[%s11 + $0x38] sm:$0xff]
    %v3206 = vld [vmem:[%s11 + $0x40] sm:$0xff]
    %v3207 = vld [vmem:[%s11 + $0x48] sm:$0xff]
    %v3208 = vld [vmem:[%s11 + $0x50] sm:$0xff]
    %v3209 = vld [vmem:[%s11 + $0x58] sm:$0xff]
    %v3210 = vld [vmem:[%s11 + $0x60] sm:$0xff]
    %v3211 = vld [vmem:[%s11 + $0x68] sm:$0xff]
    %v3212 = vld [vmem:[%s11 + $0x70] sm:$0xff]
    %v3213 = vld [vmem:[%s11 + $0x78] sm:$0xff]
    %v3215 = vlaneseq
    %v3216 = vshrl.u32 %v3215, 7
    %v3217 = vsub.s32 0, %v3216
    %v3218 = vrot.slane %v3196, %v3217
    %v3219 = vlaneseq
    %v3220 = vshrl.u32 %v3219, 7
    %v3221 = vsub.s32 1, %v3220
    %v3222 = vrot.slane %v3196, %v3221
    %v3241 = vunpack.c.l.b16 %v3198
    %v3242 = vunpack.c.h.b16 %v3198
    %v3243 = vunpack.c.l.b16 %v3199
    %v3244 = vunpack.c.h.b16 %v3199
    %v3245 = vunpack.c.l.b16 %v3200
    %v3246 = vunpack.c.h.b16 %v3200
    %v3247 = vunpack.c.l.b16 %v3201
    %v3248 = vunpack.c.h.b16 %v3201
    %v3249 = vunpack.c.l.b16 %v3202
    %v3250 = vunpack.c.h.b16 %v3202
    %v3251 = vunpack.c.l.b16 %v3203
    %v3252 = vunpack.c.h.b16 %v3203
    %v3253 = vunpack.c.l.b16 %v3204
    %v3254 = vunpack.c.h.b16 %v3204
    %v3255 = vunpack.c.l.b16 %v3205
    %v3256 = vunpack.c.h.b16 %v3205
    %v3257 = vunpack.c.l.b16 %v3206
    %v3258 = vunpack.c.h.b16 %v3206
    %v3259 = vunpack.c.l.b16 %v3207
    %v3260 = vunpack.c.h.b16 %v3207
    %v3261 = vunpack.c.l.b16 %v3208
    %v3262 = vunpack.c.h.b16 %v3208
    %v3263 = vunpack.c.l.b16 %v3209
    %v3264 = vunpack.c.h.b16 %v3209
    %v3265 = vunpack.c.l.b16 %v3210
    %v3266 = vunpack.c.h.b16 %v3210
    %v3267 = vunpack.c.l.b16 %v3211
    %v3268 = vunpack.c.h.b16 %v3211
    %v3269 = vunpack.c.l.b16 %v3212
    %v3270 = vunpack.c.h.b16 %v3212
    %v3271 = vunpack.c.l.b16 %v3213
    %v3272 = vunpack.c.h.b16 %v3213
    %v3273 = vpack.c.b16 %v3243, %v3241
    %v3274 = vpack.c.b16 %v3244, %v3242
    %v3275 = vpack.c.b16 %v3247, %v3245
    %v3276 = vpack.c.b16 %v3248, %v3246
    %v3277 = vpack.c.b16 %v3251, %v3249
    %v3278 = vpack.c.b16 %v3252, %v3250
    %v3279 = vpack.c.b16 %v3255, %v3253
    %v3280 = vpack.c.b16 %v3256, %v3254
    %v3281 = vpack.c.b16 %v3259, %v3257
    %v3282 = vpack.c.b16 %v3260, %v3258
    %v3283 = vpack.c.b16 %v3263, %v3261
    %v3284 = vpack.c.b16 %v3264, %v3262
    %v3285 = vpack.c.b16 %v3267, %v3265
    %v3286 = vpack.c.b16 %v3268, %v3266
    %v3287 = vpack.c.b16 %v3271, %v3269
    %v3288 = vpack.c.b16 %v3272, %v3270
    %3305 = vmatprep.subr.bf16.mxu0 %v3274
    %3306 = vmatpush1.bf16.msra.mxu0 %v3273
    %3307 = vmatprep.subr.bf16.mxu0 %v3276
    %3308 = vmatpush1.bf16.msra.mxu0 %v3275
    %3309 = vmatprep.subr.bf16.mxu0 %v3278
    %3310 = vmatpush1.bf16.msra.mxu0 %v3277
    %3311 = vmatprep.subr.bf16.mxu0 %v3280
    %3312 = vmatpush1.bf16.msra.mxu0 %v3279
    %3313 = vmatprep.subr.bf16.mxu0 %v3282
    %3314 = vmatpush1.bf16.msra.mxu0 %v3281
    %3315 = vmatprep.subr.bf16.mxu0 %v3284
    %3316 = vmatpush1.bf16.msra.mxu0 %v3283
    %3317 = vmatprep.subr.bf16.mxu0 %v3286
    %3318 = vmatpush1.bf16.msra.mxu0 %v3285
    %3319 = vmatprep.subr.bf16.mxu0 %v3288
    %3320 = vmatpush1.bf16.msra.mxu0 %v3287
    %3321 = vmatprep.subr.bf16.mxu0 0
    %3322 = vmatpush1.bf16.msra.mxu0 0
    %3323 = vmatprep.subr.bf16.mxu0 0
    %3324 = vmatpush1.bf16.msra.mxu0 0
    %3325 = vmatprep.subr.bf16.mxu0 0
    %3326 = vmatpush1.bf16.msra.mxu0 0
    %3327 = vmatprep.subr.bf16.mxu0 0
    %3328 = vmatpush1.bf16.msra.mxu0 0
    %3329 = vmatprep.subr.bf16.mxu0 0
    %3330 = vmatpush1.bf16.msra.mxu0 0
    %3331 = vmatprep.subr.bf16.mxu0 0
    %3332 = vmatpush1.bf16.msra.mxu0 0
    %3333 = vmatprep.subr.bf16.mxu0 0
    %3334 = vmatpush1.bf16.msra.mxu0 0
    %3335 = vmatprep.subr.bf16.mxu0 0
    %3336 = vmatpush1.bf16.msra.mxu0 0
    %3337 = vmatprep.mubr.bf16.mxu0 0
    %3338 = vmatmul.mubr.bf16.gmra.mrb[0].mxu0 %v3197
    %v3339 = vpop.f32.mrb[0].mxu0
    %v3340 = vadd.f32 %v3218, %v3339
    %v3341 = vpop.f32.mrb[0].mxu0
    %v3342 = vadd.f32 %v3222, %v3341
    %v3343 = vpop.f32.mrb[0].mxu0
    %v3344 = vpop.f32.mrb[0].mxu0
    %3345 = vdwg.mxu0
    %v3346 = vmax.f32 %v3340, 0.0
    %v3347 = vmax.f32 %v3342, 0.0
    %s3348 = scalar_lea.vmem %s14, 66
    %v3349 = vld [vmem:[%s3348] ss:$8 sm:$0xf]
    %v3350 = vpack.c.bf16 %v3346, %v3346
    %v3351 = vpack.c.bf16 %v3347, %v3347
    %v3352 = vld [vmem:[#allocation6] sm:$0xff]
    %v3353 = vld [vmem:[#allocation6 + $0x8] sm:$0xff]
    %v3354 = vld [vmem:[#allocation6 + $0x10] sm:$0xff]
    %v3355 = vld [vmem:[#allocation6 + $0x18] sm:$0xff]
    %v3356 = vld [vmem:[#allocation6 + $0x20] sm:$0xff]
    %v3357 = vld [vmem:[#allocation6 + $0x28] sm:$0xff]
    %v3358 = vld [vmem:[#allocation6 + $0x30] sm:$0xff]
    %v3359 = vld [vmem:[#allocation6 + $0x38] sm:$0xff]
    %v3360 = vld [vmem:[#allocation6 + $0x40] sm:$0xff]
    %v3361 = vld [vmem:[#allocation6 + $0x48] sm:$0xff]
    %v3362 = vld [vmem:[#allocation6 + $0x50] sm:$0xff]
    %v3363 = vld [vmem:[#allocation6 + $0x58] sm:$0xff]
    %v3364 = vld [vmem:[#allocation6 + $0x60] sm:$0xff]
    %v3365 = vld [vmem:[#allocation6 + $0x68] sm:$0xff]
    %v3366 = vld [vmem:[#allocation6 + $0x70] sm:$0xff]
    %v3367 = vld [vmem:[#allocation6 + $0x78] sm:$0xff]
    %v3368 = vld [vmem:[#allocation6 + $0x80] sm:$0xff]
    %v3369 = vld [vmem:[#allocation6 + $0x88] sm:$0xff]
    %v3370 = vld [vmem:[#allocation6 + $0x90] sm:$0xff]
    %v3371 = vld [vmem:[#allocation6 + $0x98] sm:$0xff]
    %v3372 = vld [vmem:[#allocation6 + $0xa0] sm:$0xff]
    %v3373 = vld [vmem:[#allocation6 + $0xa8] sm:$0xff]
    %v3374 = vld [vmem:[#allocation6 + $0xb0] sm:$0xff]
    %v3375 = vld [vmem:[#allocation6 + $0xb8] sm:$0xff]
    %v3376 = vld [vmem:[#allocation6 + $0xc0] sm:$0xff]
    %v3377 = vld [vmem:[#allocation6 + $0xc8] sm:$0xff]
    %v3378 = vld [vmem:[#allocation6 + $0xd0] sm:$0xff]
    %v3379 = vld [vmem:[#allocation6 + $0xd8] sm:$0xff]
    %v3380 = vld [vmem:[#allocation6 + $0xe0] sm:$0xff]
    %v3381 = vld [vmem:[#allocation6 + $0xe8] sm:$0xff]
    %v3382 = vld [vmem:[#allocation6 + $0xf0] sm:$0xff]
    %v3383 = vld [vmem:[#allocation6 + $0xf8] sm:$0xff]
    %v3384 = vld [vmem:[#allocation6 + $0x100] sm:$0xff]
    %v3385 = vld [vmem:[#allocation6 + $0x108] sm:$0xff]
    %v3386 = vld [vmem:[#allocation6 + $0x110] sm:$0xff]
    %v3387 = vld [vmem:[#allocation6 + $0x118] sm:$0xff]
    %v3388 = vld [vmem:[#allocation6 + $0x120] sm:$0xff]
    %v3389 = vld [vmem:[#allocation6 + $0x128] sm:$0xff]
    %v3390 = vld [vmem:[#allocation6 + $0x130] sm:$0xff]
    %v3391 = vld [vmem:[#allocation6 + $0x138] sm:$0xff]
    %v3392 = vld [vmem:[#allocation6 + $0x140] sm:$0xff]
    %v3393 = vld [vmem:[#allocation6 + $0x148] sm:$0xff]
    %v3394 = vld [vmem:[#allocation6 + $0x150] sm:$0xff]
    %v3395 = vld [vmem:[#allocation6 + $0x158] sm:$0xff]
    %v3396 = vld [vmem:[#allocation6 + $0x160] sm:$0xff]
    %v3397 = vld [vmem:[#allocation6 + $0x168] sm:$0xff]
    %v3398 = vld [vmem:[#allocation6 + $0x170] sm:$0xff]
    %v3399 = vld [vmem:[#allocation6 + $0x178] sm:$0xff]
    %v3400 = vld [vmem:[#allocation6 + $0x180] sm:$0xff]
    %v3401 = vld [vmem:[#allocation6 + $0x188] sm:$0xff]
    %v3402 = vld [vmem:[#allocation6 + $0x190] sm:$0xff]
    %v3403 = vld [vmem:[#allocation6 + $0x198] sm:$0xff]
    %v3404 = vld [vmem:[#allocation6 + $0x1a0] sm:$0xff]
    %v3405 = vld [vmem:[#allocation6 + $0x1a8] sm:$0xff]
    %v3406 = vld [vmem:[#allocation6 + $0x1b0] sm:$0xff]
    %v3407 = vld [vmem:[#allocation6 + $0x1b8] sm:$0xff]
    %v3408 = vld [vmem:[#allocation6 + $0x1c0] sm:$0xff]
    %v3409 = vld [vmem:[#allocation6 + $0x1c8] sm:$0xff]
    %v3410 = vld [vmem:[#allocation6 + $0x1d0] sm:$0xff]
    %v3411 = vld [vmem:[#allocation6 + $0x1d8] sm:$0xff]
    %v3412 = vld [vmem:[#allocation6 + $0x1e0] sm:$0xff]
    %v3413 = vld [vmem:[#allocation6 + $0x1e8] sm:$0xff]
    %v3414 = vld [vmem:[#allocation6 + $0x1f0] sm:$0xff]
    %v3415 = vld [vmem:[#allocation6 + $0x1f8] sm:$0xff]
    %v3417 = vlaneseq
    %v3418 = vshrl.u32 %v3417, 7
    %v3419 = vsub.s32 0, %v3418
    %v3420 = vrot.slane %v3349, %v3419
    %v3421 = vlaneseq
    %v3422 = vshrl.u32 %v3421, 7
    %v3423 = vsub.s32 1, %v3422
    %v3424 = vrot.slane %v3349, %v3423
    %v3425 = vlaneseq
    %v3426 = vshrl.u32 %v3425, 7
    %v3427 = vsub.s32 2, %v3426
    %v3428 = vrot.slane %v3349, %v3427
    %v3429 = vlaneseq
    %v3430 = vshrl.u32 %v3429, 7
    %v3431 = vsub.s32 3, %v3430
    %v3432 = vrot.slane %v3349, %v3431
    %v3501 = vunpack.c.l.b16 %v3352
    %v3502 = vunpack.c.h.b16 %v3352
    %v3503 = vunpack.c.l.b16 %v3353
    %v3504 = vunpack.c.h.b16 %v3353
    %v3505 = vunpack.c.l.b16 %v3354
    %v3506 = vunpack.c.h.b16 %v3354
    %v3507 = vunpack.c.l.b16 %v3355
    %v3508 = vunpack.c.h.b16 %v3355
    %v3509 = vunpack.c.l.b16 %v3356
    %v3510 = vunpack.c.h.b16 %v3356
    %v3511 = vunpack.c.l.b16 %v3357
    %v3512 = vunpack.c.h.b16 %v3357
    %v3513 = vunpack.c.l.b16 %v3358
    %v3514 = vunpack.c.h.b16 %v3358
    %v3515 = vunpack.c.l.b16 %v3359
    %v3516 = vunpack.c.h.b16 %v3359
    %v3517 = vunpack.c.l.b16 %v3360
    %v3518 = vunpack.c.h.b16 %v3360
    %v3519 = vunpack.c.l.b16 %v3361
    %v3520 = vunpack.c.h.b16 %v3361
    %v3521 = vunpack.c.l.b16 %v3362
    %v3522 = vunpack.c.h.b16 %v3362
    %v3523 = vunpack.c.l.b16 %v3363
    %v3524 = vunpack.c.h.b16 %v3363
    %v3525 = vunpack.c.l.b16 %v3364
    %v3526 = vunpack.c.h.b16 %v3364
    %v3527 = vunpack.c.l.b16 %v3365
    %v3528 = vunpack.c.h.b16 %v3365
    %v3529 = vunpack.c.l.b16 %v3366
    %v3530 = vunpack.c.h.b16 %v3366
    %v3531 = vunpack.c.l.b16 %v3367
    %v3532 = vunpack.c.h.b16 %v3367
    %v3533 = vunpack.c.l.b16 %v3368
    %v3534 = vunpack.c.h.b16 %v3368
    %v3535 = vunpack.c.l.b16 %v3369
    %v3536 = vunpack.c.h.b16 %v3369
    %v3537 = vunpack.c.l.b16 %v3370
    %v3538 = vunpack.c.h.b16 %v3370
    %v3539 = vunpack.c.l.b16 %v3371
    %v3540 = vunpack.c.h.b16 %v3371
    %v3541 = vunpack.c.l.b16 %v3372
    %v3542 = vunpack.c.h.b16 %v3372
    %v3543 = vunpack.c.l.b16 %v3373
    %v3544 = vunpack.c.h.b16 %v3373
    %v3545 = vunpack.c.l.b16 %v3374
    %v3546 = vunpack.c.h.b16 %v3374
    %v3547 = vunpack.c.l.b16 %v3375
    %v3548 = vunpack.c.h.b16 %v3375
    %v3549 = vunpack.c.l.b16 %v3376
    %v3550 = vunpack.c.h.b16 %v3376
    %v3551 = vunpack.c.l.b16 %v3377
    %v3552 = vunpack.c.h.b16 %v3377
    %v3553 = vunpack.c.l.b16 %v3378
    %v3554 = vunpack.c.h.b16 %v3378
    %v3555 = vunpack.c.l.b16 %v3379
    %v3556 = vunpack.c.h.b16 %v3379
    %v3557 = vunpack.c.l.b16 %v3380
    %v3558 = vunpack.c.h.b16 %v3380
    %v3559 = vunpack.c.l.b16 %v3381
    %v3560 = vunpack.c.h.b16 %v3381
    %v3561 = vunpack.c.l.b16 %v3382
    %v3562 = vunpack.c.h.b16 %v3382
    %v3563 = vunpack.c.l.b16 %v3383
    %v3564 = vunpack.c.h.b16 %v3383
    %v3565 = vunpack.c.l.b16 %v3384
    %v3566 = vunpack.c.h.b16 %v3384
    %v3567 = vunpack.c.l.b16 %v3385
    %v3568 = vunpack.c.h.b16 %v3385
    %v3569 = vunpack.c.l.b16 %v3386
    %v3570 = vunpack.c.h.b16 %v3386
    %v3571 = vunpack.c.l.b16 %v3387
    %v3572 = vunpack.c.h.b16 %v3387
    %v3573 = vunpack.c.l.b16 %v3388
    %v3574 = vunpack.c.h.b16 %v3388
    %v3575 = vunpack.c.l.b16 %v3389
    %v3576 = vunpack.c.h.b16 %v3389
    %v3577 = vunpack.c.l.b16 %v3390
    %v3578 = vunpack.c.h.b16 %v3390
    %v3579 = vunpack.c.l.b16 %v3391
    %v3580 = vunpack.c.h.b16 %v3391
    %v3581 = vunpack.c.l.b16 %v3392
    %v3582 = vunpack.c.h.b16 %v3392
    %v3583 = vunpack.c.l.b16 %v3393
    %v3584 = vunpack.c.h.b16 %v3393
    %v3585 = vunpack.c.l.b16 %v3394
    %v3586 = vunpack.c.h.b16 %v3394
    %v3587 = vunpack.c.l.b16 %v3395
    %v3588 = vunpack.c.h.b16 %v3395
    %v3589 = vunpack.c.l.b16 %v3396
    %v3590 = vunpack.c.h.b16 %v3396
    %v3591 = vunpack.c.l.b16 %v3397
    %v3592 = vunpack.c.h.b16 %v3397
    %v3593 = vunpack.c.l.b16 %v3398
    %v3594 = vunpack.c.h.b16 %v3398
    %v3595 = vunpack.c.l.b16 %v3399
    %v3596 = vunpack.c.h.b16 %v3399
    %v3597 = vunpack.c.l.b16 %v3400
    %v3598 = vunpack.c.h.b16 %v3400
    %v3599 = vunpack.c.l.b16 %v3401
    %v3600 = vunpack.c.h.b16 %v3401
    %v3601 = vunpack.c.l.b16 %v3402
    %v3602 = vunpack.c.h.b16 %v3402
    %v3603 = vunpack.c.l.b16 %v3403
    %v3604 = vunpack.c.h.b16 %v3403
    %v3605 = vunpack.c.l.b16 %v3404
    %v3606 = vunpack.c.h.b16 %v3404
    %v3607 = vunpack.c.l.b16 %v3405
    %v3608 = vunpack.c.h.b16 %v3405
    %v3609 = vunpack.c.l.b16 %v3406
    %v3610 = vunpack.c.h.b16 %v3406
    %v3611 = vunpack.c.l.b16 %v3407
    %v3612 = vunpack.c.h.b16 %v3407
    %v3613 = vunpack.c.l.b16 %v3408
    %v3614 = vunpack.c.h.b16 %v3408
    %v3615 = vunpack.c.l.b16 %v3409
    %v3616 = vunpack.c.h.b16 %v3409
    %v3617 = vunpack.c.l.b16 %v3410
    %v3618 = vunpack.c.h.b16 %v3410
    %v3619 = vunpack.c.l.b16 %v3411
    %v3620 = vunpack.c.h.b16 %v3411
    %v3621 = vunpack.c.l.b16 %v3412
    %v3622 = vunpack.c.h.b16 %v3412
    %v3623 = vunpack.c.l.b16 %v3413
    %v3624 = vunpack.c.h.b16 %v3413
    %v3625 = vunpack.c.l.b16 %v3414
    %v3626 = vunpack.c.h.b16 %v3414
    %v3627 = vunpack.c.l.b16 %v3415
    %v3628 = vunpack.c.h.b16 %v3415
    %v3629 = vpack.c.b16 %v3505, %v3501
    %v3630 = vpack.c.b16 %v3506, %v3502
    %v3631 = vpack.c.b16 %v3507, %v3503
    %v3632 = vpack.c.b16 %v3508, %v3504
    %v3633 = vpack.c.b16 %v3513, %v3509
    %v3634 = vpack.c.b16 %v3514, %v3510
    %v3635 = vpack.c.b16 %v3515, %v3511
    %v3636 = vpack.c.b16 %v3516, %v3512
    %v3637 = vpack.c.b16 %v3521, %v3517
    %v3638 = vpack.c.b16 %v3522, %v3518
    %v3639 = vpack.c.b16 %v3523, %v3519
    %v3640 = vpack.c.b16 %v3524, %v3520
    %v3641 = vpack.c.b16 %v3529, %v3525
    %v3642 = vpack.c.b16 %v3530, %v3526
    %v3643 = vpack.c.b16 %v3531, %v3527
    %v3644 = vpack.c.b16 %v3532, %v3528
    %v3645 = vpack.c.b16 %v3537, %v3533
    %v3646 = vpack.c.b16 %v3538, %v3534
    %v3647 = vpack.c.b16 %v3539, %v3535
    %v3648 = vpack.c.b16 %v3540, %v3536
    %v3649 = vpack.c.b16 %v3545, %v3541
    %v3650 = vpack.c.b16 %v3546, %v3542
    %v3651 = vpack.c.b16 %v3547, %v3543
    %v3652 = vpack.c.b16 %v3548, %v3544
    %v3653 = vpack.c.b16 %v3553, %v3549
    %v3654 = vpack.c.b16 %v3554, %v3550
    %v3655 = vpack.c.b16 %v3555, %v3551
    %v3656 = vpack.c.b16 %v3556, %v3552
    %v3657 = vpack.c.b16 %v3561, %v3557
    %v3658 = vpack.c.b16 %v3562, %v3558
    %v3659 = vpack.c.b16 %v3563, %v3559
    %v3660 = vpack.c.b16 %v3564, %v3560
    %v3661 = vpack.c.b16 %v3569, %v3565
    %v3662 = vpack.c.b16 %v3570, %v3566
    %v3663 = vpack.c.b16 %v3571, %v3567
    %v3664 = vpack.c.b16 %v3572, %v3568
    %v3665 = vpack.c.b16 %v3577, %v3573
    %v3666 = vpack.c.b16 %v3578, %v3574
    %v3667 = vpack.c.b16 %v3579, %v3575
    %v3668 = vpack.c.b16 %v3580, %v3576
    %v3669 = vpack.c.b16 %v3585, %v3581
    %v3670 = vpack.c.b16 %v3586, %v3582
    %v3671 = vpack.c.b16 %v3587, %v3583
    %v3672 = vpack.c.b16 %v3588, %v3584
    %v3673 = vpack.c.b16 %v3593, %v3589
    %v3674 = vpack.c.b16 %v3594, %v3590
    %v3675 = vpack.c.b16 %v3595, %v3591
    %v3676 = vpack.c.b16 %v3596, %v3592
    %v3677 = vpack.c.b16 %v3601, %v3597
    %v3678 = vpack.c.b16 %v3602, %v3598
    %v3679 = vpack.c.b16 %v3603, %v3599
    %v3680 = vpack.c.b16 %v3604, %v3600
    %v3681 = vpack.c.b16 %v3609, %v3605
    %v3682 = vpack.c.b16 %v3610, %v3606
    %v3683 = vpack.c.b16 %v3611, %v3607
    %v3684 = vpack.c.b16 %v3612, %v3608
    %v3685 = vpack.c.b16 %v3617, %v3613
    %v3686 = vpack.c.b16 %v3618, %v3614
    %v3687 = vpack.c.b16 %v3619, %v3615
    %v3688 = vpack.c.b16 %v3620, %v3616
    %v3689 = vpack.c.b16 %v3625, %v3621
    %v3690 = vpack.c.b16 %v3626, %v3622
    %v3691 = vpack.c.b16 %v3627, %v3623
    %v3692 = vpack.c.b16 %v3628, %v3624
    %3757 = vmatprep.subr.bf16.mxu0 %v3630
    %3758 = vmatpush1.bf16.msra.mxu0 %v3629
    %3759 = vmatprep.subr.bf16.mxu0 %v3634
    %3760 = vmatpush1.bf16.msra.mxu0 %v3633
    %3761 = vmatprep.subr.bf16.mxu0 %v3638
    %3762 = vmatpush1.bf16.msra.mxu0 %v3637
    %3763 = vmatprep.subr.bf16.mxu0 %v3642
    %3764 = vmatpush1.bf16.msra.mxu0 %v3641
    %3765 = vmatprep.subr.bf16.mxu0 %v3646
    %3766 = vmatpush1.bf16.msra.mxu0 %v3645
    %3767 = vmatprep.subr.bf16.mxu0 %v3650
    %3768 = vmatpush1.bf16.msra.mxu0 %v3649
    %3769 = vmatprep.subr.bf16.mxu0 %v3654
    %3770 = vmatpush1.bf16.msra.mxu0 %v3653
    %3771 = vmatprep.subr.bf16.mxu0 %v3658
    %3772 = vmatpush1.bf16.msra.mxu0 %v3657
    %3773 = vmatprep.subr.bf16.mxu0 %v3662
    %3774 = vmatpush1.bf16.msra.mxu0 %v3661
    %3775 = vmatprep.subr.bf16.mxu0 %v3666
    %3776 = vmatpush1.bf16.msra.mxu0 %v3665
    %3777 = vmatprep.subr.bf16.mxu0 %v3670
    %3778 = vmatpush1.bf16.msra.mxu0 %v3669
    %3779 = vmatprep.subr.bf16.mxu0 %v3674
    %3780 = vmatpush1.bf16.msra.mxu0 %v3673
    %3781 = vmatprep.subr.bf16.mxu0 %v3678
    %3782 = vmatpush1.bf16.msra.mxu0 %v3677
    %3783 = vmatprep.subr.bf16.mxu0 %v3682
    %3784 = vmatpush1.bf16.msra.mxu0 %v3681
    %3785 = vmatprep.subr.bf16.mxu0 %v3686
    %3786 = vmatpush1.bf16.msra.mxu0 %v3685
    %3787 = vmatprep.subr.bf16.mxu0 %v3690
    %3788 = vmatpush1.bf16.msra.mxu0 %v3689
    %3789 = vmatprep.mubr.bf16.mxu0 %v3351
    %3790 = vmatmul.mubr.bf16.gmra.mrb[0].mxu0 %v3350
    %v3791 = vpop.f32.mrb[0].mxu0
    %v3792 = vadd.f32 %v3420, %v3791
    %v3793 = vpop.f32.mrb[0].mxu0
    %v3794 = vadd.f32 %v3424, %v3793
    %v3795 = vpop.f32.mrb[0].mxu0
    %v3796 = vpop.f32.mrb[0].mxu0
    %3797 = vdwg.mxu0
    %3798 = vmatprep.subr.bf16.mxu0 %v3632
    %3799 = vmatpush1.bf16.msra.mxu0 %v3631
    %3800 = vmatprep.subr.bf16.mxu0 %v3636
    %3801 = vmatpush1.bf16.msra.mxu0 %v3635
    %3802 = vmatprep.subr.bf16.mxu0 %v3640
    %3803 = vmatpush1.bf16.msra.mxu0 %v3639
    %3804 = vmatprep.subr.bf16.mxu0 %v3644
    %3805 = vmatpush1.bf16.msra.mxu0 %v3643
    %3806 = vmatprep.subr.bf16.mxu0 %v3648
    %3807 = vmatpush1.bf16.msra.mxu0 %v3647
    %3808 = vmatprep.subr.bf16.mxu0 %v3652
    %3809 = vmatpush1.bf16.msra.mxu0 %v3651
    %3810 = vmatprep.subr.bf16.mxu0 %v3656
    %3811 = vmatpush1.bf16.msra.mxu0 %v3655
    %3812 = vmatprep.subr.bf16.mxu0 %v3660
    %3813 = vmatpush1.bf16.msra.mxu0 %v3659
    %3814 = vmatprep.subr.bf16.mxu0 %v3664
    %3815 = vmatpush1.bf16.msra.mxu0 %v3663
    %3816 = vmatprep.subr.bf16.mxu0 %v3668
    %3817 = vmatpush1.bf16.msra.mxu0 %v3667
    %3818 = vmatprep.subr.bf16.mxu0 %v3672
    %3819 = vmatpush1.bf16.msra.mxu0 %v3671
    %3820 = vmatprep.subr.bf16.mxu0 %v3676
    %3821 = vmatpush1.bf16.msra.mxu0 %v3675
    %3822 = vmatprep.subr.bf16.mxu0 %v3680
    %3823 = vmatpush1.bf16.msra.mxu0 %v3679
    %3824 = vmatprep.subr.bf16.mxu0 %v3684
    %3825 = vmatpush1.bf16.msra.mxu0 %v3683
    %3826 = vmatprep.subr.bf16.mxu0 %v3688
    %3827 = vmatpush1.bf16.msra.mxu0 %v3687
    %3828 = vmatprep.subr.bf16.mxu0 %v3692
    %3829 = vmatpush1.bf16.msra.mxu0 %v3691
    %3830 = vmatprep.mubr.bf16.mxu0 %v3351
    %3831 = vmatmul.mubr.bf16.gmra.mrb[0].mxu0 %v3350
    %v3832 = vpop.f32.mrb[0].mxu0
    %v3833 = vadd.f32 %v3428, %v3832
    %v3834 = vpop.f32.mrb[0].mxu0
    %v3835 = vadd.f32 %v3432, %v3834
    %v3836 = vpop.f32.mrb[0].mxu0
    %v3837 = vpop.f32.mrb[0].mxu0
    %3838 = vdwg.mxu0
    %v3839 = vmax.f32 %v3792, 0.0
    %v3840 = vmax.f32 %v3794, 0.0
    %v3841 = vmax.f32 %v3833, 0.0
    %v3842 = vmax.f32 %v3835, 0.0
    %s3843 = scalar_lea.vmem %s14, 67
    %v3844 = vld [vmem:[%s3843] ss:$8 sm:$0xf]
    %v3845 = vld [vmem:[%s3843] ss:$8 sm:$0xf0]
    %v3846 = vor.u32 %v3844, %v3845
    %v3847 = vpack.c.bf16 %v3839, %v3839
    %v3848 = vpack.c.bf16 %v3840, %v3840
    %v3849 = vpack.c.bf16 %v3841, %v3841
    %v3850 = vpack.c.bf16 %v3842, %v3842
    %v3851 = vld [vmem:[#allocation7] sm:$0xff]
    %v3852 = vld [vmem:[#allocation7 + $0x8] sm:$0xff]
    %v3853 = vld [vmem:[#allocation7 + $0x10] sm:$0xff]
    %v3854 = vld [vmem:[#allocation7 + $0x18] sm:$0xff]
    %v3855 = vld [vmem:[#allocation7 + $0x20] sm:$0xff]
    %v3856 = vld [vmem:[#allocation7 + $0x28] sm:$0xff]
    %v3857 = vld [vmem:[#allocation7 + $0x30] sm:$0xff]
    %v3858 = vld [vmem:[#allocation7 + $0x38] sm:$0xff]
    %v3859 = vld [vmem:[#allocation7 + $0x40] sm:$0xff]
    %v3860 = vld [vmem:[#allocation7 + $0x48] sm:$0xff]
    %v3861 = vld [vmem:[#allocation7 + $0x50] sm:$0xff]
    %v3862 = vld [vmem:[#allocation7 + $0x58] sm:$0xff]
    %v3863 = vld [vmem:[#allocation7 + $0x60] sm:$0xff]
    %v3864 = vld [vmem:[#allocation7 + $0x68] sm:$0xff]
    %v3865 = vld [vmem:[#allocation7 + $0x70] sm:$0xff]
    %v3866 = vld [vmem:[#allocation7 + $0x78] sm:$0xff]
    %v3867 = vld [vmem:[#allocation7 + $0x80] sm:$0xff]
    %v3868 = vld [vmem:[#allocation7 + $0x88] sm:$0xff]
    %v3869 = vld [vmem:[#allocation7 + $0x90] sm:$0xff]
    %v3870 = vld [vmem:[#allocation7 + $0x98] sm:$0xff]
    %v3871 = vld [vmem:[#allocation7 + $0xa0] sm:$0xff]
    %v3872 = vld [vmem:[#allocation7 + $0xa8] sm:$0xff]
    %v3873 = vld [vmem:[#allocation7 + $0xb0] sm:$0xff]
    %v3874 = vld [vmem:[#allocation7 + $0xb8] sm:$0xff]
    %v3875 = vld [vmem:[#allocation7 + $0xc0] sm:$0xff]
    %v3876 = vld [vmem:[#allocation7 + $0xc8] sm:$0xff]
    %v3877 = vld [vmem:[#allocation7 + $0xd0] sm:$0xff]
    %v3878 = vld [vmem:[#allocation7 + $0xd8] sm:$0xff]
    %v3879 = vld [vmem:[#allocation7 + $0xe0] sm:$0xff]
    %v3880 = vld [vmem:[#allocation7 + $0xe8] sm:$0xff]
    %v3881 = vld [vmem:[#allocation7 + $0xf0] sm:$0xff]
    %v3882 = vld [vmem:[#allocation7 + $0xf8] sm:$0xff]
    %v3883 = vld [vmem:[#allocation7 + $0x100] sm:$0xff]
    %v3884 = vld [vmem:[#allocation7 + $0x108] sm:$0xff]
    %v3885 = vld [vmem:[#allocation7 + $0x110] sm:$0xff]
    %v3886 = vld [vmem:[#allocation7 + $0x118] sm:$0xff]
    %v3887 = vld [vmem:[#allocation7 + $0x120] sm:$0xff]
    %v3888 = vld [vmem:[#allocation7 + $0x128] sm:$0xff]
    %v3889 = vld [vmem:[#allocation7 + $0x130] sm:$0xff]
    %v3890 = vld [vmem:[#allocation7 + $0x138] sm:$0xff]
    %v3891 = vld [vmem:[#allocation7 + $0x140] sm:$0xff]
    %v3892 = vld [vmem:[#allocation7 + $0x148] sm:$0xff]
    %v3893 = vld [vmem:[#allocation7 + $0x150] sm:$0xff]
    %v3894 = vld [vmem:[#allocation7 + $0x158] sm:$0xff]
    %v3895 = vld [vmem:[#allocation7 + $0x160] sm:$0xff]
    %v3896 = vld [vmem:[#allocation7 + $0x168] sm:$0xff]
    %v3897 = vld [vmem:[#allocation7 + $0x170] sm:$0xff]
    %v3898 = vld [vmem:[#allocation7 + $0x178] sm:$0xff]
    %v3899 = vld [vmem:[#allocation7 + $0x180] sm:$0xff]
    %v3900 = vld [vmem:[#allocation7 + $0x188] sm:$0xff]
    %v3901 = vld [vmem:[#allocation7 + $0x190] sm:$0xff]
    %v3902 = vld [vmem:[#allocation7 + $0x198] sm:$0xff]
    %v3903 = vld [vmem:[#allocation7 + $0x1a0] sm:$0xff]
    %v3904 = vld [vmem:[#allocation7 + $0x1a8] sm:$0xff]
    %v3905 = vld [vmem:[#allocation7 + $0x1b0] sm:$0xff]
    %v3906 = vld [vmem:[#allocation7 + $0x1b8] sm:$0xff]
    %v3907 = vld [vmem:[#allocation7 + $0x1c0] sm:$0xff]
    %v3908 = vld [vmem:[#allocation7 + $0x1c8] sm:$0xff]
    %v3909 = vld [vmem:[#allocation7 + $0x1d0] sm:$0xff]
    %v3910 = vld [vmem:[#allocation7 + $0x1d8] sm:$0xff]
    %v3911 = vld [vmem:[#allocation7 + $0x1e0] sm:$0xff]
    %v3912 = vld [vmem:[#allocation7 + $0x1e8] sm:$0xff]
    %v3913 = vld [vmem:[#allocation7 + $0x1f0] sm:$0xff]
    %v3914 = vld [vmem:[#allocation7 + $0x1f8] sm:$0xff]
    %v3915 = vld [vmem:[#allocation7 + $0x200] sm:$0xff]
    %v3916 = vld [vmem:[#allocation7 + $0x208] sm:$0xff]
    %v3917 = vld [vmem:[#allocation7 + $0x210] sm:$0xff]
    %v3918 = vld [vmem:[#allocation7 + $0x218] sm:$0xff]
    %v3919 = vld [vmem:[#allocation7 + $0x220] sm:$0xff]
    %v3920 = vld [vmem:[#allocation7 + $0x228] sm:$0xff]
    %v3921 = vld [vmem:[#allocation7 + $0x230] sm:$0xff]
    %v3922 = vld [vmem:[#allocation7 + $0x238] sm:$0xff]
    %v3923 = vld [vmem:[#allocation7 + $0x240] sm:$0xff]
    %v3924 = vld [vmem:[#allocation7 + $0x248] sm:$0xff]
    %v3925 = vld [vmem:[#allocation7 + $0x250] sm:$0xff]
    %v3926 = vld [vmem:[#allocation7 + $0x258] sm:$0xff]
    %v3927 = vld [vmem:[#allocation7 + $0x260] sm:$0xff]
    %v3928 = vld [vmem:[#allocation7 + $0x268] sm:$0xff]
    %v3929 = vld [vmem:[#allocation7 + $0x270] sm:$0xff]
    %v3930 = vld [vmem:[#allocation7 + $0x278] sm:$0xff]
    %v3931 = vld [vmem:[#allocation7 + $0x280] sm:$0xff]
    %v3932 = vld [vmem:[#allocation7 + $0x288] sm:$0xff]
    %v3933 = vld [vmem:[#allocation7 + $0x290] sm:$0xff]
    %v3934 = vld [vmem:[#allocation7 + $0x298] sm:$0xff]
    %v3935 = vld [vmem:[#allocation7 + $0x2a0] sm:$0xff]
    %v3936 = vld [vmem:[#allocation7 + $0x2a8] sm:$0xff]
    %v3937 = vld [vmem:[#allocation7 + $0x2b0] sm:$0xff]
    %v3938 = vld [vmem:[#allocation7 + $0x2b8] sm:$0xff]
    %v3939 = vld [vmem:[#allocation7 + $0x2c0] sm:$0xff]
    %v3940 = vld [vmem:[#allocation7 + $0x2c8] sm:$0xff]
    %v3941 = vld [vmem:[#allocation7 + $0x2d0] sm:$0xff]
    %v3942 = vld [vmem:[#allocation7 + $0x2d8] sm:$0xff]
    %v3943 = vld [vmem:[#allocation7 + $0x2e0] sm:$0xff]
    %v3944 = vld [vmem:[#allocation7 + $0x2e8] sm:$0xff]
    %v3945 = vld [vmem:[#allocation7 + $0x2f0] sm:$0xff]
    %v3946 = vld [vmem:[#allocation7 + $0x2f8] sm:$0xff]
    %v3947 = vld [vmem:[#allocation7 + $0x300] sm:$0xff]
    %v3948 = vld [vmem:[#allocation7 + $0x308] sm:$0xff]
    %v3949 = vld [vmem:[#allocation7 + $0x310] sm:$0xff]
    %v3950 = vld [vmem:[#allocation7 + $0x318] sm:$0xff]
    %v3951 = vld [vmem:[#allocation7 + $0x320] sm:$0xff]
    %v3952 = vld [vmem:[#allocation7 + $0x328] sm:$0xff]
    %v3953 = vld [vmem:[#allocation7 + $0x330] sm:$0xff]
    %v3954 = vld [vmem:[#allocation7 + $0x338] sm:$0xff]
    %v3955 = vld [vmem:[#allocation7 + $0x340] sm:$0xff]
    %v3956 = vld [vmem:[#allocation7 + $0x348] sm:$0xff]
    %v3957 = vld [vmem:[#allocation7 + $0x350] sm:$0xff]
    %v3958 = vld [vmem:[#allocation7 + $0x358] sm:$0xff]
    %v3959 = vld [vmem:[#allocation7 + $0x360] sm:$0xff]
    %v3960 = vld [vmem:[#allocation7 + $0x368] sm:$0xff]
    %v3961 = vld [vmem:[#allocation7 + $0x370] sm:$0xff]
    %v3962 = vld [vmem:[#allocation7 + $0x378] sm:$0xff]
    %v3963 = vld [vmem:[#allocation7 + $0x380] sm:$0xff]
    %v3964 = vld [vmem:[#allocation7 + $0x388] sm:$0xff]
    %v3965 = vld [vmem:[#allocation7 + $0x390] sm:$0xff]
    %v3966 = vld [vmem:[#allocation7 + $0x398] sm:$0xff]
    %v3967 = vld [vmem:[#allocation7 + $0x3a0] sm:$0xff]
    %v3968 = vld [vmem:[#allocation7 + $0x3a8] sm:$0xff]
    %v3969 = vld [vmem:[#allocation7 + $0x3b0] sm:$0xff]
    %v3970 = vld [vmem:[#allocation7 + $0x3b8] sm:$0xff]
    %v3971 = vld [vmem:[#allocation7 + $0x3c0] sm:$0xff]
    %v3972 = vld [vmem:[#allocation7 + $0x3c8] sm:$0xff]
    %v3973 = vld [vmem:[#allocation7 + $0x3d0] sm:$0xff]
    %v3974 = vld [vmem:[#allocation7 + $0x3d8] sm:$0xff]
    %v3975 = vld [vmem:[#allocation7 + $0x3e0] sm:$0xff]
    %v3976 = vld [vmem:[#allocation7 + $0x3e8] sm:$0xff]
    %v3977 = vld [vmem:[#allocation7 + $0x3f0] sm:$0xff]
    %v3978 = vld [vmem:[#allocation7 + $0x3f8] sm:$0xff]
    %v3979 = vld [vmem:[#allocation7 + $0x400] sm:$0xff]
    %v3980 = vld [vmem:[#allocation7 + $0x408] sm:$0xff]
    %v3981 = vld [vmem:[#allocation7 + $0x410] sm:$0xff]
    %v3982 = vld [vmem:[#allocation7 + $0x418] sm:$0xff]
    %v3983 = vld [vmem:[#allocation7 + $0x420] sm:$0xff]
    %v3984 = vld [vmem:[#allocation7 + $0x428] sm:$0xff]
    %v3985 = vld [vmem:[#allocation7 + $0x430] sm:$0xff]
    %v3986 = vld [vmem:[#allocation7 + $0x438] sm:$0xff]
    %v3987 = vld [vmem:[#allocation7 + $0x440] sm:$0xff]
    %v3988 = vld [vmem:[#allocation7 + $0x448] sm:$0xff]
    %v3989 = vld [vmem:[#allocation7 + $0x450] sm:$0xff]
    %v3990 = vld [vmem:[#allocation7 + $0x458] sm:$0xff]
    %v3991 = vld [vmem:[#allocation7 + $0x460] sm:$0xff]
    %v3992 = vld [vmem:[#allocation7 + $0x468] sm:$0xff]
    %v3993 = vld [vmem:[#allocation7 + $0x470] sm:$0xff]
    %v3994 = vld [vmem:[#allocation7 + $0x478] sm:$0xff]
    %v3995 = vld [vmem:[#allocation7 + $0x480] sm:$0xff]
    %v3996 = vld [vmem:[#allocation7 + $0x488] sm:$0xff]
    %v3997 = vld [vmem:[#allocation7 + $0x490] sm:$0xff]
    %v3998 = vld [vmem:[#allocation7 + $0x498] sm:$0xff]
    %v3999 = vld [vmem:[#allocation7 + $0x4a0] sm:$0xff]
    %v4000 = vld [vmem:[#allocation7 + $0x4a8] sm:$0xff]
    %v4001 = vld [vmem:[#allocation7 + $0x4b0] sm:$0xff]
    %v4002 = vld [vmem:[#allocation7 + $0x4b8] sm:$0xff]
    %v4003 = vld [vmem:[#allocation7 + $0x4c0] sm:$0xff]
    %v4004 = vld [vmem:[#allocation7 + $0x4c8] sm:$0xff]
    %v4005 = vld [vmem:[#allocation7 + $0x4d0] sm:$0xff]
    %v4006 = vld [vmem:[#allocation7 + $0x4d8] sm:$0xff]
    %v4007 = vld [vmem:[#allocation7 + $0x4e0] sm:$0xff]
    %v4008 = vld [vmem:[#allocation7 + $0x4e8] sm:$0xff]
    %v4009 = vld [vmem:[#allocation7 + $0x4f0] sm:$0xff]
    %v4010 = vld [vmem:[#allocation7 + $0x4f8] sm:$0xff]
    %v4011 = vld [vmem:[#allocation7 + $0x500] sm:$0xff]
    %v4012 = vld [vmem:[#allocation7 + $0x508] sm:$0xff]
    %v4013 = vld [vmem:[#allocation7 + $0x510] sm:$0xff]
    %v4014 = vld [vmem:[#allocation7 + $0x518] sm:$0xff]
    %v4015 = vld [vmem:[#allocation7 + $0x520] sm:$0xff]
    %v4016 = vld [vmem:[#allocation7 + $0x528] sm:$0xff]
    %v4017 = vld [vmem:[#allocation7 + $0x530] sm:$0xff]
    %v4018 = vld [vmem:[#allocation7 + $0x538] sm:$0xff]
    %v4019 = vld [vmem:[#allocation7 + $0x540] sm:$0xff]
    %v4020 = vld [vmem:[#allocation7 + $0x548] sm:$0xff]
    %v4021 = vld [vmem:[#allocation7 + $0x550] sm:$0xff]
    %v4022 = vld [vmem:[#allocation7 + $0x558] sm:$0xff]
    %v4023 = vld [vmem:[#allocation7 + $0x560] sm:$0xff]
    %v4024 = vld [vmem:[#allocation7 + $0x568] sm:$0xff]
    %v4025 = vld [vmem:[#allocation7 + $0x570] sm:$0xff]
    %v4026 = vld [vmem:[#allocation7 + $0x578] sm:$0xff]
    %v4027 = vld [vmem:[#allocation7 + $0x580] sm:$0xff]
    %v4028 = vld [vmem:[#allocation7 + $0x588] sm:$0xff]
    %v4029 = vld [vmem:[#allocation7 + $0x590] sm:$0xff]
    %v4030 = vld [vmem:[#allocation7 + $0x598] sm:$0xff]
    %v4031 = vld [vmem:[#allocation7 + $0x5a0] sm:$0xff]
    %v4032 = vld [vmem:[#allocation7 + $0x5a8] sm:$0xff]
    %v4033 = vld [vmem:[#allocation7 + $0x5b0] sm:$0xff]
    %v4034 = vld [vmem:[#allocation7 + $0x5b8] sm:$0xff]
    %v4035 = vld [vmem:[#allocation7 + $0x5c0] sm:$0xff]
    %v4036 = vld [vmem:[#allocation7 + $0x5c8] sm:$0xff]
    %v4037 = vld [vmem:[#allocation7 + $0x5d0] sm:$0xff]
    %v4038 = vld [vmem:[#allocation7 + $0x5d8] sm:$0xff]
    %v4039 = vld [vmem:[#allocation7 + $0x5e0] sm:$0xff]
    %v4040 = vld [vmem:[#allocation7 + $0x5e8] sm:$0xff]
    %v4041 = vld [vmem:[#allocation7 + $0x5f0] sm:$0xff]
    %v4042 = vld [vmem:[#allocation7 + $0x5f8] sm:$0xff]
    %v4043 = vld [vmem:[#allocation7 + $0x600] sm:$0xff]
    %v4044 = vld [vmem:[#allocation7 + $0x608] sm:$0xff]
    %v4045 = vld [vmem:[#allocation7 + $0x610] sm:$0xff]
    %v4046 = vld [vmem:[#allocation7 + $0x618] sm:$0xff]
    %v4047 = vld [vmem:[#allocation7 + $0x620] sm:$0xff]
    %v4048 = vld [vmem:[#allocation7 + $0x628] sm:$0xff]
    %v4049 = vld [vmem:[#allocation7 + $0x630] sm:$0xff]
    %v4050 = vld [vmem:[#allocation7 + $0x638] sm:$0xff]
    %v4051 = vld [vmem:[#allocation7 + $0x640] sm:$0xff]
    %v4052 = vld [vmem:[#allocation7 + $0x648] sm:$0xff]
    %v4053 = vld [vmem:[#allocation7 + $0x650] sm:$0xff]
    %v4054 = vld [vmem:[#allocation7 + $0x658] sm:$0xff]
    %v4055 = vld [vmem:[#allocation7 + $0x660] sm:$0xff]
    %v4056 = vld [vmem:[#allocation7 + $0x668] sm:$0xff]
    %v4057 = vld [vmem:[#allocation7 + $0x670] sm:$0xff]
    %v4058 = vld [vmem:[#allocation7 + $0x678] sm:$0xff]
    %v4059 = vld [vmem:[#allocation7 + $0x680] sm:$0xff]
    %v4060 = vld [vmem:[#allocation7 + $0x688] sm:$0xff]
    %v4061 = vld [vmem:[#allocation7 + $0x690] sm:$0xff]
    %v4062 = vld [vmem:[#allocation7 + $0x698] sm:$0xff]
    %v4063 = vld [vmem:[#allocation7 + $0x6a0] sm:$0xff]
    %v4064 = vld [vmem:[#allocation7 + $0x6a8] sm:$0xff]
    %v4065 = vld [vmem:[#allocation7 + $0x6b0] sm:$0xff]
    %v4066 = vld [vmem:[#allocation7 + $0x6b8] sm:$0xff]
    %v4067 = vld [vmem:[#allocation7 + $0x6c0] sm:$0xff]
    %v4068 = vld [vmem:[#allocation7 + $0x6c8] sm:$0xff]
    %v4069 = vld [vmem:[#allocation7 + $0x6d0] sm:$0xff]
    %v4070 = vld [vmem:[#allocation7 + $0x6d8] sm:$0xff]
    %v4071 = vld [vmem:[#allocation7 + $0x6e0] sm:$0xff]
    %v4072 = vld [vmem:[#allocation7 + $0x6e8] sm:$0xff]
    %v4073 = vld [vmem:[#allocation7 + $0x6f0] sm:$0xff]
    %v4074 = vld [vmem:[#allocation7 + $0x6f8] sm:$0xff]
    %v4075 = vld [vmem:[#allocation7 + $0x700] sm:$0xff]
    %v4076 = vld [vmem:[#allocation7 + $0x708] sm:$0xff]
    %v4077 = vld [vmem:[#allocation7 + $0x710] sm:$0xff]
    %v4078 = vld [vmem:[#allocation7 + $0x718] sm:$0xff]
    %v4079 = vld [vmem:[#allocation7 + $0x720] sm:$0xff]
    %v4080 = vld [vmem:[#allocation7 + $0x728] sm:$0xff]
    %v4081 = vld [vmem:[#allocation7 + $0x730] sm:$0xff]
    %v4082 = vld [vmem:[#allocation7 + $0x738] sm:$0xff]
    %v4083 = vld [vmem:[#allocation7 + $0x740] sm:$0xff]
    %v4084 = vld [vmem:[#allocation7 + $0x748] sm:$0xff]
    %v4085 = vld [vmem:[#allocation7 + $0x750] sm:$0xff]
    %v4086 = vld [vmem:[#allocation7 + $0x758] sm:$0xff]
    %v4087 = vld [vmem:[#allocation7 + $0x760] sm:$0xff]
    %v4088 = vld [vmem:[#allocation7 + $0x768] sm:$0xff]
    %v4089 = vld [vmem:[#allocation7 + $0x770] sm:$0xff]
    %v4090 = vld [vmem:[#allocation7 + $0x778] sm:$0xff]
    %v4091 = vld [vmem:[#allocation7 + $0x780] sm:$0xff]
    %v4092 = vld [vmem:[#allocation7 + $0x788] sm:$0xff]
    %v4093 = vld [vmem:[#allocation7 + $0x790] sm:$0xff]
    %v4094 = vld [vmem:[#allocation7 + $0x798] sm:$0xff]
    %v4095 = vld [vmem:[#allocation7 + $0x7a0] sm:$0xff]
    %v4096 = vld [vmem:[#allocation7 + $0x7a8] sm:$0xff]
    %v4097 = vld [vmem:[#allocation7 + $0x7b0] sm:$0xff]
    %v4098 = vld [vmem:[#allocation7 + $0x7b8] sm:$0xff]
    %v4099 = vld [vmem:[#allocation7 + $0x7c0] sm:$0xff]
    %v4100 = vld [vmem:[#allocation7 + $0x7c8] sm:$0xff]
    %v4101 = vld [vmem:[#allocation7 + $0x7d0] sm:$0xff]
    %v4102 = vld [vmem:[#allocation7 + $0x7d8] sm:$0xff]
    %v4103 = vld [vmem:[#allocation7 + $0x7e0] sm:$0xff]
    %v4104 = vld [vmem:[#allocation7 + $0x7e8] sm:$0xff]
    %v4105 = vld [vmem:[#allocation7 + $0x7f0] sm:$0xff]
    %v4106 = vld [vmem:[#allocation7 + $0x7f8] sm:$0xff]
    %v4108 = vlaneseq
    %v4109 = vshrl.u32 %v4108, 7
    %v4110 = vsub.s32 0, %v4109
    %v4111 = vrot.slane %v3846, %v4110
    %v4112 = vlaneseq
    %v4113 = vshrl.u32 %v4112, 7
    %v4114 = vsub.s32 1, %v4113
    %v4115 = vrot.slane %v3846, %v4114
    %v4116 = vlaneseq
    %v4117 = vshrl.u32 %v4116, 7
    %v4118 = vsub.s32 2, %v4117
    %v4119 = vrot.slane %v3846, %v4118
    %v4120 = vlaneseq
    %v4121 = vshrl.u32 %v4120, 7
    %v4122 = vsub.s32 3, %v4121
    %v4123 = vrot.slane %v3846, %v4122
    %v4124 = vlaneseq
    %v4125 = vshrl.u32 %v4124, 7
    %v4126 = vsub.s32 4, %v4125
    %v4127 = vrot.slane %v3846, %v4126
    %v4128 = vlaneseq
    %v4129 = vshrl.u32 %v4128, 7
    %v4130 = vsub.s32 5, %v4129
    %v4131 = vrot.slane %v3846, %v4130
    %v4132 = vlaneseq
    %v4133 = vshrl.u32 %v4132, 7
    %v4134 = vsub.s32 6, %v4133
    %v4135 = vrot.slane %v3846, %v4134
    %v4136 = vlaneseq
    %v4137 = vshrl.u32 %v4136, 7
    %v4138 = vsub.s32 7, %v4137
    %v4139 = vrot.slane %v3846, %v4138
    %v4404 = vunpack.c.l.b16 %v3851
    %v4405 = vunpack.c.h.b16 %v3851
    %v4406 = vunpack.c.l.b16 %v3852
    %v4407 = vunpack.c.h.b16 %v3852
    %v4408 = vunpack.c.l.b16 %v3853
    %v4409 = vunpack.c.h.b16 %v3853
    %v4410 = vunpack.c.l.b16 %v3854
    %v4411 = vunpack.c.h.b16 %v3854
    %v4412 = vunpack.c.l.b16 %v3855
    %v4413 = vunpack.c.h.b16 %v3855
    %v4414 = vunpack.c.l.b16 %v3856
    %v4415 = vunpack.c.h.b16 %v3856
    %v4416 = vunpack.c.l.b16 %v3857
    %v4417 = vunpack.c.h.b16 %v3857
    %v4418 = vunpack.c.l.b16 %v3858
    %v4419 = vunpack.c.h.b16 %v3858
    %v4420 = vunpack.c.l.b16 %v3859
    %v4421 = vunpack.c.h.b16 %v3859
    %v4422 = vunpack.c.l.b16 %v3860
    %v4423 = vunpack.c.h.b16 %v3860
    %v4424 = vunpack.c.l.b16 %v3861
    %v4425 = vunpack.c.h.b16 %v3861
    %v4426 = vunpack.c.l.b16 %v3862
    %v4427 = vunpack.c.h.b16 %v3862
    %v4428 = vunpack.c.l.b16 %v3863
    %v4429 = vunpack.c.h.b16 %v3863
    %v4430 = vunpack.c.l.b16 %v3864
    %v4431 = vunpack.c.h.b16 %v3864
    %v4432 = vunpack.c.l.b16 %v3865
    %v4433 = vunpack.c.h.b16 %v3865
    %v4434 = vunpack.c.l.b16 %v3866
    %v4435 = vunpack.c.h.b16 %v3866
    %v4436 = vunpack.c.l.b16 %v3867
    %v4437 = vunpack.c.h.b16 %v3867
    %v4438 = vunpack.c.l.b16 %v3868
    %v4439 = vunpack.c.h.b16 %v3868
    %v4440 = vunpack.c.l.b16 %v3869
    %v4441 = vunpack.c.h.b16 %v3869
    %v4442 = vunpack.c.l.b16 %v3870
    %v4443 = vunpack.c.h.b16 %v3870
    %v4444 = vunpack.c.l.b16 %v3871
    %v4445 = vunpack.c.h.b16 %v3871
    %v4446 = vunpack.c.l.b16 %v3872
    %v4447 = vunpack.c.h.b16 %v3872
    %v4448 = vunpack.c.l.b16 %v3873
    %v4449 = vunpack.c.h.b16 %v3873
    %v4450 = vunpack.c.l.b16 %v3874
    %v4451 = vunpack.c.h.b16 %v3874
    %v4452 = vunpack.c.l.b16 %v3875
    %v4453 = vunpack.c.h.b16 %v3875
    %v4454 = vunpack.c.l.b16 %v3876
    %v4455 = vunpack.c.h.b16 %v3876
    %v4456 = vunpack.c.l.b16 %v3877
    %v4457 = vunpack.c.h.b16 %v3877
    %v4458 = vunpack.c.l.b16 %v3878
    %v4459 = vunpack.c.h.b16 %v3878
    %v4460 = vunpack.c.l.b16 %v3879
    %v4461 = vunpack.c.h.b16 %v3879
    %v4462 = vunpack.c.l.b16 %v3880
    %v4463 = vunpack.c.h.b16 %v3880
    %v4464 = vunpack.c.l.b16 %v3881
    %v4465 = vunpack.c.h.b16 %v3881
    %v4466 = vunpack.c.l.b16 %v3882
    %v4467 = vunpack.c.h.b16 %v3882
    %v4468 = vunpack.c.l.b16 %v3883
    %v4469 = vunpack.c.h.b16 %v3883
    %v4470 = vunpack.c.l.b16 %v3884
    %v4471 = vunpack.c.h.b16 %v3884
    %v4472 = vunpack.c.l.b16 %v3885
    %v4473 = vunpack.c.h.b16 %v3885
    %v4474 = vunpack.c.l.b16 %v3886
    %v4475 = vunpack.c.h.b16 %v3886
    %v4476 = vunpack.c.l.b16 %v3887
    %v4477 = vunpack.c.h.b16 %v3887
    %v4478 = vunpack.c.l.b16 %v3888
    %v4479 = vunpack.c.h.b16 %v3888
    %v4480 = vunpack.c.l.b16 %v3889
    %v4481 = vunpack.c.h.b16 %v3889
    %v4482 = vunpack.c.l.b16 %v3890
    %v4483 = vunpack.c.h.b16 %v3890
    %v4484 = vunpack.c.l.b16 %v3891
    %v4485 = vunpack.c.h.b16 %v3891
    %v4486 = vunpack.c.l.b16 %v3892
    %v4487 = vunpack.c.h.b16 %v3892
    %v4488 = vunpack.c.l.b16 %v3893
    %v4489 = vunpack.c.h.b16 %v3893
    %v4490 = vunpack.c.l.b16 %v3894
    %v4491 = vunpack.c.h.b16 %v3894
    %v4492 = vunpack.c.l.b16 %v3895
    %v4493 = vunpack.c.h.b16 %v3895
    %v4494 = vunpack.c.l.b16 %v3896
    %v4495 = vunpack.c.h.b16 %v3896
    %v4496 = vunpack.c.l.b16 %v3897
    %v4497 = vunpack.c.h.b16 %v3897
    %v4498 = vunpack.c.l.b16 %v3898
    %v4499 = vunpack.c.h.b16 %v3898
    %v4500 = vunpack.c.l.b16 %v3899
    %v4501 = vunpack.c.h.b16 %v3899
    %v4502 = vunpack.c.l.b16 %v3900
    %v4503 = vunpack.c.h.b16 %v3900
    %v4504 = vunpack.c.l.b16 %v3901
    %v4505 = vunpack.c.h.b16 %v3901
    %v4506 = vunpack.c.l.b16 %v3902
    %v4507 = vunpack.c.h.b16 %v3902
    %v4508 = vunpack.c.l.b16 %v3903
    %v4509 = vunpack.c.h.b16 %v3903
    %v4510 = vunpack.c.l.b16 %v3904
    %v4511 = vunpack.c.h.b16 %v3904
    %v4512 = vunpack.c.l.b16 %v3905
    %v4513 = vunpack.c.h.b16 %v3905
    %v4514 = vunpack.c.l.b16 %v3906
    %v4515 = vunpack.c.h.b16 %v3906
    %v4516 = vunpack.c.l.b16 %v3907
    %v4517 = vunpack.c.h.b16 %v3907
    %v4518 = vunpack.c.l.b16 %v3908
    %v4519 = vunpack.c.h.b16 %v3908
    %v4520 = vunpack.c.l.b16 %v3909
    %v4521 = vunpack.c.h.b16 %v3909
    %v4522 = vunpack.c.l.b16 %v3910
    %v4523 = vunpack.c.h.b16 %v3910
    %v4524 = vunpack.c.l.b16 %v3911
    %v4525 = vunpack.c.h.b16 %v3911
    %v4526 = vunpack.c.l.b16 %v3912
    %v4527 = vunpack.c.h.b16 %v3912
    %v4528 = vunpack.c.l.b16 %v3913
    %v4529 = vunpack.c.h.b16 %v3913
    %v4530 = vunpack.c.l.b16 %v3914
    %v4531 = vunpack.c.h.b16 %v3914
    %v4532 = vunpack.c.l.b16 %v3915
    %v4533 = vunpack.c.h.b16 %v3915
    %v4534 = vunpack.c.l.b16 %v3916
    %v4535 = vunpack.c.h.b16 %v3916
    %v4536 = vunpack.c.l.b16 %v3917
    %v4537 = vunpack.c.h.b16 %v3917
    %v4538 = vunpack.c.l.b16 %v3918
    %v4539 = vunpack.c.h.b16 %v3918
    %v4540 = vunpack.c.l.b16 %v3919
    %v4541 = vunpack.c.h.b16 %v3919
    %v4542 = vunpack.c.l.b16 %v3920
    %v4543 = vunpack.c.h.b16 %v3920
    %v4544 = vunpack.c.l.b16 %v3921
    %v4545 = vunpack.c.h.b16 %v3921
    %v4546 = vunpack.c.l.b16 %v3922
    %v4547 = vunpack.c.h.b16 %v3922
    %v4548 = vunpack.c.l.b16 %v3923
    %v4549 = vunpack.c.h.b16 %v3923
    %v4550 = vunpack.c.l.b16 %v3924
    %v4551 = vunpack.c.h.b16 %v3924
    %v4552 = vunpack.c.l.b16 %v3925
    %v4553 = vunpack.c.h.b16 %v3925
    %v4554 = vunpack.c.l.b16 %v3926
    %v4555 = vunpack.c.h.b16 %v3926
    %v4556 = vunpack.c.l.b16 %v3927
    %v4557 = vunpack.c.h.b16 %v3927
    %v4558 = vunpack.c.l.b16 %v3928
    %v4559 = vunpack.c.h.b16 %v3928
    %v4560 = vunpack.c.l.b16 %v3929
    %v4561 = vunpack.c.h.b16 %v3929
    %v4562 = vunpack.c.l.b16 %v3930
    %v4563 = vunpack.c.h.b16 %v3930
    %v4564 = vunpack.c.l.b16 %v3931
    %v4565 = vunpack.c.h.b16 %v3931
    %v4566 = vunpack.c.l.b16 %v3932
    %v4567 = vunpack.c.h.b16 %v3932
    %v4568 = vunpack.c.l.b16 %v3933
    %v4569 = vunpack.c.h.b16 %v3933
    %v4570 = vunpack.c.l.b16 %v3934
    %v4571 = vunpack.c.h.b16 %v3934
    %v4572 = vunpack.c.l.b16 %v3935
    %v4573 = vunpack.c.h.b16 %v3935
    %v4574 = vunpack.c.l.b16 %v3936
    %v4575 = vunpack.c.h.b16 %v3936
    %v4576 = vunpack.c.l.b16 %v3937
    %v4577 = vunpack.c.h.b16 %v3937
    %v4578 = vunpack.c.l.b16 %v3938
    %v4579 = vunpack.c.h.b16 %v3938
    %v4580 = vunpack.c.l.b16 %v3939
    %v4581 = vunpack.c.h.b16 %v3939
    %v4582 = vunpack.c.l.b16 %v3940
    %v4583 = vunpack.c.h.b16 %v3940
    %v4584 = vunpack.c.l.b16 %v3941
    %v4585 = vunpack.c.h.b16 %v3941
    %v4586 = vunpack.c.l.b16 %v3942
    %v4587 = vunpack.c.h.b16 %v3942
    %v4588 = vunpack.c.l.b16 %v3943
    %v4589 = vunpack.c.h.b16 %v3943
    %v4590 = vunpack.c.l.b16 %v3944
    %v4591 = vunpack.c.h.b16 %v3944
    %v4592 = vunpack.c.l.b16 %v3945
    %v4593 = vunpack.c.h.b16 %v3945
    %v4594 = vunpack.c.l.b16 %v3946
    %v4595 = vunpack.c.h.b16 %v3946
    %v4596 = vunpack.c.l.b16 %v3947
    %v4597 = vunpack.c.h.b16 %v3947
    %v4598 = vunpack.c.l.b16 %v3948
    %v4599 = vunpack.c.h.b16 %v3948
    %v4600 = vunpack.c.l.b16 %v3949
    %v4601 = vunpack.c.h.b16 %v3949
    %v4602 = vunpack.c.l.b16 %v3950
    %v4603 = vunpack.c.h.b16 %v3950
    %v4604 = vunpack.c.l.b16 %v3951
    %v4605 = vunpack.c.h.b16 %v3951
    %v4606 = vunpack.c.l.b16 %v3952
    %v4607 = vunpack.c.h.b16 %v3952
    %v4608 = vunpack.c.l.b16 %v3953
    %v4609 = vunpack.c.h.b16 %v3953
    %v4610 = vunpack.c.l.b16 %v3954
    %v4611 = vunpack.c.h.b16 %v3954
    %v4612 = vunpack.c.l.b16 %v3955
    %v4613 = vunpack.c.h.b16 %v3955
    %v4614 = vunpack.c.l.b16 %v3956
    %v4615 = vunpack.c.h.b16 %v3956
    %v4616 = vunpack.c.l.b16 %v3957
    %v4617 = vunpack.c.h.b16 %v3957
    %v4618 = vunpack.c.l.b16 %v3958
    %v4619 = vunpack.c.h.b16 %v3958
    %v4620 = vunpack.c.l.b16 %v3959
    %v4621 = vunpack.c.h.b16 %v3959
    %v4622 = vunpack.c.l.b16 %v3960
    %v4623 = vunpack.c.h.b16 %v3960
    %v4624 = vunpack.c.l.b16 %v3961
    %v4625 = vunpack.c.h.b16 %v3961
    %v4626 = vunpack.c.l.b16 %v3962
    %v4627 = vunpack.c.h.b16 %v3962
    %v4628 = vunpack.c.l.b16 %v3963
    %v4629 = vunpack.c.h.b16 %v3963
    %v4630 = vunpack.c.l.b16 %v3964
    %v4631 = vunpack.c.h.b16 %v3964
    %v4632 = vunpack.c.l.b16 %v3965
    %v4633 = vunpack.c.h.b16 %v3965
    %v4634 = vunpack.c.l.b16 %v3966
    %v4635 = vunpack.c.h.b16 %v3966
    %v4636 = vunpack.c.l.b16 %v3967
    %v4637 = vunpack.c.h.b16 %v3967
    %v4638 = vunpack.c.l.b16 %v3968
    %v4639 = vunpack.c.h.b16 %v3968
    %v4640 = vunpack.c.l.b16 %v3969
    %v4641 = vunpack.c.h.b16 %v3969
    %v4642 = vunpack.c.l.b16 %v3970
    %v4643 = vunpack.c.h.b16 %v3970
    %v4644 = vunpack.c.l.b16 %v3971
    %v4645 = vunpack.c.h.b16 %v3971
    %v4646 = vunpack.c.l.b16 %v3972
    %v4647 = vunpack.c.h.b16 %v3972
    %v4648 = vunpack.c.l.b16 %v3973
    %v4649 = vunpack.c.h.b16 %v3973
    %v4650 = vunpack.c.l.b16 %v3974
    %v4651 = vunpack.c.h.b16 %v3974
    %v4652 = vunpack.c.l.b16 %v3975
    %v4653 = vunpack.c.h.b16 %v3975
    %v4654 = vunpack.c.l.b16 %v3976
    %v4655 = vunpack.c.h.b16 %v3976
    %v4656 = vunpack.c.l.b16 %v3977
    %v4657 = vunpack.c.h.b16 %v3977
    %v4658 = vunpack.c.l.b16 %v3978
    %v4659 = vunpack.c.h.b16 %v3978
    %v4660 = vunpack.c.l.b16 %v3979
    %v4661 = vunpack.c.h.b16 %v3979
    %v4662 = vunpack.c.l.b16 %v3980
    %v4663 = vunpack.c.h.b16 %v3980
    %v4664 = vunpack.c.l.b16 %v3981
    %v4665 = vunpack.c.h.b16 %v3981
    %v4666 = vunpack.c.l.b16 %v3982
    %v4667 = vunpack.c.h.b16 %v3982
    %v4668 = vunpack.c.l.b16 %v3983
    %v4669 = vunpack.c.h.b16 %v3983
    %v4670 = vunpack.c.l.b16 %v3984
    %v4671 = vunpack.c.h.b16 %v3984
    %v4672 = vunpack.c.l.b16 %v3985
    %v4673 = vunpack.c.h.b16 %v3985
    %v4674 = vunpack.c.l.b16 %v3986
    %v4675 = vunpack.c.h.b16 %v3986
    %v4676 = vunpack.c.l.b16 %v3987
    %v4677 = vunpack.c.h.b16 %v3987
    %v4678 = vunpack.c.l.b16 %v3988
    %v4679 = vunpack.c.h.b16 %v3988
    %v4680 = vunpack.c.l.b16 %v3989
    %v4681 = vunpack.c.h.b16 %v3989
    %v4682 = vunpack.c.l.b16 %v3990
    %v4683 = vunpack.c.h.b16 %v3990
    %v4684 = vunpack.c.l.b16 %v3991
    %v4685 = vunpack.c.h.b16 %v3991
    %v4686 = vunpack.c.l.b16 %v3992
    %v4687 = vunpack.c.h.b16 %v3992
    %v4688 = vunpack.c.l.b16 %v3993
    %v4689 = vunpack.c.h.b16 %v3993
    %v4690 = vunpack.c.l.b16 %v3994
    %v4691 = vunpack.c.h.b16 %v3994
    %v4692 = vunpack.c.l.b16 %v3995
    %v4693 = vunpack.c.h.b16 %v3995
    %v4694 = vunpack.c.l.b16 %v3996
    %v4695 = vunpack.c.h.b16 %v3996
    %v4696 = vunpack.c.l.b16 %v3997
    %v4697 = vunpack.c.h.b16 %v3997
    %v4698 = vunpack.c.l.b16 %v3998
    %v4699 = vunpack.c.h.b16 %v3998
    %v4700 = vunpack.c.l.b16 %v3999
    %v4701 = vunpack.c.h.b16 %v3999
    %v4702 = vunpack.c.l.b16 %v4000
    %v4703 = vunpack.c.h.b16 %v4000
    %v4704 = vunpack.c.l.b16 %v4001
    %v4705 = vunpack.c.h.b16 %v4001
    %v4706 = vunpack.c.l.b16 %v4002
    %v4707 = vunpack.c.h.b16 %v4002
    %v4708 = vunpack.c.l.b16 %v4003
    %v4709 = vunpack.c.h.b16 %v4003
    %v4710 = vunpack.c.l.b16 %v4004
    %v4711 = vunpack.c.h.b16 %v4004
    %v4712 = vunpack.c.l.b16 %v4005
    %v4713 = vunpack.c.h.b16 %v4005
    %v4714 = vunpack.c.l.b16 %v4006
    %v4715 = vunpack.c.h.b16 %v4006
    %v4716 = vunpack.c.l.b16 %v4007
    %v4717 = vunpack.c.h.b16 %v4007
    %v4718 = vunpack.c.l.b16 %v4008
    %v4719 = vunpack.c.h.b16 %v4008
    %v4720 = vunpack.c.l.b16 %v4009
    %v4721 = vunpack.c.h.b16 %v4009
    %v4722 = vunpack.c.l.b16 %v4010
    %v4723 = vunpack.c.h.b16 %v4010
    %v4724 = vunpack.c.l.b16 %v4011
    %v4725 = vunpack.c.h.b16 %v4011
    %v4726 = vunpack.c.l.b16 %v4012
    %v4727 = vunpack.c.h.b16 %v4012
    %v4728 = vunpack.c.l.b16 %v4013
    %v4729 = vunpack.c.h.b16 %v4013
    %v4730 = vunpack.c.l.b16 %v4014
    %v4731 = vunpack.c.h.b16 %v4014
    %v4732 = vunpack.c.l.b16 %v4015
    %v4733 = vunpack.c.h.b16 %v4015
    %v4734 = vunpack.c.l.b16 %v4016
    %v4735 = vunpack.c.h.b16 %v4016
    %v4736 = vunpack.c.l.b16 %v4017
    %v4737 = vunpack.c.h.b16 %v4017
    %v4738 = vunpack.c.l.b16 %v4018
    %v4739 = vunpack.c.h.b16 %v4018
    %v4740 = vunpack.c.l.b16 %v4019
    %v4741 = vunpack.c.h.b16 %v4019
    %v4742 = vunpack.c.l.b16 %v4020
    %v4743 = vunpack.c.h.b16 %v4020
    %v4744 = vunpack.c.l.b16 %v4021
    %v4745 = vunpack.c.h.b16 %v4021
    %v4746 = vunpack.c.l.b16 %v4022
    %v4747 = vunpack.c.h.b16 %v4022
    %v4748 = vunpack.c.l.b16 %v4023
    %v4749 = vunpack.c.h.b16 %v4023
    %v4750 = vunpack.c.l.b16 %v4024
    %v4751 = vunpack.c.h.b16 %v4024
    %v4752 = vunpack.c.l.b16 %v4025
    %v4753 = vunpack.c.h.b16 %v4025
    %v4754 = vunpack.c.l.b16 %v4026
    %v4755 = vunpack.c.h.b16 %v4026
    %v4756 = vunpack.c.l.b16 %v4027
    %v4757 = vunpack.c.h.b16 %v4027
    %v4758 = vunpack.c.l.b16 %v4028
    %v4759 = vunpack.c.h.b16 %v4028
    %v4760 = vunpack.c.l.b16 %v4029
    %v4761 = vunpack.c.h.b16 %v4029
    %v4762 = vunpack.c.l.b16 %v4030
    %v4763 = vunpack.c.h.b16 %v4030
    %v4764 = vunpack.c.l.b16 %v4031
    %v4765 = vunpack.c.h.b16 %v4031
    %v4766 = vunpack.c.l.b16 %v4032
    %v4767 = vunpack.c.h.b16 %v4032
    %v4768 = vunpack.c.l.b16 %v4033
    %v4769 = vunpack.c.h.b16 %v4033
    %v4770 = vunpack.c.l.b16 %v4034
    %v4771 = vunpack.c.h.b16 %v4034
    %v4772 = vunpack.c.l.b16 %v4035
    %v4773 = vunpack.c.h.b16 %v4035
    %v4774 = vunpack.c.l.b16 %v4036
    %v4775 = vunpack.c.h.b16 %v4036
    %v4776 = vunpack.c.l.b16 %v4037
    %v4777 = vunpack.c.h.b16 %v4037
    %v4778 = vunpack.c.l.b16 %v4038
    %v4779 = vunpack.c.h.b16 %v4038
    %v4780 = vunpack.c.l.b16 %v4039
    %v4781 = vunpack.c.h.b16 %v4039
    %v4782 = vunpack.c.l.b16 %v4040
    %v4783 = vunpack.c.h.b16 %v4040
    %v4784 = vunpack.c.l.b16 %v4041
    %v4785 = vunpack.c.h.b16 %v4041
    %v4786 = vunpack.c.l.b16 %v4042
    %v4787 = vunpack.c.h.b16 %v4042
    %v4788 = vunpack.c.l.b16 %v4043
    %v4789 = vunpack.c.h.b16 %v4043
    %v4790 = vunpack.c.l.b16 %v4044
    %v4791 = vunpack.c.h.b16 %v4044
    %v4792 = vunpack.c.l.b16 %v4045
    %v4793 = vunpack.c.h.b16 %v4045
    %v4794 = vunpack.c.l.b16 %v4046
    %v4795 = vunpack.c.h.b16 %v4046
    %v4796 = vunpack.c.l.b16 %v4047
    %v4797 = vunpack.c.h.b16 %v4047
    %v4798 = vunpack.c.l.b16 %v4048
    %v4799 = vunpack.c.h.b16 %v4048
    %v4800 = vunpack.c.l.b16 %v4049
    %v4801 = vunpack.c.h.b16 %v4049
    %v4802 = vunpack.c.l.b16 %v4050
    %v4803 = vunpack.c.h.b16 %v4050
    %v4804 = vunpack.c.l.b16 %v4051
    %v4805 = vunpack.c.h.b16 %v4051
    %v4806 = vunpack.c.l.b16 %v4052
    %v4807 = vunpack.c.h.b16 %v4052
    %v4808 = vunpack.c.l.b16 %v4053
    %v4809 = vunpack.c.h.b16 %v4053
    %v4810 = vunpack.c.l.b16 %v4054
    %v4811 = vunpack.c.h.b16 %v4054
    %v4812 = vunpack.c.l.b16 %v4055
    %v4813 = vunpack.c.h.b16 %v4055
    %v4814 = vunpack.c.l.b16 %v4056
    %v4815 = vunpack.c.h.b16 %v4056
    %v4816 = vunpack.c.l.b16 %v4057
    %v4817 = vunpack.c.h.b16 %v4057
    %v4818 = vunpack.c.l.b16 %v4058
    %v4819 = vunpack.c.h.b16 %v4058
    %v4820 = vunpack.c.l.b16 %v4059
    %v4821 = vunpack.c.h.b16 %v4059
    %v4822 = vunpack.c.l.b16 %v4060
    %v4823 = vunpack.c.h.b16 %v4060
    %v4824 = vunpack.c.l.b16 %v4061
    %v4825 = vunpack.c.h.b16 %v4061
    %v4826 = vunpack.c.l.b16 %v4062
    %v4827 = vunpack.c.h.b16 %v4062
    %v4828 = vunpack.c.l.b16 %v4063
    %v4829 = vunpack.c.h.b16 %v4063
    %v4830 = vunpack.c.l.b16 %v4064
    %v4831 = vunpack.c.h.b16 %v4064
    %v4832 = vunpack.c.l.b16 %v4065
    %v4833 = vunpack.c.h.b16 %v4065
    %v4834 = vunpack.c.l.b16 %v4066
    %v4835 = vunpack.c.h.b16 %v4066
    %v4836 = vunpack.c.l.b16 %v4067
    %v4837 = vunpack.c.h.b16 %v4067
    %v4838 = vunpack.c.l.b16 %v4068
    %v4839 = vunpack.c.h.b16 %v4068
    %v4840 = vunpack.c.l.b16 %v4069
    %v4841 = vunpack.c.h.b16 %v4069
    %v4842 = vunpack.c.l.b16 %v4070
    %v4843 = vunpack.c.h.b16 %v4070
    %v4844 = vunpack.c.l.b16 %v4071
    %v4845 = vunpack.c.h.b16 %v4071
    %v4846 = vunpack.c.l.b16 %v4072
    %v4847 = vunpack.c.h.b16 %v4072
    %v4848 = vunpack.c.l.b16 %v4073
    %v4849 = vunpack.c.h.b16 %v4073
    %v4850 = vunpack.c.l.b16 %v4074
    %v4851 = vunpack.c.h.b16 %v4074
    %v4852 = vunpack.c.l.b16 %v4075
    %v4853 = vunpack.c.h.b16 %v4075
    %v4854 = vunpack.c.l.b16 %v4076
    %v4855 = vunpack.c.h.b16 %v4076
    %v4856 = vunpack.c.l.b16 %v4077
    %v4857 = vunpack.c.h.b16 %v4077
    %v4858 = vunpack.c.l.b16 %v4078
    %v4859 = vunpack.c.h.b16 %v4078
    %v4860 = vunpack.c.l.b16 %v4079
    %v4861 = vunpack.c.h.b16 %v4079
    %v4862 = vunpack.c.l.b16 %v4080
    %v4863 = vunpack.c.h.b16 %v4080
    %v4864 = vunpack.c.l.b16 %v4081
    %v4865 = vunpack.c.h.b16 %v4081
    %v4866 = vunpack.c.l.b16 %v4082
    %v4867 = vunpack.c.h.b16 %v4082
    %v4868 = vunpack.c.l.b16 %v4083
    %v4869 = vunpack.c.h.b16 %v4083
    %v4870 = vunpack.c.l.b16 %v4084
    %v4871 = vunpack.c.h.b16 %v4084
    %v4872 = vunpack.c.l.b16 %v4085
    %v4873 = vunpack.c.h.b16 %v4085
    %v4874 = vunpack.c.l.b16 %v4086
    %v4875 = vunpack.c.h.b16 %v4086
    %v4876 = vunpack.c.l.b16 %v4087
    %v4877 = vunpack.c.h.b16 %v4087
    %v4878 = vunpack.c.l.b16 %v4088
    %v4879 = vunpack.c.h.b16 %v4088
    %v4880 = vunpack.c.l.b16 %v4089
    %v4881 = vunpack.c.h.b16 %v4089
    %v4882 = vunpack.c.l.b16 %v4090
    %v4883 = vunpack.c.h.b16 %v4090
    %v4884 = vunpack.c.l.b16 %v4091
    %v4885 = vunpack.c.h.b16 %v4091
    %v4886 = vunpack.c.l.b16 %v4092
    %v4887 = vunpack.c.h.b16 %v4092
    %v4888 = vunpack.c.l.b16 %v4093
    %v4889 = vunpack.c.h.b16 %v4093
    %v4890 = vunpack.c.l.b16 %v4094
    %v4891 = vunpack.c.h.b16 %v4094
    %v4892 = vunpack.c.l.b16 %v4095
    %v4893 = vunpack.c.h.b16 %v4095
    %v4894 = vunpack.c.l.b16 %v4096
    %v4895 = vunpack.c.h.b16 %v4096
    %v4896 = vunpack.c.l.b16 %v4097
    %v4897 = vunpack.c.h.b16 %v4097
    %v4898 = vunpack.c.l.b16 %v4098
    %v4899 = vunpack.c.h.b16 %v4098
    %v4900 = vunpack.c.l.b16 %v4099
    %v4901 = vunpack.c.h.b16 %v4099
    %v4902 = vunpack.c.l.b16 %v4100
    %v4903 = vunpack.c.h.b16 %v4100
    %v4904 = vunpack.c.l.b16 %v4101
    %v4905 = vunpack.c.h.b16 %v4101
    %v4906 = vunpack.c.l.b16 %v4102
    %v4907 = vunpack.c.h.b16 %v4102
    %v4908 = vunpack.c.l.b16 %v4103
    %v4909 = vunpack.c.h.b16 %v4103
    %v4910 = vunpack.c.l.b16 %v4104
    %v4911 = vunpack.c.h.b16 %v4104
    %v4912 = vunpack.c.l.b16 %v4105
    %v4913 = vunpack.c.h.b16 %v4105
    %v4914 = vunpack.c.l.b16 %v4106
    %v4915 = vunpack.c.h.b16 %v4106
    %v4916 = vpack.c.b16 %v4412, %v4404
    %v4917 = vpack.c.b16 %v4413, %v4405
    %v4918 = vpack.c.b16 %v4414, %v4406
    %v4919 = vpack.c.b16 %v4415, %v4407
    %v4920 = vpack.c.b16 %v4416, %v4408
    %v4921 = vpack.c.b16 %v4417, %v4409
    %v4922 = vpack.c.b16 %v4418, %v4410
    %v4923 = vpack.c.b16 %v4419, %v4411
    %v4924 = vpack.c.b16 %v4428, %v4420
    %v4925 = vpack.c.b16 %v4429, %v4421
    %v4926 = vpack.c.b16 %v4430, %v4422
    %v4927 = vpack.c.b16 %v4431, %v4423
    %v4928 = vpack.c.b16 %v4432, %v4424
    %v4929 = vpack.c.b16 %v4433, %v4425
    %v4930 = vpack.c.b16 %v4434, %v4426
    %v4931 = vpack.c.b16 %v4435, %v4427
    %v4932 = vpack.c.b16 %v4444, %v4436
    %v4933 = vpack.c.b16 %v4445, %v4437
    %v4934 = vpack.c.b16 %v4446, %v4438
    %v4935 = vpack.c.b16 %v4447, %v4439
    %v4936 = vpack.c.b16 %v4448, %v4440
    %v4937 = vpack.c.b16 %v4449, %v4441
    %v4938 = vpack.c.b16 %v4450, %v4442
    %v4939 = vpack.c.b16 %v4451, %v4443
    %v4940 = vpack.c.b16 %v4460, %v4452
    %v4941 = vpack.c.b16 %v4461, %v4453
    %v4942 = vpack.c.b16 %v4462, %v4454
    %v4943 = vpack.c.b16 %v4463, %v4455
    %v4944 = vpack.c.b16 %v4464, %v4456
    %v4945 = vpack.c.b16 %v4465, %v4457
    %v4946 = vpack.c.b16 %v4466, %v4458
    %v4947 = vpack.c.b16 %v4467, %v4459
    %v4948 = vpack.c.b16 %v4476, %v4468
    %v4949 = vpack.c.b16 %v4477, %v4469
    %v4950 = vpack.c.b16 %v4478, %v4470
    %v4951 = vpack.c.b16 %v4479, %v4471
    %v4952 = vpack.c.b16 %v4480, %v4472
    %v4953 = vpack.c.b16 %v4481, %v4473
    %v4954 = vpack.c.b16 %v4482, %v4474
    %v4955 = vpack.c.b16 %v4483, %v4475
    %v4956 = vpack.c.b16 %v4492, %v4484
    %v4957 = vpack.c.b16 %v4493, %v4485
    %v4958 = vpack.c.b16 %v4494, %v4486
    %v4959 = vpack.c.b16 %v4495, %v4487
    %v4960 = vpack.c.b16 %v4496, %v4488
    %v4961 = vpack.c.b16 %v4497, %v4489
    %v4962 = vpack.c.b16 %v4498, %v4490
    %v4963 = vpack.c.b16 %v4499, %v4491
    %v4964 = vpack.c.b16 %v4508, %v4500
    %v4965 = vpack.c.b16 %v4509, %v4501
    %v4966 = vpack.c.b16 %v4510, %v4502
    %v4967 = vpack.c.b16 %v4511, %v4503
    %v4968 = vpack.c.b16 %v4512, %v4504
    %v4969 = vpack.c.b16 %v4513, %v4505
    %v4970 = vpack.c.b16 %v4514, %v4506
    %v4971 = vpack.c.b16 %v4515, %v4507
    %v4972 = vpack.c.b16 %v4524, %v4516
    %v4973 = vpack.c.b16 %v4525, %v4517
    %v4974 = vpack.c.b16 %v4526, %v4518
    %v4975 = vpack.c.b16 %v4527, %v4519
    %v4976 = vpack.c.b16 %v4528, %v4520
    %v4977 = vpack.c.b16 %v4529, %v4521
    %v4978 = vpack.c.b16 %v4530, %v4522
    %v4979 = vpack.c.b16 %v4531, %v4523
    %v4980 = vpack.c.b16 %v4540, %v4532
    %v4981 = vpack.c.b16 %v4541, %v4533
    %v4982 = vpack.c.b16 %v4542, %v4534
    %v4983 = vpack.c.b16 %v4543, %v4535
    %v4984 = vpack.c.b16 %v4544, %v4536
    %v4985 = vpack.c.b16 %v4545, %v4537
    %v4986 = vpack.c.b16 %v4546, %v4538
    %v4987 = vpack.c.b16 %v4547, %v4539
    %v4988 = vpack.c.b16 %v4556, %v4548
    %v4989 = vpack.c.b16 %v4557, %v4549
    %v4990 = vpack.c.b16 %v4558, %v4550
    %v4991 = vpack.c.b16 %v4559, %v4551
    %v4992 = vpack.c.b16 %v4560, %v4552
    %v4993 = vpack.c.b16 %v4561, %v4553
    %v4994 = vpack.c.b16 %v4562, %v4554
    %v4995 = vpack.c.b16 %v4563, %v4555
    %v4996 = vpack.c.b16 %v4572, %v4564
    %v4997 = vpack.c.b16 %v4573, %v4565
    %v4998 = vpack.c.b16 %v4574, %v4566
    %v4999 = vpack.c.b16 %v4575, %v4567
    %v5000 = vpack.c.b16 %v4576, %v4568
    %v5001 = vpack.c.b16 %v4577, %v4569
    %v5002 = vpack.c.b16 %v4578, %v4570
    %v5003 = vpack.c.b16 %v4579, %v4571
    %v5004 = vpack.c.b16 %v4588, %v4580
    %v5005 = vpack.c.b16 %v4589, %v4581
    %v5006 = vpack.c.b16 %v4590, %v4582
    %v5007 = vpack.c.b16 %v4591, %v4583
    %v5008 = vpack.c.b16 %v4592, %v4584
    %v5009 = vpack.c.b16 %v4593, %v4585
    %v5010 = vpack.c.b16 %v4594, %v4586
    %v5011 = vpack.c.b16 %v4595, %v4587
    %v5012 = vpack.c.b16 %v4604, %v4596
    %v5013 = vpack.c.b16 %v4605, %v4597
    %v5014 = vpack.c.b16 %v4606, %v4598
    %v5015 = vpack.c.b16 %v4607, %v4599
    %v5016 = vpack.c.b16 %v4608, %v4600
    %v5017 = vpack.c.b16 %v4609, %v4601
    %v5018 = vpack.c.b16 %v4610, %v4602
    %v5019 = vpack.c.b16 %v4611, %v4603
    %v5020 = vpack.c.b16 %v4620, %v4612
    %v5021 = vpack.c.b16 %v4621, %v4613
    %v5022 = vpack.c.b16 %v4622, %v4614
    %v5023 = vpack.c.b16 %v4623, %v4615
    %v5024 = vpack.c.b16 %v4624, %v4616
    %v5025 = vpack.c.b16 %v4625, %v4617
    %v5026 = vpack.c.b16 %v4626, %v4618
    %v5027 = vpack.c.b16 %v4627, %v4619
    %v5028 = vpack.c.b16 %v4636, %v4628
    %v5029 = vpack.c.b16 %v4637, %v4629
    %v5030 = vpack.c.b16 %v4638, %v4630
    %v5031 = vpack.c.b16 %v4639, %v4631
    %v5032 = vpack.c.b16 %v4640, %v4632
    %v5033 = vpack.c.b16 %v4641, %v4633
    %v5034 = vpack.c.b16 %v4642, %v4634
    %v5035 = vpack.c.b16 %v4643, %v4635
    %v5036 = vpack.c.b16 %v4652, %v4644
    %v5037 = vpack.c.b16 %v4653, %v4645
    %v5038 = vpack.c.b16 %v4654, %v4646
    %v5039 = vpack.c.b16 %v4655, %v4647
    %v5040 = vpack.c.b16 %v4656, %v4648
    %v5041 = vpack.c.b16 %v4657, %v4649
    %v5042 = vpack.c.b16 %v4658, %v4650
    %v5043 = vpack.c.b16 %v4659, %v4651
    %v5044 = vpack.c.b16 %v4668, %v4660
    %v5045 = vpack.c.b16 %v4669, %v4661
    %v5046 = vpack.c.b16 %v4670, %v4662
    %v5047 = vpack.c.b16 %v4671, %v4663
    %v5048 = vpack.c.b16 %v4672, %v4664
    %v5049 = vpack.c.b16 %v4673, %v4665
    %v5050 = vpack.c.b16 %v4674, %v4666
    %v5051 = vpack.c.b16 %v4675, %v4667
    %v5052 = vpack.c.b16 %v4684, %v4676
    %v5053 = vpack.c.b16 %v4685, %v4677
    %v5054 = vpack.c.b16 %v4686, %v4678
    %v5055 = vpack.c.b16 %v4687, %v4679
    %v5056 = vpack.c.b16 %v4688, %v4680
    %v5057 = vpack.c.b16 %v4689, %v4681
    %v5058 = vpack.c.b16 %v4690, %v4682
    %v5059 = vpack.c.b16 %v4691, %v4683
    %v5060 = vpack.c.b16 %v4700, %v4692
    %v5061 = vpack.c.b16 %v4701, %v4693
    %v5062 = vpack.c.b16 %v4702, %v4694
    %v5063 = vpack.c.b16 %v4703, %v4695
    %v5064 = vpack.c.b16 %v4704, %v4696
    %v5065 = vpack.c.b16 %v4705, %v4697
    %v5066 = vpack.c.b16 %v4706, %v4698
    %v5067 = vpack.c.b16 %v4707, %v4699
    %v5068 = vpack.c.b16 %v4716, %v4708
    %v5069 = vpack.c.b16 %v4717, %v4709
    %v5070 = vpack.c.b16 %v4718, %v4710
    %v5071 = vpack.c.b16 %v4719, %v4711
    %v5072 = vpack.c.b16 %v4720, %v4712
    %v5073 = vpack.c.b16 %v4721, %v4713
    %v5074 = vpack.c.b16 %v4722, %v4714
    %v5075 = vpack.c.b16 %v4723, %v4715
    %v5076 = vpack.c.b16 %v4732, %v4724
    %v5077 = vpack.c.b16 %v4733, %v4725
    %v5078 = vpack.c.b16 %v4734, %v4726
    %v5079 = vpack.c.b16 %v4735, %v4727
    %v5080 = vpack.c.b16 %v4736, %v4728
    %v5081 = vpack.c.b16 %v4737, %v4729
    %v5082 = vpack.c.b16 %v4738, %v4730
    %v5083 = vpack.c.b16 %v4739, %v4731
    %v5084 = vpack.c.b16 %v4748, %v4740
    %v5085 = vpack.c.b16 %v4749, %v4741
    %v5086 = vpack.c.b16 %v4750, %v4742
    %v5087 = vpack.c.b16 %v4751, %v4743
    %v5088 = vpack.c.b16 %v4752, %v4744
    %v5089 = vpack.c.b16 %v4753, %v4745
    %v5090 = vpack.c.b16 %v4754, %v4746
    %v5091 = vpack.c.b16 %v4755, %v4747
    %v5092 = vpack.c.b16 %v4764, %v4756
    %v5093 = vpack.c.b16 %v4765, %v4757
    %v5094 = vpack.c.b16 %v4766, %v4758
    %v5095 = vpack.c.b16 %v4767, %v4759
    %v5096 = vpack.c.b16 %v4768, %v4760
    %v5097 = vpack.c.b16 %v4769, %v4761
    %v5098 = vpack.c.b16 %v4770, %v4762
    %v5099 = vpack.c.b16 %v4771, %v4763
    %v5100 = vpack.c.b16 %v4780, %v4772
    %v5101 = vpack.c.b16 %v4781, %v4773
    %v5102 = vpack.c.b16 %v4782, %v4774
    %v5103 = vpack.c.b16 %v4783, %v4775
    %v5104 = vpack.c.b16 %v4784, %v4776
    %v5105 = vpack.c.b16 %v4785, %v4777
    %v5106 = vpack.c.b16 %v4786, %v4778
    %v5107 = vpack.c.b16 %v4787, %v4779
    %v5108 = vpack.c.b16 %v4796, %v4788
    %v5109 = vpack.c.b16 %v4797, %v4789
    %v5110 = vpack.c.b16 %v4798, %v4790
    %v5111 = vpack.c.b16 %v4799, %v4791
    %v5112 = vpack.c.b16 %v4800, %v4792
    %v5113 = vpack.c.b16 %v4801, %v4793
    %v5114 = vpack.c.b16 %v4802, %v4794
    %v5115 = vpack.c.b16 %v4803, %v4795
    %v5116 = vpack.c.b16 %v4812, %v4804
    %v5117 = vpack.c.b16 %v4813, %v4805
    %v5118 = vpack.c.b16 %v4814, %v4806
    %v5119 = vpack.c.b16 %v4815, %v4807
    %v5120 = vpack.c.b16 %v4816, %v4808
    %v5121 = vpack.c.b16 %v4817, %v4809
    %v5122 = vpack.c.b16 %v4818, %v4810
    %v5123 = vpack.c.b16 %v4819, %v4811
    %v5124 = vpack.c.b16 %v4828, %v4820
    %v5125 = vpack.c.b16 %v4829, %v4821
    %v5126 = vpack.c.b16 %v4830, %v4822
    %v5127 = vpack.c.b16 %v4831, %v4823
    %v5128 = vpack.c.b16 %v4832, %v4824
    %v5129 = vpack.c.b16 %v4833, %v4825
    %v5130 = vpack.c.b16 %v4834, %v4826
    %v5131 = vpack.c.b16 %v4835, %v4827
    %v5132 = vpack.c.b16 %v4844, %v4836
    %v5133 = vpack.c.b16 %v4845, %v4837
    %v5134 = vpack.c.b16 %v4846, %v4838
    %v5135 = vpack.c.b16 %v4847, %v4839
    %v5136 = vpack.c.b16 %v4848, %v4840
    %v5137 = vpack.c.b16 %v4849, %v4841
    %v5138 = vpack.c.b16 %v4850, %v4842
    %v5139 = vpack.c.b16 %v4851, %v4843
    %v5140 = vpack.c.b16 %v4860, %v4852
    %v5141 = vpack.c.b16 %v4861, %v4853
    %v5142 = vpack.c.b16 %v4862, %v4854
    %v5143 = vpack.c.b16 %v4863, %v4855
    %v5144 = vpack.c.b16 %v4864, %v4856
    %v5145 = vpack.c.b16 %v4865, %v4857
    %v5146 = vpack.c.b16 %v4866, %v4858
    %v5147 = vpack.c.b16 %v4867, %v4859
    %v5148 = vpack.c.b16 %v4876, %v4868
    %v5149 = vpack.c.b16 %v4877, %v4869
    %v5150 = vpack.c.b16 %v4878, %v4870
    %v5151 = vpack.c.b16 %v4879, %v4871
    %v5152 = vpack.c.b16 %v4880, %v4872
    %v5153 = vpack.c.b16 %v4881, %v4873
    %v5154 = vpack.c.b16 %v4882, %v4874
    %v5155 = vpack.c.b16 %v4883, %v4875
    %v5156 = vpack.c.b16 %v4892, %v4884
    %v5157 = vpack.c.b16 %v4893, %v4885
    %v5158 = vpack.c.b16 %v4894, %v4886
    %v5159 = vpack.c.b16 %v4895, %v4887
    %v5160 = vpack.c.b16 %v4896, %v4888
    %v5161 = vpack.c.b16 %v4897, %v4889
    %v5162 = vpack.c.b16 %v4898, %v4890
    %v5163 = vpack.c.b16 %v4899, %v4891
    %v5164 = vpack.c.b16 %v4908, %v4900
    %v5165 = vpack.c.b16 %v4909, %v4901
    %v5166 = vpack.c.b16 %v4910, %v4902
    %v5167 = vpack.c.b16 %v4911, %v4903
    %v5168 = vpack.c.b16 %v4912, %v4904
    %v5169 = vpack.c.b16 %v4913, %v4905
    %v5170 = vpack.c.b16 %v4914, %v4906
    %v5171 = vpack.c.b16 %v4915, %v4907
    %5428 = vmatprep.subr.bf16.mxu0 %v4917
    %5429 = vmatpush1.bf16.msra.mxu0 %v4916
    %5430 = vmatprep.subr.bf16.mxu0 %v4925
    %5431 = vmatpush1.bf16.msra.mxu0 %v4924
    %5432 = vmatprep.subr.bf16.mxu0 %v4933
    %5433 = vmatpush1.bf16.msra.mxu0 %v4932
    %5434 = vmatprep.subr.bf16.mxu0 %v4941
    %5435 = vmatpush1.bf16.msra.mxu0 %v4940
    %5436 = vmatprep.subr.bf16.mxu0 %v4949
    %5437 = vmatpush1.bf16.msra.mxu0 %v4948
    %5438 = vmatprep.subr.bf16.mxu0 %v4957
    %5439 = vmatpush1.bf16.msra.mxu0 %v4956
    %5440 = vmatprep.subr.bf16.mxu0 %v4965
    %5441 = vmatpush1.bf16.msra.mxu0 %v4964
    %5442 = vmatprep.subr.bf16.mxu0 %v4973
    %5443 = vmatpush1.bf16.msra.mxu0 %v4972
    %5444 = vmatprep.subr.bf16.mxu0 %v4981
    %5445 = vmatpush1.bf16.msra.mxu0 %v4980
    %5446 = vmatprep.subr.bf16.mxu0 %v4989
    %5447 = vmatpush1.bf16.msra.mxu0 %v4988
    %5448 = vmatprep.subr.bf16.mxu0 %v4997
    %5449 = vmatpush1.bf16.msra.mxu0 %v4996
    %5450 = vmatprep.subr.bf16.mxu0 %v5005
    %5451 = vmatpush1.bf16.msra.mxu0 %v5004
    %5452 = vmatprep.subr.bf16.mxu0 %v5013
    %5453 = vmatpush1.bf16.msra.mxu0 %v5012
    %5454 = vmatprep.subr.bf16.mxu0 %v5021
    %5455 = vmatpush1.bf16.msra.mxu0 %v5020
    %5456 = vmatprep.subr.bf16.mxu0 %v5029
    %5457 = vmatpush1.bf16.msra.mxu0 %v5028
    %5458 = vmatprep.subr.bf16.mxu0 %v5037
    %5459 = vmatpush1.bf16.msra.mxu0 %v5036
    %5460 = vmatprep.mubr.bf16.mxu0 %v3848
    %5461 = vmatmul.mubr.bf16.gmra.mrb[0].mxu0 %v3847
    %v5462 = vpop.f32.mrb[0].mxu0
    %v5463 = vadd.f32 %v4111, %v5462
    %v5464 = vpop.f32.mrb[0].mxu0
    %v5465 = vadd.f32 %v4115, %v5464
    %v5466 = vpop.f32.mrb[0].mxu0
    %v5467 = vpop.f32.mrb[0].mxu0
    %5468 = vdwg.mxu0
    %5469 = vmatprep.subr.bf16.mxu0 %v5045
    %5470 = vmatpush1.bf16.msra.mxu0 %v5044
    %5471 = vmatprep.subr.bf16.mxu0 %v5053
    %5472 = vmatpush1.bf16.msra.mxu0 %v5052
    %5473 = vmatprep.subr.bf16.mxu0 %v5061
    %5474 = vmatpush1.bf16.msra.mxu0 %v5060
    %5475 = vmatprep.subr.bf16.mxu0 %v5069
    %5476 = vmatpush1.bf16.msra.mxu0 %v5068
    %5477 = vmatprep.subr.bf16.mxu0 %v5077
    %5478 = vmatpush1.bf16.msra.mxu0 %v5076
    %5479 = vmatprep.subr.bf16.mxu0 %v5085
    %5480 = vmatpush1.bf16.msra.mxu0 %v5084
    %5481 = vmatprep.subr.bf16.mxu0 %v5093
    %5482 = vmatpush1.bf16.msra.mxu0 %v5092
    %5483 = vmatprep.subr.bf16.mxu0 %v5101
    %5484 = vmatpush1.bf16.msra.mxu0 %v5100
    %5485 = vmatprep.subr.bf16.mxu0 %v5109
    %5486 = vmatpush1.bf16.msra.mxu0 %v5108
    %5487 = vmatprep.subr.bf16.mxu0 %v5117
    %5488 = vmatpush1.bf16.msra.mxu0 %v5116
    %5489 = vmatprep.subr.bf16.mxu0 %v5125
    %5490 = vmatpush1.bf16.msra.mxu0 %v5124
    %5491 = vmatprep.subr.bf16.mxu0 %v5133
    %5492 = vmatpush1.bf16.msra.mxu0 %v5132
    %5493 = vmatprep.subr.bf16.mxu0 %v5141
    %5494 = vmatpush1.bf16.msra.mxu0 %v5140
    %5495 = vmatprep.subr.bf16.mxu0 %v5149
    %5496 = vmatpush1.bf16.msra.mxu0 %v5148
    %5497 = vmatprep.subr.bf16.mxu0 %v5157
    %5498 = vmatpush1.bf16.msra.mxu0 %v5156
    %5499 = vmatprep.subr.bf16.mxu0 %v5165
    %5500 = vmatpush1.bf16.msra.mxu0 %v5164
    %5501 = vmatprep.mubr.bf16.mxu0 %v3850
    %5502 = vmatmul.mubr.bf16.gmra.mrb[0].mxu0 %v3849
    %v5503 = vpop.f32.mrb[0].mxu0
    %v5504 = vadd.f32 %v5463, %v5503
    %v5505 = vpop.f32.mrb[0].mxu0
    %v5506 = vadd.f32 %v5465, %v5505
    %v5507 = vpop.f32.mrb[0].mxu0
    %v5508 = vpop.f32.mrb[0].mxu0
    %5509 = vdwg.mxu0
    %5510 = vmatprep.subr.bf16.mxu0 %v4919
    %5511 = vmatpush1.bf16.msra.mxu0 %v4918
    %5512 = vmatprep.subr.bf16.mxu0 %v4927
    %5513 = vmatpush1.bf16.msra.mxu0 %v4926
    %5514 = vmatprep.subr.bf16.mxu0 %v4935
    %5515 = vmatpush1.bf16.msra.mxu0 %v4934
    %5516 = vmatprep.subr.bf16.mxu0 %v4943
    %5517 = vmatpush1.bf16.msra.mxu0 %v4942
    %5518 = vmatprep.subr.bf16.mxu0 %v4951
    %5519 = vmatpush1.bf16.msra.mxu0 %v4950
    %5520 = vmatprep.subr.bf16.mxu0 %v4959
    %5521 = vmatpush1.bf16.msra.mxu0 %v4958
    %5522 = vmatprep.subr.bf16.mxu0 %v4967
    %5523 = vmatpush1.bf16.msra.mxu0 %v4966
    %5524 = vmatprep.subr.bf16.mxu0 %v4975
    %5525 = vmatpush1.bf16.msra.mxu0 %v4974
    %5526 = vmatprep.subr.bf16.mxu0 %v4983
    %5527 = vmatpush1.bf16.msra.mxu0 %v4982
    %5528 = vmatprep.subr.bf16.mxu0 %v4991
    %5529 = vmatpush1.bf16.msra.mxu0 %v4990
    %5530 = vmatprep.subr.bf16.mxu0 %v4999
    %5531 = vmatpush1.bf16.msra.mxu0 %v4998
    %5532 = vmatprep.subr.bf16.mxu0 %v5007
    %5533 = vmatpush1.bf16.msra.mxu0 %v5006
    %5534 = vmatprep.subr.bf16.mxu0 %v5015
    %5535 = vmatpush1.bf16.msra.mxu0 %v5014
    %5536 = vmatprep.subr.bf16.mxu0 %v5023
    %5537 = vmatpush1.bf16.msra.mxu0 %v5022
    %5538 = vmatprep.subr.bf16.mxu0 %v5031
    %5539 = vmatpush1.bf16.msra.mxu0 %v5030
    %5540 = vmatprep.subr.bf16.mxu0 %v5039
    %5541 = vmatpush1.bf16.msra.mxu0 %v5038
    %5542 = vmatprep.mubr.bf16.mxu0 %v3848
    %5543 = vmatmul.mubr.bf16.gmra.mrb[0].mxu0 %v3847
    %v5544 = vpop.f32.mrb[0].mxu0
    %v5545 = vadd.f32 %v4119, %v5544
    %v5546 = vpop.f32.mrb[0].mxu0
    %v5547 = vadd.f32 %v4123, %v5546
    %v5548 = vpop.f32.mrb[0].mxu0
    %v5549 = vpop.f32.mrb[0].mxu0
    %5550 = vdwg.mxu0
    %5551 = vmatprep.subr.bf16.mxu0 %v5047
    %5552 = vmatpush1.bf16.msra.mxu0 %v5046
    %5553 = vmatprep.subr.bf16.mxu0 %v5055
    %5554 = vmatpush1.bf16.msra.mxu0 %v5054
    %5555 = vmatprep.subr.bf16.mxu0 %v5063
    %5556 = vmatpush1.bf16.msra.mxu0 %v5062
    %5557 = vmatprep.subr.bf16.mxu0 %v5071
    %5558 = vmatpush1.bf16.msra.mxu0 %v5070
    %5559 = vmatprep.subr.bf16.mxu0 %v5079
    %5560 = vmatpush1.bf16.msra.mxu0 %v5078
    %5561 = vmatprep.subr.bf16.mxu0 %v5087
    %5562 = vmatpush1.bf16.msra.mxu0 %v5086
    %5563 = vmatprep.subr.bf16.mxu0 %v5095
    %5564 = vmatpush1.bf16.msra.mxu0 %v5094
    %5565 = vmatprep.subr.bf16.mxu0 %v5103
    %5566 = vmatpush1.bf16.msra.mxu0 %v5102
    %5567 = vmatprep.subr.bf16.mxu0 %v5111
    %5568 = vmatpush1.bf16.msra.mxu0 %v5110
    %5569 = vmatprep.subr.bf16.mxu0 %v5119
    %5570 = vmatpush1.bf16.msra.mxu0 %v5118
    %5571 = vmatprep.subr.bf16.mxu0 %v5127
    %5572 = vmatpush1.bf16.msra.mxu0 %v5126
    %5573 = vmatprep.subr.bf16.mxu0 %v5135
    %5574 = vmatpush1.bf16.msra.mxu0 %v5134
    %5575 = vmatprep.subr.bf16.mxu0 %v5143
    %5576 = vmatpush1.bf16.msra.mxu0 %v5142
    %5577 = vmatprep.subr.bf16.mxu0 %v5151
    %5578 = vmatpush1.bf16.msra.mxu0 %v5150
    %5579 = vmatprep.subr.bf16.mxu0 %v5159
    %5580 = vmatpush1.bf16.msra.mxu0 %v5158
    %5581 = vmatprep.subr.bf16.mxu0 %v5167
    %5582 = vmatpush1.bf16.msra.mxu0 %v5166
    %5583 = vmatprep.mubr.bf16.mxu0 %v3850
    %5584 = vmatmul.mubr.bf16.gmra.mrb[0].mxu0 %v3849
    %v5585 = vpop.f32.mrb[0].mxu0
    %v5586 = vadd.f32 %v5545, %v5585
    %v5587 = vpop.f32.mrb[0].mxu0
    %v5588 = vadd.f32 %v5547, %v5587
    %v5589 = vpop.f32.mrb[0].mxu0
    %v5590 = vpop.f32.mrb[0].mxu0
    %5591 = vdwg.mxu0
    %5592 = vmatprep.subr.bf16.mxu0 %v4921
    %5593 = vmatpush1.bf16.msra.mxu0 %v4920
    %5594 = vmatprep.subr.bf16.mxu0 %v4929
    %5595 = vmatpush1.bf16.msra.mxu0 %v4928
    %5596 = vmatprep.subr.bf16.mxu0 %v4937
    %5597 = vmatpush1.bf16.msra.mxu0 %v4936
    %5598 = vmatprep.subr.bf16.mxu0 %v4945
    %5599 = vmatpush1.bf16.msra.mxu0 %v4944
    %5600 = vmatprep.subr.bf16.mxu0 %v4953
    %5601 = vmatpush1.bf16.msra.mxu0 %v4952
    %5602 = vmatprep.subr.bf16.mxu0 %v4961
    %5603 = vmatpush1.bf16.msra.mxu0 %v4960
    %5604 = vmatprep.subr.bf16.mxu0 %v4969
    %5605 = vmatpush1.bf16.msra.mxu0 %v4968
    %5606 = vmatprep.subr.bf16.mxu0 %v4977
    %5607 = vmatpush1.bf16.msra.mxu0 %v4976
    %5608 = vmatprep.subr.bf16.mxu0 %v4985
    %5609 = vmatpush1.bf16.msra.mxu0 %v4984
    %5610 = vmatprep.subr.bf16.mxu0 %v4993
    %5611 = vmatpush1.bf16.msra.mxu0 %v4992
    %5612 = vmatprep.subr.bf16.mxu0 %v5001
    %5613 = vmatpush1.bf16.msra.mxu0 %v5000
    %5614 = vmatprep.subr.bf16.mxu0 %v5009
    %5615 = vmatpush1.bf16.msra.mxu0 %v5008
    %5616 = vmatprep.subr.bf16.mxu0 %v5017
    %5617 = vmatpush1.bf16.msra.mxu0 %v5016
    %5618 = vmatprep.subr.bf16.mxu0 %v5025
    %5619 = vmatpush1.bf16.msra.mxu0 %v5024
    %5620 = vmatprep.subr.bf16.mxu0 %v5033
    %5621 = vmatpush1.bf16.msra.mxu0 %v5032
    %5622 = vmatprep.subr.bf16.mxu0 %v5041
    %5623 = vmatpush1.bf16.msra.mxu0 %v5040
    %5624 = vmatprep.mubr.bf16.mxu0 %v3848
    %5625 = vmatmul.mubr.bf16.gmra.mrb[0].mxu0 %v3847
    %v5626 = vpop.f32.mrb[0].mxu0
    %v5627 = vadd.f32 %v4127, %v5626
    %v5628 = vpop.f32.mrb[0].mxu0
    %v5629 = vadd.f32 %v4131, %v5628
    %v5630 = vpop.f32.mrb[0].mxu0
    %v5631 = vpop.f32.mrb[0].mxu0
    %5632 = vdwg.mxu0
    %5633 = vmatprep.subr.bf16.mxu0 %v5049
    %5634 = vmatpush1.bf16.msra.mxu0 %v5048
    %5635 = vmatprep.subr.bf16.mxu0 %v5057
    %5636 = vmatpush1.bf16.msra.mxu0 %v5056
    %5637 = vmatprep.subr.bf16.mxu0 %v5065
    %5638 = vmatpush1.bf16.msra.mxu0 %v5064
    %5639 = vmatprep.subr.bf16.mxu0 %v5073
    %5640 = vmatpush1.bf16.msra.mxu0 %v5072
    %5641 = vmatprep.subr.bf16.mxu0 %v5081
    %5642 = vmatpush1.bf16.msra.mxu0 %v5080
    %5643 = vmatprep.subr.bf16.mxu0 %v5089
    %5644 = vmatpush1.bf16.msra.mxu0 %v5088
    %5645 = vmatprep.subr.bf16.mxu0 %v5097
    %5646 = vmatpush1.bf16.msra.mxu0 %v5096
    %5647 = vmatprep.subr.bf16.mxu0 %v5105
    %5648 = vmatpush1.bf16.msra.mxu0 %v5104
    %5649 = vmatprep.subr.bf16.mxu0 %v5113
    %5650 = vmatpush1.bf16.msra.mxu0 %v5112
    %5651 = vmatprep.subr.bf16.mxu0 %v5121
    %5652 = vmatpush1.bf16.msra.mxu0 %v5120
    %5653 = vmatprep.subr.bf16.mxu0 %v5129
    %5654 = vmatpush1.bf16.msra.mxu0 %v5128
    %5655 = vmatprep.subr.bf16.mxu0 %v5137
    %5656 = vmatpush1.bf16.msra.mxu0 %v5136
    %5657 = vmatprep.subr.bf16.mxu0 %v5145
    %5658 = vmatpush1.bf16.msra.mxu0 %v5144
    %5659 = vmatprep.subr.bf16.mxu0 %v5153
    %5660 = vmatpush1.bf16.msra.mxu0 %v5152
    %5661 = vmatprep.subr.bf16.mxu0 %v5161
    %5662 = vmatpush1.bf16.msra.mxu0 %v5160
    %5663 = vmatprep.subr.bf16.mxu0 %v5169
    %5664 = vmatpush1.bf16.msra.mxu0 %v5168
    %5665 = vmatprep.mubr.bf16.mxu0 %v3850
    %5666 = vmatmul.mubr.bf16.gmra.mrb[0].mxu0 %v3849
    %v5667 = vpop.f32.mrb[0].mxu0
    %v5668 = vadd.f32 %v5627, %v5667
    %v5669 = vpop.f32.mrb[0].mxu0
    %v5670 = vadd.f32 %v5629, %v5669
    %v5671 = vpop.f32.mrb[0].mxu0
    %v5672 = vpop.f32.mrb[0].mxu0
    %5673 = vdwg.mxu0
    %5674 = vmatprep.subr.bf16.mxu0 %v4923
    %5675 = vmatpush1.bf16.msra.mxu0 %v4922
    %5676 = vmatprep.subr.bf16.mxu0 %v4931
    %5677 = vmatpush1.bf16.msra.mxu0 %v4930
    %5678 = vmatprep.subr.bf16.mxu0 %v4939
    %5679 = vmatpush1.bf16.msra.mxu0 %v4938
    %5680 = vmatprep.subr.bf16.mxu0 %v4947
    %5681 = vmatpush1.bf16.msra.mxu0 %v4946
    %5682 = vmatprep.subr.bf16.mxu0 %v4955
    %5683 = vmatpush1.bf16.msra.mxu0 %v4954
    %5684 = vmatprep.subr.bf16.mxu0 %v4963
    %5685 = vmatpush1.bf16.msra.mxu0 %v4962
    %5686 = vmatprep.subr.bf16.mxu0 %v4971
    %5687 = vmatpush1.bf16.msra.mxu0 %v4970
    %5688 = vmatprep.subr.bf16.mxu0 %v4979
    %5689 = vmatpush1.bf16.msra.mxu0 %v4978
    %5690 = vmatprep.subr.bf16.mxu0 %v4987
    %5691 = vmatpush1.bf16.msra.mxu0 %v4986
    %5692 = vmatprep.subr.bf16.mxu0 %v4995
    %5693 = vmatpush1.bf16.msra.mxu0 %v4994
    %5694 = vmatprep.subr.bf16.mxu0 %v5003
    %5695 = vmatpush1.bf16.msra.mxu0 %v5002
    %5696 = vmatprep.subr.bf16.mxu0 %v5011
    %5697 = vmatpush1.bf16.msra.mxu0 %v5010
    %5698 = vmatprep.subr.bf16.mxu0 %v5019
    %5699 = vmatpush1.bf16.msra.mxu0 %v5018
    %5700 = vmatprep.subr.bf16.mxu0 %v5027
    %5701 = vmatpush1.bf16.msra.mxu0 %v5026
    %5702 = vmatprep.subr.bf16.mxu0 %v5035
    %5703 = vmatpush1.bf16.msra.mxu0 %v5034
    %5704 = vmatprep.subr.bf16.mxu0 %v5043
    %5705 = vmatpush1.bf16.msra.mxu0 %v5042
    %5706 = vmatprep.mubr.bf16.mxu0 %v3848
    %5707 = vmatmul.mubr.bf16.gmra.mrb[0].mxu0 %v3847
    %v5708 = vpop.f32.mrb[0].mxu0
    %v5709 = vadd.f32 %v4135, %v5708
    %v5710 = vpop.f32.mrb[0].mxu0
    %v5711 = vadd.f32 %v4139, %v5710
    %v5712 = vpop.f32.mrb[0].mxu0
    %v5713 = vpop.f32.mrb[0].mxu0
    %5714 = vdwg.mxu0
    %5715 = vmatprep.subr.bf16.mxu0 %v5051
    %5716 = vmatpush1.bf16.msra.mxu0 %v5050
    %5717 = vmatprep.subr.bf16.mxu0 %v5059
    %5718 = vmatpush1.bf16.msra.mxu0 %v5058
    %5719 = vmatprep.subr.bf16.mxu0 %v5067
    %5720 = vmatpush1.bf16.msra.mxu0 %v5066
    %5721 = vmatprep.subr.bf16.mxu0 %v5075
    %5722 = vmatpush1.bf16.msra.mxu0 %v5074
    %5723 = vmatprep.subr.bf16.mxu0 %v5083
    %5724 = vmatpush1.bf16.msra.mxu0 %v5082
    %5725 = vmatprep.subr.bf16.mxu0 %v5091
    %5726 = vmatpush1.bf16.msra.mxu0 %v5090
    %5727 = vmatprep.subr.bf16.mxu0 %v5099
    %5728 = vmatpush1.bf16.msra.mxu0 %v5098
    %5729 = vmatprep.subr.bf16.mxu0 %v5107
    %5730 = vmatpush1.bf16.msra.mxu0 %v5106
    %5731 = vmatprep.subr.bf16.mxu0 %v5115
    %5732 = vmatpush1.bf16.msra.mxu0 %v5114
    %5733 = vmatprep.subr.bf16.mxu0 %v5123
    %5734 = vmatpush1.bf16.msra.mxu0 %v5122
    %5735 = vmatprep.subr.bf16.mxu0 %v5131
    %5736 = vmatpush1.bf16.msra.mxu0 %v5130
    %5737 = vmatprep.subr.bf16.mxu0 %v5139
    %5738 = vmatpush1.bf16.msra.mxu0 %v5138
    %5739 = vmatprep.subr.bf16.mxu0 %v5147
    %5740 = vmatpush1.bf16.msra.mxu0 %v5146
    %5741 = vmatprep.subr.bf16.mxu0 %v5155
    %5742 = vmatpush1.bf16.msra.mxu0 %v5154
    %5743 = vmatprep.subr.bf16.mxu0 %v5163
    %5744 = vmatpush1.bf16.msra.mxu0 %v5162
    %5745 = vmatprep.subr.bf16.mxu0 %v5171
    %5746 = vmatpush1.bf16.msra.mxu0 %v5170
    %5747 = vmatprep.mubr.bf16.mxu0 %v3850
    %5748 = vmatmul.mubr.bf16.gmra.mrb[0].mxu0 %v3849
    %v5749 = vpop.f32.mrb[0].mxu0
    %v5750 = vadd.f32 %v5709, %v5749
    %v5751 = vpop.f32.mrb[0].mxu0
    %v5752 = vadd.f32 %v5711, %v5751
    %v5753 = vpop.f32.mrb[0].mxu0
    %v5754 = vpop.f32.mrb[0].mxu0
    %5755 = vdwg.mxu0
    %v5756 = vsub.f32 0.0, %v5504
    %v5757 = vsub.f32 0.0, %v5506
    %v5758 = vsub.f32 0.0, %v5586
    %v5759 = vsub.f32 0.0, %v5588
    %v5760 = vsub.f32 0.0, %v5668
    %v5761 = vsub.f32 0.0, %v5670
    %v5762 = vsub.f32 0.0, %v5750
    %v5763 = vsub.f32 0.0, %v5752
    %v5764 = vmul.f32 %v5756, 1.442695
    %v5765 = vpow.pop %v5764
    %v5766 = vmul.f32 %v5757, 1.442695
    %v5767 = vpow.pop %v5766
    %v5768 = vmul.f32 %v5758, 1.442695
    %v5769 = vpow.pop %v5768
    %v5770 = vmul.f32 %v5759, 1.442695
    %v5771 = vpow.pop %v5770
    %v5772 = vmul.f32 %v5760, 1.442695
    %v5773 = vpow.pop %v5772
    %v5774 = vmul.f32 %v5761, 1.442695
    %v5775 = vpow.pop %v5774
    %v5776 = vmul.f32 %v5762, 1.442695
    %v5777 = vpow.pop %v5776
    %v5778 = vmul.f32 %v5763, 1.442695
    %v5779 = vpow.pop %v5778
    %v5780 = vadd.f32 %v5765, 1.0
    %v5781 = vadd.f32 %v5767, 1.0
    %v5782 = vadd.f32 %v5769, 1.0
    %v5783 = vadd.f32 %v5771, 1.0
    %v5784 = vadd.f32 %v5773, 1.0
    %v5785 = vadd.f32 %v5775, 1.0
    %v5786 = vadd.f32 %v5777, 1.0
    %v5787 = vadd.f32 %v5779, 1.0
    %v5788 = vrcp.pop %v5780
    %v5789 = vrcp.pop %v5781
    %v5790 = vrcp.pop %v5782
    %v5791 = vrcp.pop %v5783
    %v5792 = vrcp.pop %v5784
    %v5793 = vrcp.pop %v5785
    %v5794 = vrcp.pop %v5786
    %v5795 = vrcp.pop %v5787
    %5796 = vst [vmem:[%s15] sm:$0xff] %v5788
    %5797 = vst [vmem:[%s15 + $0x8] sm:$0xff] %v5789
    %5798 = vst [vmem:[%s15 + $0x10] sm:$0xff] %v5790
    %5799 = vst [vmem:[%s15 + $0x18] sm:$0xff] %v5791
    %5800 = vst [vmem:[%s15 + $0x20] sm:$0xff] %v5792
    %5801 = vst [vmem:[%s15 + $0x28] sm:$0xff] %v5793
    %5802 = vst [vmem:[%s15 + $0x30] sm:$0xff] %v5794
    %5803 = vst [vmem:[%s15 + $0x38] sm:$0xff] %v5795
    // Predicated region
    $region78: #{vae_forward.1} parent=1 // pred_check
      _
    $region79: #{vae_forward.1} parent=1 // pred_check_branch
      %5805 = sbr.rel (0) target = $region81
    $region80: #{vae_forward.1} parent=1 // pred_region
      _
    $region81: #{vae_forward.1} parent=1 // pred_fallthru
      _
    // Predicated region
    $region82: #{vae_forward.1} parent=1 // pred_check
      _
    $region83: #{vae_forward.1} parent=1 // pred_check_branch
      %5807 = sbr.rel (0) target = $region85
    $region84: #{vae_forward.1} parent=1 // pred_region
      _
    $region85: #{vae_forward.1} parent=1 // pred_fallthru
      _
    // Predicated region
    $region86: #{vae_forward.1} parent=1 // pred_check
      _
    $region87: #{vae_forward.1} parent=1 // pred_check_branch
      %5809 = sbr.rel (0) target = $region89
    $region88: #{vae_forward.1} parent=1 // pred_region
      _
    $region89: #{vae_forward.1} parent=1 // pred_fallthru
      _
    // Predicated region
    $region90: #{vae_forward.1} parent=1 // pred_check
      _
    $region91: #{vae_forward.1} parent=1 // pred_check_branch
      %5811 = sbr.rel (0) target = $region93
    $region92: #{vae_forward.1} parent=1 // pred_region
      _
    $region93: #{vae_forward.1} parent=1 // pred_fallthru
      _
    %5812 = vsyncpa [#allocation3], 1
    %5813 = vsyncpa [#allocation5], 1
    %5814 = vsyncpa [#allocation8], 1

</llo_original>
